<compile_context>
chip_gen: v5e
topology: v5e:2x2
jax: 0.10.0
libtpu: 0.0.40
codegen_flags: <defaults>
</compile_context>

<pallas_src>
import functools

import jax
import jax.numpy as jnp
from jax.experimental import pallas as pl
from jax.experimental.pallas import tpu as pltpu

LANE = 128  # TPU lane width; channel dims are padded up to a multiple of this.


def _round_up(x, m):
    return (x + m - 1) // m * m


# ---------------------------------------------------------------------------
# Fused ResBlock kernel (one batch element per grid step)
# ---------------------------------------------------------------------------
def _resblock_kernel(*refs, H, W, Ho, Wo, stride, cin, cout, has_ds):
    """Fused ResBlock forward for one image (channel dims lane-padded)."""
    if has_ds:
        (x_ref, w1_ref, s1_ref, b1_ref, w2_ref, s2_ref, b2_ref,
         wds_ref, sds_ref, bds_ref, out_ref, xp_ref, zp_ref) = refs
    else:
        (x_ref, w1_ref, s1_ref, b1_ref, w2_ref, s2_ref, b2_ref,
         out_ref, xp_ref, zp_ref) = refs
        wds_ref = sds_ref = bds_ref = None

    s = stride

    def taps3x3(v, step):
        """im2col: concatenate the 9 (strided) taps on the lane axis and
        flatten space -> one (Ho*Wo, 9*C) operand for a single MXU dot."""
        cols = []
        for kh in range(3):
            for kw in range(3):
                if step == 1:
                    t = v[kh:kh + Ho, kw:kw + Wo, :]
                else:   # in-kernel stride: static strided slice, no wasted conv work
                    t = v[kh:kh + step * (Ho - 1) + 1:step,
                          kw:kw + step * (Wo - 1) + 1:step, :]
                cols.append(t)
        return jnp.concatenate(cols, axis=-1).reshape(Ho * Wo, -1)

    # -- stage 0: build the 1-pixel zero halo in VMEM (no HBM pad copy) -----
    xp_ref[...] = jnp.zeros_like(xp_ref)
    xp_ref[1:H + 1, 1:W + 1, :] = x_ref[0].astype(jnp.float32)
    xv = xp_ref[...].astype(jnp.bfloat16)               # (H+2, W+2, cin)

    # -- conv1 (stride s) + BN1 + ReLU: one K = 9*cin bf16 matmul, f32 acc --
    acc1 = jnp.dot(taps3x3(xv, s), w1_ref[...],
                   preferred_element_type=jnp.float32)
    z = jnp.maximum(acc1 * s1_ref[...] + b1_ref[...], 0.0)

    # -- intermediate activation stays in VMEM (padded for conv2's halo) ----
    zp_ref[...] = jnp.zeros_like(zp_ref)
    zp_ref[1:Ho + 1, 1:Wo + 1, :] = z.reshape(Ho, Wo, cout)
    zv = zp_ref[...].astype(jnp.bfloat16)                # (Ho+2, Wo+2, cout)

    # -- conv2 (stride 1) + BN2: one K = 9*cout bf16 matmul, f32 acc --------
    acc2 = jnp.dot(taps3x3(zv, 1), w2_ref[...],
                   preferred_element_type=jnp.float32)
    y = acc2 * s2_ref[...] + b2_ref[...]

    # -- identity path: subsampled in-kernel; optional fused 1x1 conv + BN --
    if s == 1:
        idv = xv[1:1 + Ho, 1:1 + Wo, :]
    else:
        idv = xv[1:1 + s * (Ho - 1) + 1:s, 1:1 + s * (Wo - 1) + 1:s, :]
    idv = idv.reshape(Ho * Wo, cin)
    if has_ds:
        ident = (jnp.dot(idv, wds_ref[...], preferred_element_type=jnp.float32)
                 * sds_ref[...] + bds_ref[...])
    else:
        ident = idv.astype(jnp.float32)                  # cin == cout here

    # -- residual add + ReLU; lane-dense store (cout is a multiple of 128) --
    out = jnp.maximum(y + ident, 0.0)
    out_ref[0] = out.reshape(Ho, Wo, cout).astype(out_ref.dtype)


# ---------------------------------------------------------------------------
# Wrapper: NCHW in / NCHW out, folded (inference-mode) BatchNorm
# ---------------------------------------------------------------------------
def res_block_forward(x_nchw, params, stride=1):
    x = jnp.transpose(x_nchw, (0, 2, 3, 1))              # NCHW -> NHWC
    N, H, W, cin = x.shape
    cout = params["w1"].shape[-1]
    has_ds = params.get("w_ds") is not None
    if not has_ds and (stride != 1 or cin != cout):
        raise ValueError("downsample params are required when stride != 1 "
                         "or in_ch != out_ch")

    Ho = (H - 1) // stride + 1
    Wo = (W - 1) // stride + 1
    cin_p = _round_up(cin, LANE)
    cout_p = _round_up(cout, LANE)

    # bf16 activations/weights for the MXU; channels lane-padded (no-op when
    # the channel count is already a multiple of 128).
    xb = x.astype(jnp.bfloat16)
    if cin_p != cin:
        xb = jnp.pad(xb, ((0, 0), (0, 0), (0, 0), (0, cin_p - cin)))

    def prep_w3x3(w, ci_p, co_p):        # (3,3,ci,co) -> (9*ci_p, co_p) bf16
        ci, co = w.shape[2], w.shape[3]
        w = jnp.pad(w, ((0, 0), (0, 0), (0, ci_p - ci), (0, co_p - co)))
        return w.reshape(9 * ci_p, co_p).astype(jnp.bfloat16)

    def prep_vec(v, co_p, fill):         # (co,) -> (1, co_p) f32
        co = v.shape[0]
        v = jnp.pad(v, (0, co_p - co), constant_values=fill)
        return v.reshape(1, co_p).astype(jnp.float32)

    args = [
        xb,
        prep_w3x3(params["w1"], cin_p, cout_p),
        prep_vec(params["scale1"], cout_p, 1.0),
        prep_vec(params["bias1"], cout_p, 0.0),
        prep_w3x3(params["w2"], cout_p, cout_p),
        prep_vec(params["scale2"], cout_p, 1.0),
        prep_vec(params["bias2"], cout_p, 0.0),
    ]
    vec_spec = pl.BlockSpec((1, cout_p), lambda n: (0, 0))
    in_specs = [
        pl.BlockSpec((1, H, W, cin_p), lambda n: (n, 0, 0, 0)),
        pl.BlockSpec((9 * cin_p, cout_p), lambda n: (0, 0)),
        vec_spec, vec_spec,
        pl.BlockSpec((9 * cout_p, cout_p), lambda n: (0, 0)),
        vec_spec, vec_spec,
    ]
    if has_ds:
        wds = jnp.pad(params["w_ds"],
                      ((0, cin_p - cin), (0, cout_p - cout))).astype(jnp.bfloat16)
        args += [wds,
                 prep_vec(params["scale_ds"], cout_p, 1.0),
                 prep_vec(params["bias_ds"], cout_p, 0.0)]
        in_specs += [pl.BlockSpec((cin_p, cout_p), lambda n: (0, 0)),
                     vec_spec, vec_spec]

    kern = functools.partial(
        _resblock_kernel, H=H, W=W, Ho=Ho, Wo=Wo, stride=stride,
        cin=cin_p, cout=cout_p, has_ds=has_ds)

    out = pl.pallas_call(
        kern,
        grid=(N,),
        in_specs=in_specs,
        out_specs=pl.BlockSpec((1, Ho, Wo, cout_p), lambda n: (n, 0, 0, 0)),
        out_shape=jax.ShapeDtypeStruct((N, Ho, Wo, cout_p), jnp.float32),
        scratch_shapes=[pltpu.VMEM((H + 2, W + 2, cin_p), jnp.float32),
                        pltpu.VMEM((Ho + 2, Wo + 2, cout_p), jnp.float32)],
        compiler_params=pltpu.CompilerParams(
            dimension_semantics=("parallel",),
            vmem_limit_bytes=32 * 1024 * 1024),
    )(*args)

    out = out[..., :cout]                                # drop channel padding
    return jnp.transpose(out, (0, 3, 1, 2))              # NHWC -> NCHW


# ---------------------------------------------------------------------------
# Deterministic parameter init + pure-JAX reference
# ---------------------------------------------------------------------------
def fold_bn(gamma, beta, mean, var, eps=1e-5):
    scale = gamma / jnp.sqrt(var + eps)
    bias = beta - mean * scale
    return scale, bias


def make_params(key, in_ch, out_ch, stride):
    ks = jax.random.split(key, 16)

    def bn_params(k0, k1, k2, k3, c):
        gamma = jax.random.uniform(k0, (c,), minval=0.5, maxval=1.5)
        beta = 0.1 * jax.random.normal(k1, (c,))
        mean = 0.1 * jax.random.normal(k2, (c,))
        var = jax.random.uniform(k3, (c,), minval=0.5, maxval=1.5)
        return fold_bn(gamma, beta, mean, var)

    w1 = 0.1 * jax.random.normal(ks[0], (3, 3, in_ch, out_ch), jnp.float32)
    w2 = 0.1 * jax.random.normal(ks[1], (3, 3, out_ch, out_ch), jnp.float32)
    scale1, bias1 = bn_params(ks[2], ks[3], ks[4], ks[5], out_ch)
    scale2, bias2 = bn_params(ks[6], ks[7], ks[8], ks[9], out_ch)

    params = dict(w1=w1, w2=w2, scale1=scale1, bias1=bias1,
                  scale2=scale2, bias2=bias2, w_ds=None)
    if stride != 1 or in_ch != out_ch:
        params["w_ds"] = 0.1 * jax.random.normal(
            ks[10], (in_ch, out_ch), jnp.float32)
        params["scale_ds"], params["bias_ds"] = bn_params(
            ks[11], ks[12], ks[13], ks[14], out_ch)
    return params


def ref_res_block(x_nchw, p, stride=1):
    """Pure-JAX reference mirroring the kernel's bf16 input/weight/intermediate
    quantization (accumulation in f32)."""
    q = lambda a: a.astype(jnp.bfloat16).astype(jnp.float32)
    x = q(jnp.transpose(x_nchw, (0, 2, 3, 1)))

    def c3(z, w, s):
        return jax.lax.conv_general_dilated(
            z, w, (s, s), ((1, 1), (1, 1)),
            dimension_numbers=("NHWC", "HWIO", "NHWC"),
            precision=jax.lax.Precision.HIGHEST)

    out = jnp.maximum(c3(x, q(p["w1"]), stride) * p["scale1"] + p["bias1"], 0.0)
    out = q(out)                                # kernel keeps bf16 intermediate
    out = c3(out, q(p["w2"]), 1) * p["scale2"] + p["bias2"]
    if p.get("w_ds") is not None:
        ident = jax.lax.conv_general_dilated(
            x, q(p["w_ds"])[None, None], (stride, stride), "VALID",
            dimension_numbers=("NHWC", "HWIO", "NHWC"),
            precision=jax.lax.Precision.HIGHEST)
        ident = ident * p["scale_ds"] + p["bias_ds"]
    else:
        ident = x
    out = jnp.maximum(out + ident, 0.0)
    return jnp.transpose(out, (0, 3, 1, 2))


# ---------------------------------------------------------------------------
if __name__ == "__main__":
    key = jax.random.PRNGKey(0)
    k_x, k_p = jax.random.split(key)

    N, IN_CH, OUT_CH, HW, STRIDE = 2, 4, 8, 16, 1
    x = jax.random.normal(k_x, (N, IN_CH, HW, HW), jnp.float32)   # NCHW input
    params = make_params(k_p, IN_CH, OUT_CH, STRIDE)

    y = jax.block_until_ready(res_block_forward(x, params, stride=STRIDE))
    y_ref = jax.block_until_ready(ref_res_block(x, params, stride=STRIDE))

    Ho = (HW - 1) // STRIDE + 1
    assert y.shape == (N, OUT_CH, Ho, Ho)
    assert jnp.allclose(y, y_ref, atol=1e-2, rtol=1e-2), "mismatch vs reference"

    print("KERNEL_OK")
</pallas_src>

<mosaic_0001>
module attributes {stable_mosaic.version = 11 : i64} {
  func.func @_resblock_kernel(%arg0: i32, %arg1: memref<1x16x16x128xbf16, #tpu.memory_space<vmem>>, %arg2: memref<1152x128xbf16, #tpu.memory_space<vmem>>, %arg3: memref<1x128xf32, #tpu.memory_space<vmem>>, %arg4: memref<1x128xf32, #tpu.memory_space<vmem>>, %arg5: memref<1152x128xbf16, #tpu.memory_space<vmem>>, %arg6: memref<1x128xf32, #tpu.memory_space<vmem>>, %arg7: memref<1x128xf32, #tpu.memory_space<vmem>>, %arg8: memref<128x128xbf16, #tpu.memory_space<vmem>>, %arg9: memref<1x128xf32, #tpu.memory_space<vmem>>, %arg10: memref<1x128xf32, #tpu.memory_space<vmem>>, %arg11: memref<1x16x16x128xf32, #tpu.memory_space<vmem>>, %arg12: memref<18x18x128xf32, #tpu.memory_space<vmem>>, %arg13: memref<18x18x128xf32, #tpu.memory_space<vmem>>) attributes {dimension_semantics = [#tpu.dimension_semantics<parallel>], iteration_bounds = array<i64: 2>, scalar_prefetch = 0 : i64, scratch_operands = 2 : i64, tpu.core_type = #tpu.core_type<tc>, window_params = [{transform_indices = @transform_0, window_bounds = array<i64: 1, 16, 16, 128>}, {pipeline_mode = #tpu.pipeline_mode<synchronous>, transform_indices = @transform_1, window_bounds = array<i64: 1152, 128>}, {pipeline_mode = #tpu.pipeline_mode<synchronous>, transform_indices = @transform_2, window_bounds = array<i64: 1, 128>}, {pipeline_mode = #tpu.pipeline_mode<synchronous>, transform_indices = @transform_3, window_bounds = array<i64: 1, 128>}, {pipeline_mode = #tpu.pipeline_mode<synchronous>, transform_indices = @transform_4, window_bounds = array<i64: 1152, 128>}, {pipeline_mode = #tpu.pipeline_mode<synchronous>, transform_indices = @transform_5, window_bounds = array<i64: 1, 128>}, {pipeline_mode = #tpu.pipeline_mode<synchronous>, transform_indices = @transform_6, window_bounds = array<i64: 1, 128>}, {pipeline_mode = #tpu.pipeline_mode<synchronous>, transform_indices = @transform_7, window_bounds = array<i64: 128, 128>}, {pipeline_mode = #tpu.pipeline_mode<synchronous>, transform_indices = @transform_8, window_bounds = array<i64: 1, 128>}, {pipeline_mode = #tpu.pipeline_mode<synchronous>, transform_indices = @transform_9, window_bounds = array<i64: 1, 128>}, {transform_indices = @transform_10, window_bounds = array<i64: 1, 16, 16, 128>}]} {
    %cst = arith.constant 0.000000e+00 : f32
    %0 = vector.broadcast %cst : f32 to vector<18x18x128xf32>
    %c0 = arith.constant 0 : index
    %c0_0 = arith.constant 0 : index
    %c0_1 = arith.constant 0 : index
    %1 = vector.load %arg12[%c0, %c0_0, %c0_1] : memref<18x18x128xf32, #tpu.memory_space<vmem>>, vector<18x18x128xf32>
    tpu.vector_store %arg12[%c0, %c0_0, %c0_1], %0 {strides = array<i32>} : memref<18x18x128xf32, #tpu.memory_space<vmem>>, vector<18x18x128xf32>,
    %c0_2 = arith.constant 0 : index
    %c0_3 = arith.constant 0 : index
    %c0_4 = arith.constant 0 : index
    %c0_5 = arith.constant 0 : index
    %2 = vector.load %arg1[%c0_2, %c0_3, %c0_4, %c0_5] : memref<1x16x16x128xbf16, #tpu.memory_space<vmem>>, vector<1x16x16x128xbf16>
    %3 = vector.shape_cast %2 : vector<1x16x16x128xbf16> to vector<16x16x128xbf16>
    %4 = arith.extf %3 : vector<16x16x128xbf16> to vector<16x16x128xf32>
    %c1 = arith.constant 1 : index
    %c1_6 = arith.constant 1 : index
    %c0_7 = arith.constant 0 : index
    %5 = vector.load %arg12[%c1, %c1_6, %c0_7] : memref<18x18x128xf32, #tpu.memory_space<vmem>>, vector<16x16x128xf32>
    tpu.vector_store %arg12[%c1, %c1_6, %c0_7], %4 {strides = array<i32>} : memref<18x18x128xf32, #tpu.memory_space<vmem>>, vector<16x16x128xf32>,
    %c0_8 = arith.constant 0 : index
    %c0_9 = arith.constant 0 : index
    %c0_10 = arith.constant 0 : index
    %6 = vector.load %arg12[%c0_8, %c0_9, %c0_10] : memref<18x18x128xf32, #tpu.memory_space<vmem>>, vector<18x18x128xf32>
    %7 = arith.truncf %6 : vector<18x18x128xf32> to vector<18x18x128xbf16>
    %8 = vector.extract_strided_slice %7 {offsets = [0, 0, 0], sizes = [16, 16, 128], strides = [1, 1, 1]} : vector<18x18x128xbf16> to vector<16x16x128xbf16>
    %9 = vector.extract_strided_slice %7 {offsets = [0, 1, 0], sizes = [16, 16, 128], strides = [1, 1, 1]} : vector<18x18x128xbf16> to vector<16x16x128xbf16>
    %10 = vector.extract_strided_slice %7 {offsets = [0, 2, 0], sizes = [16, 16, 128], strides = [1, 1, 1]} : vector<18x18x128xbf16> to vector<16x16x128xbf16>
    %11 = vector.extract_strided_slice %7 {offsets = [1, 0, 0], sizes = [16, 16, 128], strides = [1, 1, 1]} : vector<18x18x128xbf16> to vector<16x16x128xbf16>
    %12 = vector.extract_strided_slice %7 {offsets = [1, 1, 0], sizes = [16, 16, 128], strides = [1, 1, 1]} : vector<18x18x128xbf16> to vector<16x16x128xbf16>
    %13 = vector.extract_strided_slice %7 {offsets = [1, 2, 0], sizes = [16, 16, 128], strides = [1, 1, 1]} : vector<18x18x128xbf16> to vector<16x16x128xbf16>
    %14 = vector.extract_strided_slice %7 {offsets = [2, 0, 0], sizes = [16, 16, 128], strides = [1, 1, 1]} : vector<18x18x128xbf16> to vector<16x16x128xbf16>
    %15 = vector.extract_strided_slice %7 {offsets = [2, 1, 0], sizes = [16, 16, 128], strides = [1, 1, 1]} : vector<18x18x128xbf16> to vector<16x16x128xbf16>
    %16 = vector.extract_strided_slice %7 {offsets = [2, 2, 0], sizes = [16, 16, 128], strides = [1, 1, 1]} : vector<18x18x128xbf16> to vector<16x16x128xbf16>
    %17 = tpu.concatenate %8, %9, %10, %11, %12, %13, %14, %15, %16 in 2 : vector<16x16x128xbf16>, vector<16x16x128xbf16>, vector<16x16x128xbf16>, vector<16x16x128xbf16>, vector<16x16x128xbf16>, vector<16x16x128xbf16>, vector<16x16x128xbf16>, vector<16x16x128xbf16>, vector<16x16x128xbf16> -> vector<16x16x1152xbf16>
    %18 = vector.shape_cast %17 : vector<16x16x1152xbf16> to vector<256x1152xbf16>
    %c0_11 = arith.constant 0 : index
    %c0_12 = arith.constant 0 : index
    %19 = vector.load %arg2[%c0_11, %c0_12] : memref<1152x128xbf16, #tpu.memory_space<vmem>>, vector<1152x128xbf16>
    %cst_13 = arith.constant dense<0.000000e+00> : vector<256x128xf32>
    %20 = tpu.matmul %18, %19, %cst_13 {dimension_numbers = #tpu.dot_dimension_numbers<[1], [0], [0], [1], [0, 0, 1, 1], [], []>} : vector<256x1152xbf16>, vector<1152x128xbf16>, vector<256x128xf32> -> vector<256x128xf32>
    %c0_14 = arith.constant 0 : index
    %c0_15 = arith.constant 0 : index
    %21 = vector.load %arg3[%c0_14, %c0_15] : memref<1x128xf32, #tpu.memory_space<vmem>>, vector<1x128xf32>
    %22 = vector.broadcast %21 : vector<1x128xf32> to vector<256x128xf32>
    %23 = arith.mulf %20, %22 : vector<256x128xf32>
    %c0_16 = arith.constant 0 : index
    %c0_17 = arith.constant 0 : index
    %24 = vector.load %arg4[%c0_16, %c0_17] : memref<1x128xf32, #tpu.memory_space<vmem>>, vector<1x128xf32>
    %25 = vector.broadcast %24 : vector<1x128xf32> to vector<256x128xf32>
    %26 = arith.addf %23, %25 : vector<256x128xf32>
    %cst_18 = arith.constant 0.000000e+00 : f32
    %27 = vector.broadcast %cst_18 : f32 to vector<256x128xf32>
    %28 = arith.maximumf %26, %27 : vector<256x128xf32>
    %cst_19 = arith.constant 0.000000e+00 : f32
    %29 = vector.broadcast %cst_19 : f32 to vector<18x18x128xf32>
    %c0_20 = arith.constant 0 : index
    %c0_21 = arith.constant 0 : index
    %c0_22 = arith.constant 0 : index
    %30 = vector.load %arg13[%c0_20, %c0_21, %c0_22] : memref<18x18x128xf32, #tpu.memory_space<vmem>>, vector<18x18x128xf32>
    tpu.vector_store %arg13[%c0_20, %c0_21, %c0_22], %29 {strides = array<i32>} : memref<18x18x128xf32, #tpu.memory_space<vmem>>, vector<18x18x128xf32>,
    %31 = vector.shape_cast %28 : vector<256x128xf32> to vector<16x16x128xf32>
    %c1_23 = arith.constant 1 : index
    %c1_24 = arith.constant 1 : index
    %c0_25 = arith.constant 0 : index
    %32 = vector.load %arg13[%c1_23, %c1_24, %c0_25] : memref<18x18x128xf32, #tpu.memory_space<vmem>>, vector<16x16x128xf32>
    tpu.vector_store %arg13[%c1_23, %c1_24, %c0_25], %31 {strides = array<i32>} : memref<18x18x128xf32, #tpu.memory_space<vmem>>, vector<16x16x128xf32>,
    %c0_26 = arith.constant 0 : index
    %c0_27 = arith.constant 0 : index
    %c0_28 = arith.constant 0 : index
    %33 = vector.load %arg13[%c0_26, %c0_27, %c0_28] : memref<18x18x128xf32, #tpu.memory_space<vmem>>, vector<18x18x128xf32>
    %34 = arith.truncf %33 : vector<18x18x128xf32> to vector<18x18x128xbf16>
    %35 = vector.extract_strided_slice %34 {offsets = [0, 0, 0], sizes = [16, 16, 128], strides = [1, 1, 1]} : vector<18x18x128xbf16> to vector<16x16x128xbf16>
    %36 = vector.extract_strided_slice %34 {offsets = [0, 1, 0], sizes = [16, 16, 128], strides = [1, 1, 1]} : vector<18x18x128xbf16> to vector<16x16x128xbf16>
    %37 = vector.extract_strided_slice %34 {offsets = [0, 2, 0], sizes = [16, 16, 128], strides = [1, 1, 1]} : vector<18x18x128xbf16> to vector<16x16x128xbf16>
    %38 = vector.extract_strided_slice %34 {offsets = [1, 0, 0], sizes = [16, 16, 128], strides = [1, 1, 1]} : vector<18x18x128xbf16> to vector<16x16x128xbf16>
    %39 = vector.extract_strided_slice %34 {offsets = [1, 1, 0], sizes = [16, 16, 128], strides = [1, 1, 1]} : vector<18x18x128xbf16> to vector<16x16x128xbf16>
    %40 = vector.extract_strided_slice %34 {offsets = [1, 2, 0], sizes = [16, 16, 128], strides = [1, 1, 1]} : vector<18x18x128xbf16> to vector<16x16x128xbf16>
    %41 = vector.extract_strided_slice %34 {offsets = [2, 0, 0], sizes = [16, 16, 128], strides = [1, 1, 1]} : vector<18x18x128xbf16> to vector<16x16x128xbf16>
    %42 = vector.extract_strided_slice %34 {offsets = [2, 1, 0], sizes = [16, 16, 128], strides = [1, 1, 1]} : vector<18x18x128xbf16> to vector<16x16x128xbf16>
    %43 = vector.extract_strided_slice %34 {offsets = [2, 2, 0], sizes = [16, 16, 128], strides = [1, 1, 1]} : vector<18x18x128xbf16> to vector<16x16x128xbf16>
    %44 = tpu.concatenate %35, %36, %37, %38, %39, %40, %41, %42, %43 in 2 : vector<16x16x128xbf16>, vector<16x16x128xbf16>, vector<16x16x128xbf16>, vector<16x16x128xbf16>, vector<16x16x128xbf16>, vector<16x16x128xbf16>, vector<16x16x128xbf16>, vector<16x16x128xbf16>, vector<16x16x128xbf16> -> vector<16x16x1152xbf16>
    %45 = vector.shape_cast %44 : vector<16x16x1152xbf16> to vector<256x1152xbf16>
    %c0_29 = arith.constant 0 : index
    %c0_30 = arith.constant 0 : index
    %46 = vector.load %arg5[%c0_29, %c0_30] : memref<1152x128xbf16, #tpu.memory_space<vmem>>, vector<1152x128xbf16>
    %cst_31 = arith.constant dense<0.000000e+00> : vector<256x128xf32>
    %47 = tpu.matmul %45, %46, %cst_31 {dimension_numbers = #tpu.dot_dimension_numbers<[1], [0], [0], [1], [0, 0, 1, 1], [], []>} : vector<256x1152xbf16>, vector<1152x128xbf16>, vector<256x128xf32> -> vector<256x128xf32>
    %c0_32 = arith.constant 0 : index
    %c0_33 = arith.constant 0 : index
    %48 = vector.load %arg6[%c0_32, %c0_33] : memref<1x128xf32, #tpu.memory_space<vmem>>, vector<1x128xf32>
    %49 = vector.broadcast %48 : vector<1x128xf32> to vector<256x128xf32>
    %50 = arith.mulf %47, %49 : vector<256x128xf32>
    %c0_34 = arith.constant 0 : index
    %c0_35 = arith.constant 0 : index
    %51 = vector.load %arg7[%c0_34, %c0_35] : memref<1x128xf32, #tpu.memory_space<vmem>>, vector<1x128xf32>
    %52 = vector.broadcast %51 : vector<1x128xf32> to vector<256x128xf32>
    %53 = arith.addf %50, %52 : vector<256x128xf32>
    %54 = vector.extract_strided_slice %7 {offsets = [1, 1, 0], sizes = [16, 16, 128], strides = [1, 1, 1]} : vector<18x18x128xbf16> to vector<16x16x128xbf16>
    %55 = vector.shape_cast %54 : vector<16x16x128xbf16> to vector<256x128xbf16>
    %c0_36 = arith.constant 0 : index
    %c0_37 = arith.constant 0 : index
    %56 = vector.load %arg8[%c0_36, %c0_37] : memref<128x128xbf16, #tpu.memory_space<vmem>>, vector<128x128xbf16>
    %cst_38 = arith.constant dense<0.000000e+00> : vector<256x128xf32>
    %57 = tpu.matmul %55, %56, %cst_38 {dimension_numbers = #tpu.dot_dimension_numbers<[1], [0], [0], [1], [0, 0, 1, 1], [], []>} : vector<256x128xbf16>, vector<128x128xbf16>, vector<256x128xf32> -> vector<256x128xf32>
    %c0_39 = arith.constant 0 : index
    %c0_40 = arith.constant 0 : index
    %58 = vector.load %arg9[%c0_39, %c0_40] : memref<1x128xf32, #tpu.memory_space<vmem>>, vector<1x128xf32>
    %59 = vector.broadcast %58 : vector<1x128xf32> to vector<256x128xf32>
    %60 = arith.mulf %57, %59 : vector<256x128xf32>
    %c0_41 = arith.constant 0 : index
    %c0_42 = arith.constant 0 : index
    %61 = vector.load %arg10[%c0_41, %c0_42] : memref<1x128xf32, #tpu.memory_space<vmem>>, vector<1x128xf32>
    %62 = vector.broadcast %61 : vector<1x128xf32> to vector<256x128xf32>
    %63 = arith.addf %60, %62 : vector<256x128xf32>
    %64 = arith.addf %53, %63 : vector<256x128xf32>
    %cst_43 = arith.constant 0.000000e+00 : f32
    %65 = vector.broadcast %cst_43 : f32 to vector<256x128xf32>
    %66 = arith.maximumf %64, %65 : vector<256x128xf32>
    %67 = vector.shape_cast %66 : vector<256x128xf32> to vector<16x16x128xf32>
    %c0_44 = arith.constant 0 : index
    %c0_45 = arith.constant 0 : index
    %c0_46 = arith.constant 0 : index
    %c0_47 = arith.constant 0 : index
    %68 = vector.load %arg11[%c0_44, %c0_45, %c0_46, %c0_47] : memref<1x16x16x128xf32, #tpu.memory_space<vmem>>, vector<1x16x16x128xf32>
    %69 = vector.shape_cast %68 : vector<1x16x16x128xf32> to vector<16x16x128xf32>
    %70 = vector.shape_cast %67 : vector<16x16x128xf32> to vector<1x16x16x128xf32>
    tpu.vector_store %arg11[%c0_44, %c0_45, %c0_46, %c0_47], %70 {strides = array<i32>} : memref<1x16x16x128xf32, #tpu.memory_space<vmem>>, vector<1x16x16x128xf32>,
    return
  }
  func.func @transform_0(%arg0: i32) -> (i32, i32, i32, i32) {
    %c0_i32 = arith.constant 0 : i32
    %c0_i32_0 = arith.constant 0 : i32
    %c0_i32_1 = arith.constant 0 : i32
    %c0_i32_2 = arith.constant 0 : i32
    return %arg0, %c0_i32, %c0_i32_0, %c0_i32_1 : i32, i32, i32, i32
  }
  func.func @transform_1(%arg0: i32) -> (i32, i32) {
    %c0_i32 = arith.constant 0 : i32
    %c0_i32_0 = arith.constant 0 : i32
    %c0_i32_1 = arith.constant 0 : i32
    return %c0_i32, %c0_i32_0 : i32, i32
  }
  func.func @transform_2(%arg0: i32) -> (i32, i32) {
    %c0_i32 = arith.constant 0 : i32
    %c0_i32_0 = arith.constant 0 : i32
    %c0_i32_1 = arith.constant 0 : i32
    return %c0_i32, %c0_i32_0 : i32, i32
  }
  func.func @transform_3(%arg0: i32) -> (i32, i32) {
    %c0_i32 = arith.constant 0 : i32
    %c0_i32_0 = arith.constant 0 : i32
    %c0_i32_1 = arith.constant 0 : i32
    return %c0_i32, %c0_i32_0 : i32, i32
  }
  func.func @transform_4(%arg0: i32) -> (i32, i32) {
    %c0_i32 = arith.constant 0 : i32
    %c0_i32_0 = arith.constant 0 : i32
    %c0_i32_1 = arith.constant 0 : i32
    return %c0_i32, %c0_i32_0 : i32, i32
  }
  func.func @transform_5(%arg0: i32) -> (i32, i32) {
    %c0_i32 = arith.constant 0 : i32
    %c0_i32_0 = arith.constant 0 : i32
    %c0_i32_1 = arith.constant 0 : i32
    return %c0_i32, %c0_i32_0 : i32, i32
  }
  func.func @transform_6(%arg0: i32) -> (i32, i32) {
    %c0_i32 = arith.constant 0 : i32
    %c0_i32_0 = arith.constant 0 : i32
    %c0_i32_1 = arith.constant 0 : i32
    return %c0_i32, %c0_i32_0 : i32, i32
  }
  func.func @transform_7(%arg0: i32) -> (i32, i32) {
    %c0_i32 = arith.constant 0 : i32
    %c0_i32_0 = arith.constant 0 : i32
    %c0_i32_1 = arith.constant 0 : i32
    return %c0_i32, %c0_i32_0 : i32, i32
  }
  func.func @transform_8(%arg0: i32) -> (i32, i32) {
    %c0_i32 = arith.constant 0 : i32
    %c0_i32_0 = arith.constant 0 : i32
    %c0_i32_1 = arith.constant 0 : i32
    return %c0_i32, %c0_i32_0 : i32, i32
  }
  func.func @transform_9(%arg0: i32) -> (i32, i32) {
    %c0_i32 = arith.constant 0 : i32
    %c0_i32_0 = arith.constant 0 : i32
    %c0_i32_1 = arith.constant 0 : i32
    return %c0_i32, %c0_i32_0 : i32, i32
  }
  func.func @transform_10(%arg0: i32) -> (i32, i32, i32, i32) {
    %c0_i32 = arith.constant 0 : i32
    %c0_i32_0 = arith.constant 0 : i32
    %c0_i32_1 = arith.constant 0 : i32
    %c0_i32_2 = arith.constant 0 : i32
    return %arg0, %c0_i32, %c0_i32_0, %c0_i32_1 : i32, i32, i32, i32
  }
}

</mosaic_0001>

<llo_original>
// kernel: tpu_custom_call.1
$region0: #{tpu_custom_call.1}
  #allocation0 [shape = 'u32[]', space=smem, size = 0x4, offset = 0x4, fixed_abs, tag = 'smem constant byte address 0x4 - core index']
  #allocation1 [shape = 'u32[72,128]{1,0:T(1,128)}', space=vmem, size = 0x9000, scoped, tag = 'internal scratch']
  #allocation2 [shape = 'f32[18,18,128]{2,1,0:T(8,128)}', space=vmem, size = 0x36000, scoped, tag = 'scratch operand']
  #allocation3 [shape = 'f32[18,18,128]{2,1,0:T(8,128)}', space=vmem, size = 0x36000, scoped, tag = 'scratch operand']
  %s0 = inlined_call_operand.hbm [shape: bf16[2,16,16,128], index: 0, kind: input, shape index: {}]
  %s1 = inlined_call_operand.hbm [shape: bf16[1152,128], index: 1, kind: input, shape index: {}]
  %s2 = inlined_call_operand.vmem [shape: f32[1,128], index: 2, kind: input, shape index: {}]
  %s3 = inlined_call_operand.vmem [shape: f32[1,128], index: 3, kind: input, shape index: {}]
  %s4 = inlined_call_operand.hbm [shape: bf16[1152,128], index: 4, kind: input, shape index: {}]
  %s5 = inlined_call_operand.vmem [shape: f32[1,128], index: 5, kind: input, shape index: {}]
  %s6 = inlined_call_operand.vmem [shape: f32[1,128], index: 6, kind: input, shape index: {}]
  %s7 = inlined_call_operand.hbm [shape: bf16[128,128], index: 7, kind: input, shape index: {}]
  %s8 = inlined_call_operand.vmem [shape: f32[1,128], index: 8, kind: input, shape index: {}]
  %s9 = inlined_call_operand.vmem [shape: f32[1,128], index: 9, kind: input, shape index: {}]
  %s10 = inlined_call_operand.hbm [shape: f32[2,16,16,128], index: 10, kind: output, shape index: {}]
  %s11 = sld [smem:[#allocation0]]
  $region89: #{tpu_custom_call.1} parent=0
    _
  %s13 = ssub.s32 1, %s11
  %s14 = scalar_select 0, %s13, %s11
  $region1: #{tpu_custom_call.1} parent=0
    #allocation4 [shape = 'u8[131072]{0}', space=vmem, size = 0x20000, scoped, tag = 'input window, operand 0']
    #allocation5 [shape = 's32[2]{0}', space=sflag, size = 0x8, scoped, tag = 'scoped memory for tpu_custom_call.1']
    #allocation6 [shape = 's32[2]{0}', space=sflag, size = 0x8, scoped, tag = 'scoped memory for tpu_custom_call.1']
    #allocation7 [shape = 'u8[294912]{0}', space=vmem, size = 0x48000, scoped, tag = 'input window, operand 1, single buffered']
    #allocation8 [shape = 's32[1]{0}', space=sflag, size = 0x4, scoped, tag = 'scoped memory for tpu_custom_call.1']
    #allocation9 [shape = 'u8[294912]{0}', space=vmem, size = 0x48000, scoped, tag = 'input window, operand 4, single buffered']
    #allocation10 [shape = 'u8[32768]{0}', space=vmem, size = 0x8000, scoped, tag = 'input window, operand 7, single buffered']
    #allocation11 [shape = 's32[1]{0}', space=sflag, size = 0x4, scoped, tag = 'scoped memory for tpu_custom_call.1']
    #allocation12 [shape = 'u8[262144]{0}', space=vmem, size = 0x40000, scoped, tag = 'output window, operand 0']
    %15 = vsyncpa [#allocation5], 0
    %s16 = scalar_lea.sflag [#allocation5], 1
    %17 = vsyncpa %s16, 0
    %18 = vsyncpa [#allocation8], 0
    %19 = vsyncpa [#allocation11], 0
    %20 = vsyncpa [#allocation6], 0
    %s21 = scalar_lea.sflag [#allocation6], 1
    %22 = vsyncpa %s21, 0
    loop: start=0, step=1, limit=4
    $region2: #{tpu_custom_call.1} parent=1 // loop_pre_header
      _
    $region3: #{tpu_custom_call.1} parent=1 // loop_header
      %s24 = sphi 0, %s28
      %p25 = scmp.ge.s32.totalorder %s24, 4
      %s34 = sphi 0, %s36
      %s37 = sphi 0, %s34
      %s38 = sphi 0, %s37
      %s54 = sphi 0, %s38
      %s58 = sphi 0, %s58
      %s60 = sphi 0, %s58
      %s61 = sphi 0, %s60
      %s75 = sphi 0, %s61
      %s79 = sphi 0, %s79
      %s81 = sphi 0, %s79
      %s82 = sphi 0, %s81
      %s96 = sphi 0, %s82
      %s100 = sphi 0, %s100
      %s102 = sphi 0, %s100
      %s103 = sphi 0, %s102
      %s117 = sphi 0, %s103
      %s121 = sphi 0, %s121
      %s123 = sphi 0, %s121
      %s124 = sphi 0, %s123
      %s138 = sphi 0, %s124
      %s142 = sphi 0, %s142
      %s144 = sphi 0, %s142
      %s145 = sphi 0, %s144
      %s159 = sphi 0, %s145
      %s163 = sphi 0, %s163
      %s165 = sphi 0, %s163
      %s166 = sphi 0, %s165
      %s180 = sphi 0, %s166
      %s184 = sphi 0, %s184
      %s186 = sphi 0, %s184
      %s187 = sphi 0, %s186
      %s201 = sphi 0, %s187
      %s205 = sphi 0, %s205
      %s207 = sphi 0, %s205
      %s208 = sphi 0, %s207
      %s222 = sphi 0, %s208
      %s226 = sphi 0, %s226
      %s228 = sphi 0, %s226
      %s229 = sphi 0, %s228
      %s243 = sphi 0, %s229
      %s249 = sphi 0, %s251
      %s252 = sphi 0, %s249
      %s253 = sphi 0, %s252
      %s269 = sphi 0, %s253
    $region4: #{tpu_custom_call.1} parent=1 // loop_header_branch
      %27 = sbr.rel (%p25) target = $region8
    $region5: #{tpu_custom_call.1} parent=1 // loop_body
      %s29 = ssub.s32 %s24, 1
      %s30 = ssub.s32 %s24, 2
      %s31 = sadd.s32 %s24, 1
      %s32 = ssub.s32 %s24, %s31
      %p33 = scmp.eq.s32.totalorder %s32, 0
      %s35 = sadd.s32 %s34, 1
      %s36 = scalar_select %p33, %s34, %s35
      %p39 = pneg %p33
      %p40 = scmp.eq.s32.totalorder %s24, 1
      %p41 = por %p39, %p40
      %p42 = scmp.ne.s32.totalorder %s34, %s37
      %p43 = scmp.eq.s32.totalorder %s24, 0
      %p44 = por %p42, %p43
      %p45 = scmp.ne.s32.totalorder %s34, %s37
      %p46 = scmp.eq.s32.totalorder %s29, 1
      %p47 = por %p45, %p46
      %p48 = scmp.ne.s32.totalorder %s37, %s38
      %p49 = scmp.eq.s32.totalorder %s29, 0
      %p50 = por %p48, %p49
      %p51 = scmp.ne.s32.totalorder %s37, %s38
      %p52 = scmp.eq.s32.totalorder %s30, 1
      %p53 = por %p51, %p52
      %p55 = scmp.ne.s32.totalorder %s38, %s54
      %p56 = scmp.eq.s32.totalorder %s30, 0
      %p57 = por %p55, %p56
      %s59 = sadd.s32 %s58, 1
      %p62 = scmp.eq.s32.totalorder %s24, 1
      %p63 = scmp.ne.s32.totalorder %s58, %s60
      %p64 = scmp.eq.s32.totalorder %s24, 0
      %p65 = por %p63, %p64
      %p66 = scmp.ne.s32.totalorder %s58, %s60
      %p67 = scmp.eq.s32.totalorder %s29, 1
      %p68 = por %p66, %p67
      %p69 = scmp.ne.s32.totalorder %s60, %s61
      %p70 = scmp.eq.s32.totalorder %s29, 0
      %p71 = por %p69, %p70
      %p72 = scmp.ne.s32.totalorder %s60, %s61
      %p73 = scmp.eq.s32.totalorder %s30, 1
      %p74 = por %p72, %p73
      %p76 = scmp.ne.s32.totalorder %s61, %s75
      %p77 = scmp.eq.s32.totalorder %s30, 0
      %p78 = por %p76, %p77
      %s80 = sadd.s32 %s79, 1
      %p83 = scmp.eq.s32.totalorder %s24, 1
      %p84 = scmp.ne.s32.totalorder %s79, %s81
      %p85 = scmp.eq.s32.totalorder %s24, 0
      %p86 = por %p84, %p85
      %p87 = scmp.ne.s32.totalorder %s79, %s81
      %p88 = scmp.eq.s32.totalorder %s29, 1
      %p89 = por %p87, %p88
      %p90 = scmp.ne.s32.totalorder %s81, %s82
      %p91 = scmp.eq.s32.totalorder %s29, 0
      %p92 = por %p90, %p91
      %p93 = scmp.ne.s32.totalorder %s81, %s82
      %p94 = scmp.eq.s32.totalorder %s30, 1
      %p95 = por %p93, %p94
      %p97 = scmp.ne.s32.totalorder %s82, %s96
      %p98 = scmp.eq.s32.totalorder %s30, 0
      %p99 = por %p97, %p98
      %s101 = sadd.s32 %s100, 1
      %p104 = scmp.eq.s32.totalorder %s24, 1
      %p105 = scmp.ne.s32.totalorder %s100, %s102
      %p106 = scmp.eq.s32.totalorder %s24, 0
      %p107 = por %p105, %p106
      %p108 = scmp.ne.s32.totalorder %s100, %s102
      %p109 = scmp.eq.s32.totalorder %s29, 1
      %p110 = por %p108, %p109
      %p111 = scmp.ne.s32.totalorder %s102, %s103
      %p112 = scmp.eq.s32.totalorder %s29, 0
      %p113 = por %p111, %p112
      %p114 = scmp.ne.s32.totalorder %s102, %s103
      %p115 = scmp.eq.s32.totalorder %s30, 1
      %p116 = por %p114, %p115
      %p118 = scmp.ne.s32.totalorder %s103, %s117
      %p119 = scmp.eq.s32.totalorder %s30, 0
      %p120 = por %p118, %p119
      %s122 = sadd.s32 %s121, 1
      %p125 = scmp.eq.s32.totalorder %s24, 1
      %p126 = scmp.ne.s32.totalorder %s121, %s123
      %p127 = scmp.eq.s32.totalorder %s24, 0
      %p128 = por %p126, %p127
      %p129 = scmp.ne.s32.totalorder %s121, %s123
      %p130 = scmp.eq.s32.totalorder %s29, 1
      %p131 = por %p129, %p130
      %p132 = scmp.ne.s32.totalorder %s123, %s124
      %p133 = scmp.eq.s32.totalorder %s29, 0
      %p134 = por %p132, %p133
      %p135 = scmp.ne.s32.totalorder %s123, %s124
      %p136 = scmp.eq.s32.totalorder %s30, 1
      %p137 = por %p135, %p136
      %p139 = scmp.ne.s32.totalorder %s124, %s138
      %p140 = scmp.eq.s32.totalorder %s30, 0
      %p141 = por %p139, %p140
      %s143 = sadd.s32 %s142, 1
      %p146 = scmp.eq.s32.totalorder %s24, 1
      %p147 = scmp.ne.s32.totalorder %s142, %s144
      %p148 = scmp.eq.s32.totalorder %s24, 0
      %p149 = por %p147, %p148
      %p150 = scmp.ne.s32.totalorder %s142, %s144
      %p151 = scmp.eq.s32.totalorder %s29, 1
      %p152 = por %p150, %p151
      %p153 = scmp.ne.s32.totalorder %s144, %s145
      %p154 = scmp.eq.s32.totalorder %s29, 0
      %p155 = por %p153, %p154
      %p156 = scmp.ne.s32.totalorder %s144, %s145
      %p157 = scmp.eq.s32.totalorder %s30, 1
      %p158 = por %p156, %p157
      %p160 = scmp.ne.s32.totalorder %s145, %s159
      %p161 = scmp.eq.s32.totalorder %s30, 0
      %p162 = por %p160, %p161
      %s164 = sadd.s32 %s163, 1
      %p167 = scmp.eq.s32.totalorder %s24, 1
      %p168 = scmp.ne.s32.totalorder %s163, %s165
      %p169 = scmp.eq.s32.totalorder %s24, 0
      %p170 = por %p168, %p169
      %p171 = scmp.ne.s32.totalorder %s163, %s165
      %p172 = scmp.eq.s32.totalorder %s29, 1
      %p173 = por %p171, %p172
      %p174 = scmp.ne.s32.totalorder %s165, %s166
      %p175 = scmp.eq.s32.totalorder %s29, 0
      %p176 = por %p174, %p175
      %p177 = scmp.ne.s32.totalorder %s165, %s166
      %p178 = scmp.eq.s32.totalorder %s30, 1
      %p179 = por %p177, %p178
      %p181 = scmp.ne.s32.totalorder %s166, %s180
      %p182 = scmp.eq.s32.totalorder %s30, 0
      %p183 = por %p181, %p182
      %s185 = sadd.s32 %s184, 1
      %p188 = scmp.eq.s32.totalorder %s24, 1
      %p189 = scmp.ne.s32.totalorder %s184, %s186
      %p190 = scmp.eq.s32.totalorder %s24, 0
      %p191 = por %p189, %p190
      %p192 = scmp.ne.s32.totalorder %s184, %s186
      %p193 = scmp.eq.s32.totalorder %s29, 1
      %p194 = por %p192, %p193
      %p195 = scmp.ne.s32.totalorder %s186, %s187
      %p196 = scmp.eq.s32.totalorder %s29, 0
      %p197 = por %p195, %p196
      %p198 = scmp.ne.s32.totalorder %s186, %s187
      %p199 = scmp.eq.s32.totalorder %s30, 1
      %p200 = por %p198, %p199
      %p202 = scmp.ne.s32.totalorder %s187, %s201
      %p203 = scmp.eq.s32.totalorder %s30, 0
      %p204 = por %p202, %p203
      %s206 = sadd.s32 %s205, 1
      %p209 = scmp.eq.s32.totalorder %s24, 1
      %p210 = scmp.ne.s32.totalorder %s205, %s207
      %p211 = scmp.eq.s32.totalorder %s24, 0
      %p212 = por %p210, %p211
      %p213 = scmp.ne.s32.totalorder %s205, %s207
      %p214 = scmp.eq.s32.totalorder %s29, 1
      %p215 = por %p213, %p214
      %p216 = scmp.ne.s32.totalorder %s207, %s208
      %p217 = scmp.eq.s32.totalorder %s29, 0
      %p218 = por %p216, %p217
      %p219 = scmp.ne.s32.totalorder %s207, %s208
      %p220 = scmp.eq.s32.totalorder %s30, 1
      %p221 = por %p219, %p220
      %p223 = scmp.ne.s32.totalorder %s208, %s222
      %p224 = scmp.eq.s32.totalorder %s30, 0
      %p225 = por %p223, %p224
      %s227 = sadd.s32 %s226, 1
      %p230 = scmp.eq.s32.totalorder %s24, 1
      %p231 = scmp.ne.s32.totalorder %s226, %s228
      %p232 = scmp.eq.s32.totalorder %s24, 0
      %p233 = por %p231, %p232
      %p234 = scmp.ne.s32.totalorder %s226, %s228
      %p235 = scmp.eq.s32.totalorder %s29, 1
      %p236 = por %p234, %p235
      %p237 = scmp.ne.s32.totalorder %s228, %s229
      %p238 = scmp.eq.s32.totalorder %s29, 0
      %p239 = por %p237, %p238
      %p240 = scmp.ne.s32.totalorder %s228, %s229
      %p241 = scmp.eq.s32.totalorder %s30, 1
      %p242 = por %p240, %p241
      %p244 = scmp.ne.s32.totalorder %s229, %s243
      %p245 = scmp.eq.s32.totalorder %s30, 0
      %p246 = por %p244, %p245
      %s247 = ssub.s32 %s24, %s31
      %p248 = scmp.eq.s32.totalorder %s247, 0
      %s250 = sadd.s32 %s249, 1
      %s251 = scalar_select %p248, %s249, %s250
      %p254 = pneg %p248
      %p255 = scmp.eq.s32.totalorder %s24, 1
      %p256 = por %p254, %p255
      %p257 = scmp.ne.s32.totalorder %s249, %s252
      %p258 = scmp.eq.s32.totalorder %s24, 0
      %p259 = por %p257, %p258
      %p260 = scmp.ne.s32.totalorder %s249, %s252
      %p261 = scmp.eq.s32.totalorder %s29, 1
      %p262 = por %p260, %p261
      %p263 = scmp.ne.s32.totalorder %s252, %s253
      %p264 = scmp.eq.s32.totalorder %s29, 0
      %p265 = por %p263, %p264
      %p266 = scmp.ne.s32.totalorder %s252, %s253
      %p267 = scmp.eq.s32.totalorder %s30, 1
      %p268 = por %p266, %p267
      %p270 = scmp.ne.s32.totalorder %s253, %s269
      %p271 = scmp.eq.s32.totalorder %s30, 0
      %p272 = por %p270, %p271
      %p273 = scmp.le.s32.totalorder 1, %s24
      %p274 = scmp.lt.s32.totalorder %s24, 3
      %p275 = pnand %p273, %p274
      %p276 = pneg %p275
      // Predicated region
      $region9: #{tpu_custom_call.1} parent=5 // pred_check
        _
      $region10: #{tpu_custom_call.1} parent=5 // pred_check_branch
        %278 = sbr.rel (%p275) target = $region12
      $region11: #{tpu_custom_call.1} parent=5 // pred_region
        %s279 = ssub.s32 %s24, 1
        // Predicated region
        $region13: #{tpu_custom_call.1} parent=11 // pred_check
          %p280 = pneg %p71
        $region14: #{tpu_custom_call.1} parent=11 // pred_check_branch
          %282 = sbr.rel (%p280) target = $region16
        $region15: #{tpu_custom_call.1} parent=11 // pred_region
          %284 = vsyncadd [#allocation8], 0
          %s285 = sshll.u32 %s1, 4
          %s286 = int_to_ptr.hbm [resolvable:$true] %s285
          %s287 = sshll.u32 [#allocation7], 4
          %s288 = int_to_ptr.vmem [resolvable:$true] %s287
          %293 = dma.hbm_to_vmem [thread:$0]  %s286, 9216, %s288, [#allocation8], 64, 64, 4
        $region16: #{tpu_custom_call.1} parent=11 // pred_fallthru
          _
        // Predicated region
        $region17: #{tpu_custom_call.1} parent=11 // pred_check
          %p294 = pneg %p92
        $region18: #{tpu_custom_call.1} parent=11 // pred_check_branch
          %296 = sbr.rel (%p294) target = $region20
        $region19: #{tpu_custom_call.1} parent=11 // pred_region
          _
        $region20: #{tpu_custom_call.1} parent=11 // pred_fallthru
          _
        // Predicated region
        $region21: #{tpu_custom_call.1} parent=11 // pred_check
          %p297 = pneg %p113
        $region22: #{tpu_custom_call.1} parent=11 // pred_check_branch
          %299 = sbr.rel (%p297) target = $region24
        $region23: #{tpu_custom_call.1} parent=11 // pred_region
          _
        $region24: #{tpu_custom_call.1} parent=11 // pred_fallthru
          _
        // Predicated region
        $region25: #{tpu_custom_call.1} parent=11 // pred_check
          %p300 = pneg %p134
        $region26: #{tpu_custom_call.1} parent=11 // pred_check_branch
          %302 = sbr.rel (%p300) target = $region28
        $region27: #{tpu_custom_call.1} parent=11 // pred_region
          %304 = vsyncadd [#allocation8], 0
          %s305 = sshll.u32 %s4, 4
          %s306 = int_to_ptr.hbm [resolvable:$true] %s305
          %s307 = sshll.u32 [#allocation9], 4
          %s308 = int_to_ptr.vmem [resolvable:$true] %s307
          %313 = dma.hbm_to_vmem [thread:$0]  %s306, 9216, %s308, [#allocation8], 64, 64, 4
        $region28: #{tpu_custom_call.1} parent=11 // pred_fallthru
          _
        // Predicated region
        $region29: #{tpu_custom_call.1} parent=11 // pred_check
          %p314 = pneg %p155
        $region30: #{tpu_custom_call.1} parent=11 // pred_check_branch
          %316 = sbr.rel (%p314) target = $region32
        $region31: #{tpu_custom_call.1} parent=11 // pred_region
          _
        $region32: #{tpu_custom_call.1} parent=11 // pred_fallthru
          _
        // Predicated region
        $region33: #{tpu_custom_call.1} parent=11 // pred_check
          %p317 = pneg %p176
        $region34: #{tpu_custom_call.1} parent=11 // pred_check_branch
          %319 = sbr.rel (%p317) target = $region36
        $region35: #{tpu_custom_call.1} parent=11 // pred_region
          _
        $region36: #{tpu_custom_call.1} parent=11 // pred_fallthru
          _
        // Predicated region
        $region37: #{tpu_custom_call.1} parent=11 // pred_check
          %p320 = pneg %p197
        $region38: #{tpu_custom_call.1} parent=11 // pred_check_branch
          %322 = sbr.rel (%p320) target = $region40
        $region39: #{tpu_custom_call.1} parent=11 // pred_region
          %324 = vsyncadd [#allocation11], 0
          %s325 = sshll.u32 %s7, 4
          %s326 = int_to_ptr.hbm [resolvable:$true] %s325
          %s327 = sshll.u32 [#allocation10], 4
          %s328 = int_to_ptr.vmem [resolvable:$true] %s327
          %333 = dma.hbm_to_vmem [thread:$0]  %s326, 1024, %s328, [#allocation11], 64, 64, 4
        $region40: #{tpu_custom_call.1} parent=11 // pred_fallthru
          _
        // Predicated region
        $region41: #{tpu_custom_call.1} parent=11 // pred_check
          %p334 = pneg %p218
        $region42: #{tpu_custom_call.1} parent=11 // pred_check_branch
          %336 = sbr.rel (%p334) target = $region44
        $region43: #{tpu_custom_call.1} parent=11 // pred_region
          _
        $region44: #{tpu_custom_call.1} parent=11 // pred_fallthru
          _
        // Predicated region
        $region45: #{tpu_custom_call.1} parent=11 // pred_check
          %p337 = pneg %p239
        $region46: #{tpu_custom_call.1} parent=11 // pred_check_branch
          %339 = sbr.rel (%p337) target = $region48
        $region47: #{tpu_custom_call.1} parent=11 // pred_region
          _
        $region48: #{tpu_custom_call.1} parent=11 // pred_fallthru
          _
      $region12: #{tpu_custom_call.1} parent=5 // pred_fallthru
        _
      %p340 = scmp.lt.s32.totalorder %s24, 2
      // Predicated region
      $region49: #{tpu_custom_call.1} parent=5 // pred_check
        %p341 = pneg %p340
      $region50: #{tpu_custom_call.1} parent=5 // pred_check_branch
        %343 = sbr.rel (%p341) target = $region52
      $region51: #{tpu_custom_call.1} parent=5 // pred_region
        // Predicated region
        $region53: #{tpu_custom_call.1} parent=51 // pred_check
          %p344 = pneg %p44
        $region54: #{tpu_custom_call.1} parent=51 // pred_check_branch
          %346 = sbr.rel (%p344) target = $region56
        $region55: #{tpu_custom_call.1} parent=51 // pred_region
          %s347 = sand.u32 %s34, 1
          %s348 = scalar_lea.sflag [#allocation5], %s347
          %s349 = sand.u32 %s34, 1
          %s350 = smul.addr %s349, 128
          %s351 = scalar_lea.vmem [#allocation4], %s350
          %353 = vsyncadd %s348, 0
          %s354 = smul.addr %s24, 32
          %s355 = smul.addr %s354, 4
          %s356 = scalar_lea.hbm %s0, %s355
          %s357 = sshll.u32 %s356, 4
          %s358 = int_to_ptr.hbm [resolvable:$true] %s357
          %s359 = sshll.u32 %s351, 4
          %s360 = int_to_ptr.vmem [resolvable:$true] %s359
          %365 = dma.hbm_to_vmem [thread:$0]  %s358, 2048, %s360, %s348, 64, 64, 4
        $region56: #{tpu_custom_call.1} parent=51 // pred_fallthru
          _
      $region52: #{tpu_custom_call.1} parent=5 // pred_fallthru
        _
      %p366 = scmp.le.s32.totalorder 1, %s24
      %p367 = scmp.lt.s32.totalorder %s24, 3
      %p368 = pnand %p366, %p367
      %p369 = pneg %p368
      // Predicated region
      $region57: #{tpu_custom_call.1} parent=5 // pred_check
        _
      $region58: #{tpu_custom_call.1} parent=5 // pred_check_branch
        %371 = sbr.rel (%p368) target = $region60
      $region59: #{tpu_custom_call.1} parent=5 // pred_region
        %s372 = ssub.s32 %s24, 1
        %s373 = sand.u32 %s37, 1
        %s374 = scalar_lea.sflag [#allocation5], %s373
        %s375 = sand.u32 %s37, 1
        %s376 = smul.addr %s375, 128
        %s377 = scalar_lea.vmem [#allocation4], %s376
        // Predicated region
        $region61: #{tpu_custom_call.1} parent=59 // pred_check
          %p378 = pneg %p50
        $region62: #{tpu_custom_call.1} parent=59 // pred_check_branch
          %380 = sbr.rel (%p378) target = $region64
        $region63: #{tpu_custom_call.1} parent=59 // pred_region
          %382 = dma.done %s374, 2048
        $region64: #{tpu_custom_call.1} parent=59 // pred_fallthru
          _
        // Predicated region
        $region65: #{tpu_custom_call.1} parent=59 // pred_check
          %p383 = pneg %p71
        $region66: #{tpu_custom_call.1} parent=59 // pred_check_branch
          %385 = sbr.rel (%p383) target = $region68
        $region67: #{tpu_custom_call.1} parent=59 // pred_region
          %387 = dma.done [#allocation8], 9216
        $region68: #{tpu_custom_call.1} parent=59 // pred_fallthru
          _
        // Predicated region
        $region69: #{tpu_custom_call.1} parent=59 // pred_check
          %p388 = pneg %p134
        $region70: #{tpu_custom_call.1} parent=59 // pred_check_branch
          %390 = sbr.rel (%p388) target = $region72
        $region71: #{tpu_custom_call.1} parent=59 // pred_region
          %392 = dma.done [#allocation8], 9216
        $region72: #{tpu_custom_call.1} parent=59 // pred_fallthru
          _
        // Predicated region
        $region73: #{tpu_custom_call.1} parent=59 // pred_check
          %p393 = pneg %p197
        $region74: #{tpu_custom_call.1} parent=59 // pred_check_branch
          %395 = sbr.rel (%p393) target = $region76
        $region75: #{tpu_custom_call.1} parent=59 // pred_region
          %397 = dma.done [#allocation11], 1024
        $region76: #{tpu_custom_call.1} parent=59 // pred_fallthru
          _
        %s398 = sand.u32 %s37, 1
        %s399 = scalar_lea.sflag [#allocation5], %s398
        %s400 = sand.u32 %s37, 1
        %s401 = smul.addr %s400, 128
        %s402 = scalar_lea.vmem [#allocation4], %s401
        %p403 = pneg %p50
        %p404 = pneg %p47
        %p405 = pneg %p71
        %p406 = pneg %p68
        %p407 = pneg %p92
        %p408 = pneg %p89
        %p409 = pneg %p113
        %p410 = pneg %p110
        %p411 = pneg %p134
        %p412 = pneg %p131
        %p413 = pneg %p155
        %p414 = pneg %p152
        %p415 = pneg %p176
        %p416 = pneg %p173
        %p417 = pneg %p197
        %p418 = pneg %p194
        %p419 = pneg %p218
        %p420 = pneg %p215
        %p421 = pneg %p239
        %p422 = pneg %p236
        %p423 = pneg %p265
        %p424 = pneg %p262
        %s425 = sand.u32 %s252, 1
        %s426 = scalar_lea.sflag [#allocation6], %s425
        %s427 = sand.u32 %s252, 1
        %s428 = smul.addr %s427, 256
        %s429 = scalar_lea.vmem [#allocation12], %s428
        %430 = vst [vmem:[#allocation2] sm:$0xff] 0.0
        %431 = vst [vmem:[#allocation2 + $0x8] sm:$0xff] 0.0
        %432 = vst [vmem:[#allocation2 + $0x10] sm:$0x3] 0.0
        %433 = vst [vmem:[#allocation2 + $0x18] sm:$0xff] 0.0
        %434 = vst [vmem:[#allocation2 + $0x20] sm:$0xff] 0.0
        %435 = vst [vmem:[#allocation2 + $0x28] sm:$0x3] 0.0
        %436 = vst [vmem:[#allocation2 + $0x30] sm:$0xff] 0.0
        %437 = vst [vmem:[#allocation2 + $0x38] sm:$0xff] 0.0
        %438 = vst [vmem:[#allocation2 + $0x40] sm:$0x3] 0.0
        %439 = vst [vmem:[#allocation2 + $0x48] sm:$0xff] 0.0
        %440 = vst [vmem:[#allocation2 + $0x50] sm:$0xff] 0.0
        %441 = vst [vmem:[#allocation2 + $0x58] sm:$0x3] 0.0
        %442 = vst [vmem:[#allocation2 + $0x60] sm:$0xff] 0.0
        %443 = vst [vmem:[#allocation2 + $0x68] sm:$0xff] 0.0
        %444 = vst [vmem:[#allocation2 + $0x70] sm:$0x3] 0.0
        %445 = vst [vmem:[#allocation2 + $0x78] sm:$0xff] 0.0
        %446 = vst [vmem:[#allocation2 + $0x80] sm:$0xff] 0.0
        %447 = vst [vmem:[#allocation2 + $0x88] sm:$0x3] 0.0
        %448 = vst [vmem:[#allocation2 + $0x90] sm:$0xff] 0.0
        %449 = vst [vmem:[#allocation2 + $0x98] sm:$0xff] 0.0
        %450 = vst [vmem:[#allocation2 + $0xa0] sm:$0x3] 0.0
        %451 = vst [vmem:[#allocation2 + $0xa8] sm:$0xff] 0.0
        %452 = vst [vmem:[#allocation2 + $0xb0] sm:$0xff] 0.0
        %453 = vst [vmem:[#allocation2 + $0xb8] sm:$0x3] 0.0
        %454 = vst [vmem:[#allocation2 + $0xc0] sm:$0xff] 0.0
        %455 = vst [vmem:[#allocation2 + $0xc8] sm:$0xff] 0.0
        %456 = vst [vmem:[#allocation2 + $0xd0] sm:$0x3] 0.0
        %457 = vst [vmem:[#allocation2 + $0xd8] sm:$0xff] 0.0
        %458 = vst [vmem:[#allocation2 + $0xe0] sm:$0xff] 0.0
        %459 = vst [vmem:[#allocation2 + $0xe8] sm:$0x3] 0.0
        %460 = vst [vmem:[#allocation2 + $0xf0] sm:$0xff] 0.0
        %461 = vst [vmem:[#allocation2 + $0xf8] sm:$0xff] 0.0
        %462 = vst [vmem:[#allocation2 + $0x100] sm:$0x3] 0.0
        %463 = vst [vmem:[#allocation2 + $0x108] sm:$0xff] 0.0
        %464 = vst [vmem:[#allocation2 + $0x110] sm:$0xff] 0.0
        %465 = vst [vmem:[#allocation2 + $0x118] sm:$0x3] 0.0
        %466 = vst [vmem:[#allocation2 + $0x120] sm:$0xff] 0.0
        %467 = vst [vmem:[#allocation2 + $0x128] sm:$0xff] 0.0
        %468 = vst [vmem:[#allocation2 + $0x130] sm:$0x3] 0.0
        %469 = vst [vmem:[#allocation2 + $0x138] sm:$0xff] 0.0
        %470 = vst [vmem:[#allocation2 + $0x140] sm:$0xff] 0.0
        %471 = vst [vmem:[#allocation2 + $0x148] sm:$0x3] 0.0
        %472 = vst [vmem:[#allocation2 + $0x150] sm:$0xff] 0.0
        %473 = vst [vmem:[#allocation2 + $0x158] sm:$0xff] 0.0
        %474 = vst [vmem:[#allocation2 + $0x160] sm:$0x3] 0.0
        %475 = vst [vmem:[#allocation2 + $0x168] sm:$0xff] 0.0
        %476 = vst [vmem:[#allocation2 + $0x170] sm:$0xff] 0.0
        %477 = vst [vmem:[#allocation2 + $0x178] sm:$0x3] 0.0
        %478 = vst [vmem:[#allocation2 + $0x180] sm:$0xff] 0.0
        %479 = vst [vmem:[#allocation2 + $0x188] sm:$0xff] 0.0
        %480 = vst [vmem:[#allocation2 + $0x190] sm:$0x3] 0.0
        %481 = vst [vmem:[#allocation2 + $0x198] sm:$0xff] 0.0
        %482 = vst [vmem:[#allocation2 + $0x1a0] sm:$0xff] 0.0
        %483 = vst [vmem:[#allocation2 + $0x1a8] sm:$0x3] 0.0
        %v484 = vld [vmem:[%s377] sm:$0xf]
        %v485 = vld [vmem:[%s377 + $0x4] sm:$0xf]
        %v486 = vld [vmem:[%s377 + $0x8] sm:$0xf]
        %v487 = vld [vmem:[%s377 + $0xc] sm:$0xf]
        %v488 = vld [vmem:[%s377 + $0x10] sm:$0xf]
        %v489 = vld [vmem:[%s377 + $0x14] sm:$0xf]
        %v490 = vld [vmem:[%s377 + $0x18] sm:$0xf]
        %v491 = vld [vmem:[%s377 + $0x1c] sm:$0xf]
        %v492 = vld [vmem:[%s377 + $0x20] sm:$0xf]
        %v493 = vld [vmem:[%s377 + $0x24] sm:$0xf]
        %v494 = vld [vmem:[%s377 + $0x28] sm:$0xf]
        %v495 = vld [vmem:[%s377 + $0x2c] sm:$0xf]
        %v496 = vld [vmem:[%s377 + $0x30] sm:$0xf]
        %v497 = vld [vmem:[%s377 + $0x34] sm:$0xf]
        %v498 = vld [vmem:[%s377 + $0x38] sm:$0xf]
        %v499 = vld [vmem:[%s377 + $0x3c] sm:$0xf]
        %v500 = vld [vmem:[%s377 + $0x40] sm:$0xf]
        %v501 = vld [vmem:[%s377 + $0x44] sm:$0xf]
        %v502 = vld [vmem:[%s377 + $0x48] sm:$0xf]
        %v503 = vld [vmem:[%s377 + $0x4c] sm:$0xf]
        %v504 = vld [vmem:[%s377 + $0x50] sm:$0xf]
        %v505 = vld [vmem:[%s377 + $0x54] sm:$0xf]
        %v506 = vld [vmem:[%s377 + $0x58] sm:$0xf]
        %v507 = vld [vmem:[%s377 + $0x5c] sm:$0xf]
        %v508 = vld [vmem:[%s377 + $0x60] sm:$0xf]
        %v509 = vld [vmem:[%s377 + $0x64] sm:$0xf]
        %v510 = vld [vmem:[%s377 + $0x68] sm:$0xf]
        %v511 = vld [vmem:[%s377 + $0x6c] sm:$0xf]
        %v512 = vld [vmem:[%s377 + $0x70] sm:$0xf]
        %v513 = vld [vmem:[%s377 + $0x74] sm:$0xf]
        %v514 = vld [vmem:[%s377 + $0x78] sm:$0xf]
        %v515 = vld [vmem:[%s377 + $0x7c] sm:$0xf]
        %v516 = vunpack.c.l.bf16 %v484
        %v517 = vunpack.c.l.bf16 %v485
        %v518 = vunpack.c.l.bf16 %v486
        %v519 = vunpack.c.l.bf16 %v487
        %v520 = vunpack.c.l.bf16 %v488
        %v521 = vunpack.c.l.bf16 %v489
        %v522 = vunpack.c.l.bf16 %v490
        %v523 = vunpack.c.l.bf16 %v491
        %v524 = vunpack.c.l.bf16 %v492
        %v525 = vunpack.c.l.bf16 %v493
        %v526 = vunpack.c.l.bf16 %v494
        %v527 = vunpack.c.l.bf16 %v495
        %v528 = vunpack.c.l.bf16 %v496
        %v529 = vunpack.c.l.bf16 %v497
        %v530 = vunpack.c.l.bf16 %v498
        %v531 = vunpack.c.l.bf16 %v499
        %v532 = vunpack.c.l.bf16 %v500
        %v533 = vunpack.c.l.bf16 %v501
        %v534 = vunpack.c.l.bf16 %v502
        %v535 = vunpack.c.l.bf16 %v503
        %v536 = vunpack.c.l.bf16 %v504
        %v537 = vunpack.c.l.bf16 %v505
        %v538 = vunpack.c.l.bf16 %v506
        %v539 = vunpack.c.l.bf16 %v507
        %v540 = vunpack.c.l.bf16 %v508
        %v541 = vunpack.c.l.bf16 %v509
        %v542 = vunpack.c.l.bf16 %v510
        %v543 = vunpack.c.l.bf16 %v511
        %v544 = vunpack.c.l.bf16 %v512
        %v545 = vunpack.c.l.bf16 %v513
        %v546 = vunpack.c.l.bf16 %v514
        %v547 = vunpack.c.l.bf16 %v515
        %s548 = scalar_lea.vmem [#allocation2], 24
        %549 = vst [vmem:[%s548 + $0x1] sm:$0xff] %v516
        %550 = vst [vmem:[%s548 + $0x9] sm:$0xff] %v517
        %551 = vst [vmem:[%s548 + $0x19] sm:$0xff] %v518
        %552 = vst [vmem:[%s548 + $0x21] sm:$0xff] %v519
        %553 = vst [vmem:[%s548 + $0x31] sm:$0xff] %v520
        %554 = vst [vmem:[%s548 + $0x39] sm:$0xff] %v521
        %555 = vst [vmem:[%s548 + $0x49] sm:$0xff] %v522
        %556 = vst [vmem:[%s548 + $0x51] sm:$0xff] %v523
        %557 = vst [vmem:[%s548 + $0x61] sm:$0xff] %v524
        %558 = vst [vmem:[%s548 + $0x69] sm:$0xff] %v525
        %559 = vst [vmem:[%s548 + $0x79] sm:$0xff] %v526
        %560 = vst [vmem:[%s548 + $0x81] sm:$0xff] %v527
        %561 = vst [vmem:[%s548 + $0x91] sm:$0xff] %v528
        %562 = vst [vmem:[%s548 + $0x99] sm:$0xff] %v529
        %563 = vst [vmem:[%s548 + $0xa9] sm:$0xff] %v530
        %564 = vst [vmem:[%s548 + $0xb1] sm:$0xff] %v531
        %565 = vst [vmem:[%s548 + $0xc1] sm:$0xff] %v532
        %566 = vst [vmem:[%s548 + $0xc9] sm:$0xff] %v533
        %567 = vst [vmem:[%s548 + $0xd9] sm:$0xff] %v534
        %568 = vst [vmem:[%s548 + $0xe1] sm:$0xff] %v535
        %569 = vst [vmem:[%s548 + $0xf1] sm:$0xff] %v536
        %570 = vst [vmem:[%s548 + $0xf9] sm:$0xff] %v537
        %571 = vst [vmem:[%s548 + $0x109] sm:$0xff] %v538
        %572 = vst [vmem:[%s548 + $0x111] sm:$0xff] %v539
        %573 = vst [vmem:[%s548 + $0x121] sm:$0xff] %v540
        %574 = vst [vmem:[%s548 + $0x129] sm:$0xff] %v541
        %575 = vst [vmem:[%s548 + $0x139] sm:$0xff] %v542
        %576 = vst [vmem:[%s548 + $0x141] sm:$0xff] %v543
        %577 = vst [vmem:[%s548 + $0x151] sm:$0xff] %v544
        %578 = vst [vmem:[%s548 + $0x159] sm:$0xff] %v545
        %579 = vst [vmem:[%s548 + $0x169] sm:$0xff] %v546
        %580 = vst [vmem:[%s548 + $0x171] sm:$0xff] %v547
        %v581 = vld [vmem:[#allocation2] sm:$0xff]
        %v582 = vld [vmem:[#allocation2 + $0x8] sm:$0xff]
        %v583 = vld [vmem:[#allocation2 + $0x10] sm:$0x3]
        %v584 = vld [vmem:[#allocation2 + $0x18] sm:$0xff]
        %v585 = vld [vmem:[#allocation2 + $0x20] sm:$0xff]
        %v586 = vld [vmem:[#allocation2 + $0x28] sm:$0x3]
        %v587 = vld [vmem:[#allocation2 + $0x30] sm:$0xff]
        %v588 = vld [vmem:[#allocation2 + $0x38] sm:$0xff]
        %v589 = vld [vmem:[#allocation2 + $0x40] sm:$0x3]
        %v590 = vld [vmem:[#allocation2 + $0x48] sm:$0xff]
        %v591 = vld [vmem:[#allocation2 + $0x50] sm:$0xff]
        %v592 = vld [vmem:[#allocation2 + $0x58] sm:$0x3]
        %v593 = vld [vmem:[#allocation2 + $0x60] sm:$0xff]
        %v594 = vld [vmem:[#allocation2 + $0x68] sm:$0xff]
        %v595 = vld [vmem:[#allocation2 + $0x70] sm:$0x3]
        %v596 = vld [vmem:[#allocation2 + $0x78] sm:$0xff]
        %v597 = vld [vmem:[#allocation2 + $0x80] sm:$0xff]
        %v598 = vld [vmem:[#allocation2 + $0x88] sm:$0x3]
        %v599 = vld [vmem:[#allocation2 + $0x90] sm:$0xff]
        %v600 = vld [vmem:[#allocation2 + $0x98] sm:$0xff]
        %v601 = vld [vmem:[#allocation2 + $0xa0] sm:$0x3]
        %v602 = vld [vmem:[#allocation2 + $0xa8] sm:$0xff]
        %v603 = vld [vmem:[#allocation2 + $0xb0] sm:$0xff]
        %v604 = vld [vmem:[#allocation2 + $0xb8] sm:$0x3]
        %v605 = vld [vmem:[#allocation2 + $0xc0] sm:$0xff]
        %v606 = vld [vmem:[#allocation2 + $0xc8] sm:$0xff]
        %v607 = vld [vmem:[#allocation2 + $0xd0] sm:$0x3]
        %v608 = vld [vmem:[#allocation2 + $0xd8] sm:$0xff]
        %v609 = vld [vmem:[#allocation2 + $0xe0] sm:$0xff]
        %v610 = vld [vmem:[#allocation2 + $0xe8] sm:$0x3]
        %v611 = vld [vmem:[#allocation2 + $0xf0] sm:$0xff]
        %v612 = vld [vmem:[#allocation2 + $0xf8] sm:$0xff]
        %v613 = vld [vmem:[#allocation2 + $0x100] sm:$0x3]
        %v614 = vld [vmem:[#allocation2 + $0x108] sm:$0xff]
        %v615 = vld [vmem:[#allocation2 + $0x110] sm:$0xff]
        %v616 = vld [vmem:[#allocation2 + $0x118] sm:$0x3]
        %v617 = vld [vmem:[#allocation2 + $0x120] sm:$0xff]
        %v618 = vld [vmem:[#allocation2 + $0x128] sm:$0xff]
        %v619 = vld [vmem:[#allocation2 + $0x130] sm:$0x3]
        %v620 = vld [vmem:[#allocation2 + $0x138] sm:$0xff]
        %v621 = vld [vmem:[#allocation2 + $0x140] sm:$0xff]
        %v622 = vld [vmem:[#allocation2 + $0x148] sm:$0x3]
        %v623 = vld [vmem:[#allocation2 + $0x150] sm:$0xff]
        %v624 = vld [vmem:[#allocation2 + $0x158] sm:$0xff]
        %v625 = vld [vmem:[#allocation2 + $0x160] sm:$0x3]
        %v626 = vld [vmem:[#allocation2 + $0x168] sm:$0xff]
        %v627 = vld [vmem:[#allocation2 + $0x170] sm:$0xff]
        %v628 = vld [vmem:[#allocation2 + $0x178] sm:$0x3]
        %v629 = vld [vmem:[#allocation2 + $0x180] sm:$0xff]
        %v630 = vld [vmem:[#allocation2 + $0x188] sm:$0xff]
        %v631 = vld [vmem:[#allocation2 + $0x190] sm:$0x3]
        %v632 = vld [vmem:[#allocation2 + $0x198] sm:$0xff]
        %v633 = vld [vmem:[#allocation2 + $0x1a0] sm:$0xff]
        %v634 = vld [vmem:[#allocation2 + $0x1a8] sm:$0x3]
        %v635 = vpack.c.bf16 %v581, %v581
        %v636 = vpack.c.bf16 %v582, %v582
        %v637 = vpack.c.bf16 %v583, %v583
        %v638 = vpack.c.bf16 %v584, %v584
        %v639 = vpack.c.bf16 %v585, %v585
        %v640 = vpack.c.bf16 %v586, %v586
        %v641 = vpack.c.bf16 %v587, %v587
        %v642 = vpack.c.bf16 %v588, %v588
        %v643 = vpack.c.bf16 %v589, %v589
        %v644 = vpack.c.bf16 %v590, %v590
        %v645 = vpack.c.bf16 %v591, %v591
        %v646 = vpack.c.bf16 %v592, %v592
        %v647 = vpack.c.bf16 %v593, %v593
        %v648 = vpack.c.bf16 %v594, %v594
        %v649 = vpack.c.bf16 %v595, %v595
        %v650 = vpack.c.bf16 %v596, %v596
        %v651 = vpack.c.bf16 %v597, %v597
        %v652 = vpack.c.bf16 %v598, %v598
        %v653 = vpack.c.bf16 %v599, %v599
        %v654 = vpack.c.bf16 %v600, %v600
        %v655 = vpack.c.bf16 %v601, %v601
        %v656 = vpack.c.bf16 %v602, %v602
        %v657 = vpack.c.bf16 %v603, %v603
        %v658 = vpack.c.bf16 %v604, %v604
        %v659 = vpack.c.bf16 %v605, %v605
        %v660 = vpack.c.bf16 %v606, %v606
        %v661 = vpack.c.bf16 %v607, %v607
        %v662 = vpack.c.bf16 %v608, %v608
        %v663 = vpack.c.bf16 %v609, %v609
        %v664 = vpack.c.bf16 %v610, %v610
        %v665 = vpack.c.bf16 %v611, %v611
        %v666 = vpack.c.bf16 %v612, %v612
        %v667 = vpack.c.bf16 %v613, %v613
        %v668 = vpack.c.bf16 %v614, %v614
        %v669 = vpack.c.bf16 %v615, %v615
        %v670 = vpack.c.bf16 %v616, %v616
        %v671 = vpack.c.bf16 %v617, %v617
        %v672 = vpack.c.bf16 %v618, %v618
        %v673 = vpack.c.bf16 %v619, %v619
        %v674 = vpack.c.bf16 %v620, %v620
        %v675 = vpack.c.bf16 %v621, %v621
        %v676 = vpack.c.bf16 %v622, %v622
        %v677 = vpack.c.bf16 %v623, %v623
        %v678 = vpack.c.bf16 %v624, %v624
        %v679 = vpack.c.bf16 %v625, %v625
        %v680 = vpack.c.bf16 %v626, %v626
        %v681 = vpack.c.bf16 %v627, %v627
        %v682 = vpack.c.bf16 %v628, %v628
        %v683 = vpack.c.bf16 %v629, %v629
        %v684 = vpack.c.bf16 %v630, %v630
        %v685 = vpack.c.bf16 %v631, %v631
        %v686 = vpack.c.bf16 %v632, %v632
        %v687 = vpack.c.bf16 %v633, %v633
        %v688 = vpack.c.bf16 %v634, %v634
        %v721 = vunpack.c.l.b16 %v635
        %v722 = vunpack.c.l.b16 %v636
        %v723 = vunpack.c.l.b16 %v638
        %v724 = vunpack.c.l.b16 %v639
        %v725 = vunpack.c.l.b16 %v641
        %v726 = vunpack.c.l.b16 %v642
        %v727 = vunpack.c.l.b16 %v644
        %v728 = vunpack.c.l.b16 %v645
        %v729 = vunpack.c.l.b16 %v647
        %v730 = vunpack.c.l.b16 %v648
        %v731 = vunpack.c.l.b16 %v650
        %v732 = vunpack.c.l.b16 %v651
        %v733 = vunpack.c.l.b16 %v653
        %v734 = vunpack.c.l.b16 %v654
        %v735 = vunpack.c.l.b16 %v656
        %v736 = vunpack.c.l.b16 %v657
        %v737 = vunpack.c.l.b16 %v659
        %v738 = vunpack.c.l.b16 %v660
        %v739 = vunpack.c.l.b16 %v662
        %v740 = vunpack.c.l.b16 %v663
        %v741 = vunpack.c.l.b16 %v665
        %v742 = vunpack.c.l.b16 %v666
        %v743 = vunpack.c.l.b16 %v668
        %v744 = vunpack.c.l.b16 %v669
        %v745 = vunpack.c.l.b16 %v671
        %v746 = vunpack.c.l.b16 %v672
        %v747 = vunpack.c.l.b16 %v674
        %v748 = vunpack.c.l.b16 %v675
        %v749 = vunpack.c.l.b16 %v677
        %v750 = vunpack.c.l.b16 %v678
        %v751 = vunpack.c.l.b16 %v680
        %v752 = vunpack.c.l.b16 %v681
        %v753 = vpack.c.b16 %v722, %v721
        %v754 = vpack.c.b16 %v724, %v723
        %v755 = vpack.c.b16 %v726, %v725
        %v756 = vpack.c.b16 %v728, %v727
        %v757 = vpack.c.b16 %v730, %v729
        %v758 = vpack.c.b16 %v732, %v731
        %v759 = vpack.c.b16 %v734, %v733
        %v760 = vpack.c.b16 %v736, %v735
        %v761 = vpack.c.b16 %v738, %v737
        %v762 = vpack.c.b16 %v740, %v739
        %v763 = vpack.c.b16 %v742, %v741
        %v764 = vpack.c.b16 %v744, %v743
        %v765 = vpack.c.b16 %v746, %v745
        %v766 = vpack.c.b16 %v748, %v747
        %v767 = vpack.c.b16 %v750, %v749
        %v768 = vpack.c.b16 %v752, %v751
        %v801 = vunpack.c.l.b16 %v637
        %v802 = vunpack.c.l.b16 %v640
        %v803 = vunpack.c.l.b16 %v643
        %v804 = vunpack.c.l.b16 %v646
        %v805 = vunpack.c.l.b16 %v649
        %v806 = vunpack.c.l.b16 %v652
        %v807 = vunpack.c.l.b16 %v655
        %v808 = vunpack.c.l.b16 %v658
        %v809 = vunpack.c.l.b16 %v661
        %v810 = vunpack.c.l.b16 %v664
        %v811 = vunpack.c.l.b16 %v667
        %v812 = vunpack.c.l.b16 %v670
        %v813 = vunpack.c.l.b16 %v673
        %v814 = vunpack.c.l.b16 %v676
        %v815 = vunpack.c.l.b16 %v679
        %v816 = vunpack.c.l.b16 %v682
        %v817 = vpack.c.b16 %v801, %v801
        %v818 = vpack.c.b16 %v802, %v802
        %v819 = vpack.c.b16 %v803, %v803
        %v820 = vpack.c.b16 %v804, %v804
        %v821 = vpack.c.b16 %v805, %v805
        %v822 = vpack.c.b16 %v806, %v806
        %v823 = vpack.c.b16 %v807, %v807
        %v824 = vpack.c.b16 %v808, %v808
        %v825 = vpack.c.b16 %v809, %v809
        %v826 = vpack.c.b16 %v810, %v810
        %v827 = vpack.c.b16 %v811, %v811
        %v828 = vpack.c.b16 %v812, %v812
        %v829 = vpack.c.b16 %v813, %v813
        %v830 = vpack.c.b16 %v814, %v814
        %v831 = vpack.c.b16 %v815, %v815
        %v832 = vpack.c.b16 %v816, %v816
        %vm833 = vsmask.f32 7424
        %v835 = vshrl.u32 %v753, 16
        %v837 = vshll.u32 %v753, 16
        %v839 = vrot.slane %v837, 1
        %v840 = vor.u32 %v835, %v839
        %v842 = vshll.u32 %v817, 16
        %v844 = vrot.slane %v842, 1
        %v845 = vsel %vm833, %v840, %v844
        %v847 = vshrl.u32 %v754, 16
        %v849 = vshll.u32 %v754, 16
        %v851 = vrot.slane %v849, 1
        %v852 = vor.u32 %v847, %v851
        %v854 = vshll.u32 %v818, 16
        %v856 = vrot.slane %v854, 1
        %v857 = vsel %vm833, %v852, %v856
        %v859 = vshrl.u32 %v755, 16
        %v861 = vshll.u32 %v755, 16
        %v863 = vrot.slane %v861, 1
        %v864 = vor.u32 %v859, %v863
        %v866 = vshll.u32 %v819, 16
        %v868 = vrot.slane %v866, 1
        %v869 = vsel %vm833, %v864, %v868
        %v871 = vshrl.u32 %v756, 16
        %v873 = vshll.u32 %v756, 16
        %v875 = vrot.slane %v873, 1
        %v876 = vor.u32 %v871, %v875
        %v878 = vshll.u32 %v820, 16
        %v880 = vrot.slane %v878, 1
        %v881 = vsel %vm833, %v876, %v880
        %v883 = vshrl.u32 %v757, 16
        %v885 = vshll.u32 %v757, 16
        %v887 = vrot.slane %v885, 1
        %v888 = vor.u32 %v883, %v887
        %v890 = vshll.u32 %v821, 16
        %v892 = vrot.slane %v890, 1
        %v893 = vsel %vm833, %v888, %v892
        %v895 = vshrl.u32 %v758, 16
        %v897 = vshll.u32 %v758, 16
        %v899 = vrot.slane %v897, 1
        %v900 = vor.u32 %v895, %v899
        %v902 = vshll.u32 %v822, 16
        %v904 = vrot.slane %v902, 1
        %v905 = vsel %vm833, %v900, %v904
        %v907 = vshrl.u32 %v759, 16
        %v909 = vshll.u32 %v759, 16
        %v911 = vrot.slane %v909, 1
        %v912 = vor.u32 %v907, %v911
        %v914 = vshll.u32 %v823, 16
        %v916 = vrot.slane %v914, 1
        %v917 = vsel %vm833, %v912, %v916
        %v919 = vshrl.u32 %v760, 16
        %v921 = vshll.u32 %v760, 16
        %v923 = vrot.slane %v921, 1
        %v924 = vor.u32 %v919, %v923
        %v926 = vshll.u32 %v824, 16
        %v928 = vrot.slane %v926, 1
        %v929 = vsel %vm833, %v924, %v928
        %v931 = vshrl.u32 %v761, 16
        %v933 = vshll.u32 %v761, 16
        %v935 = vrot.slane %v933, 1
        %v936 = vor.u32 %v931, %v935
        %v938 = vshll.u32 %v825, 16
        %v940 = vrot.slane %v938, 1
        %v941 = vsel %vm833, %v936, %v940
        %v943 = vshrl.u32 %v762, 16
        %v945 = vshll.u32 %v762, 16
        %v947 = vrot.slane %v945, 1
        %v948 = vor.u32 %v943, %v947
        %v950 = vshll.u32 %v826, 16
        %v952 = vrot.slane %v950, 1
        %v953 = vsel %vm833, %v948, %v952
        %v955 = vshrl.u32 %v763, 16
        %v957 = vshll.u32 %v763, 16
        %v959 = vrot.slane %v957, 1
        %v960 = vor.u32 %v955, %v959
        %v962 = vshll.u32 %v827, 16
        %v964 = vrot.slane %v962, 1
        %v965 = vsel %vm833, %v960, %v964
        %v967 = vshrl.u32 %v764, 16
        %v969 = vshll.u32 %v764, 16
        %v971 = vrot.slane %v969, 1
        %v972 = vor.u32 %v967, %v971
        %v974 = vshll.u32 %v828, 16
        %v976 = vrot.slane %v974, 1
        %v977 = vsel %vm833, %v972, %v976
        %v979 = vshrl.u32 %v765, 16
        %v981 = vshll.u32 %v765, 16
        %v983 = vrot.slane %v981, 1
        %v984 = vor.u32 %v979, %v983
        %v986 = vshll.u32 %v829, 16
        %v988 = vrot.slane %v986, 1
        %v989 = vsel %vm833, %v984, %v988
        %v991 = vshrl.u32 %v766, 16
        %v993 = vshll.u32 %v766, 16
        %v995 = vrot.slane %v993, 1
        %v996 = vor.u32 %v991, %v995
        %v998 = vshll.u32 %v830, 16
        %v1000 = vrot.slane %v998, 1
        %v1001 = vsel %vm833, %v996, %v1000
        %v1003 = vshrl.u32 %v767, 16
        %v1005 = vshll.u32 %v767, 16
        %v1007 = vrot.slane %v1005, 1
        %v1008 = vor.u32 %v1003, %v1007
        %v1010 = vshll.u32 %v831, 16
        %v1012 = vrot.slane %v1010, 1
        %v1013 = vsel %vm833, %v1008, %v1012
        %v1015 = vshrl.u32 %v768, 16
        %v1017 = vshll.u32 %v768, 16
        %v1019 = vrot.slane %v1017, 1
        %v1020 = vor.u32 %v1015, %v1019
        %v1022 = vshll.u32 %v832, 16
        %v1024 = vrot.slane %v1022, 1
        %v1025 = vsel %vm833, %v1020, %v1024
        %vm1042 = vcmask 1046528
        %v1043 = vrot.slane %v753, 1
        %v1044 = vrot.slane %v817, 1
        %v1045 = vsel %vm1042, %v1043, %v1044
        %v1046 = vrot.slane %v754, 1
        %v1047 = vrot.slane %v818, 1
        %v1048 = vsel %vm1042, %v1046, %v1047
        %v1049 = vrot.slane %v755, 1
        %v1050 = vrot.slane %v819, 1
        %v1051 = vsel %vm1042, %v1049, %v1050
        %v1052 = vrot.slane %v756, 1
        %v1053 = vrot.slane %v820, 1
        %v1054 = vsel %vm1042, %v1052, %v1053
        %v1055 = vrot.slane %v757, 1
        %v1056 = vrot.slane %v821, 1
        %v1057 = vsel %vm1042, %v1055, %v1056
        %v1058 = vrot.slane %v758, 1
        %v1059 = vrot.slane %v822, 1
        %v1060 = vsel %vm1042, %v1058, %v1059
        %v1061 = vrot.slane %v759, 1
        %v1062 = vrot.slane %v823, 1
        %v1063 = vsel %vm1042, %v1061, %v1062
        %v1064 = vrot.slane %v760, 1
        %v1065 = vrot.slane %v824, 1
        %v1066 = vsel %vm1042, %v1064, %v1065
        %v1067 = vrot.slane %v761, 1
        %v1068 = vrot.slane %v825, 1
        %v1069 = vsel %vm1042, %v1067, %v1068
        %v1070 = vrot.slane %v762, 1
        %v1071 = vrot.slane %v826, 1
        %v1072 = vsel %vm1042, %v1070, %v1071
        %v1073 = vrot.slane %v763, 1
        %v1074 = vrot.slane %v827, 1
        %v1075 = vsel %vm1042, %v1073, %v1074
        %v1076 = vrot.slane %v764, 1
        %v1077 = vrot.slane %v828, 1
        %v1078 = vsel %vm1042, %v1076, %v1077
        %v1079 = vrot.slane %v765, 1
        %v1080 = vrot.slane %v829, 1
        %v1081 = vsel %vm1042, %v1079, %v1080
        %v1082 = vrot.slane %v766, 1
        %v1083 = vrot.slane %v830, 1
        %v1084 = vsel %vm1042, %v1082, %v1083
        %v1085 = vrot.slane %v767, 1
        %v1086 = vrot.slane %v831, 1
        %v1087 = vsel %vm1042, %v1085, %v1086
        %v1088 = vrot.slane %v768, 1
        %v1089 = vrot.slane %v832, 1
        %v1090 = vsel %vm1042, %v1088, %v1089
        %v1109 = vunpack.c.l.b16 %v683
        %v1110 = vunpack.c.l.b16 %v684
        %v1111 = vpack.c.b16 %v1110, %v1109
        %v1114 = vunpack.c.l.b16 %v685
        %v1115 = vpack.c.b16 %v1114, %v1114
        %v1117 = vshrl.u32 %v1111, 16
        %v1119 = vshll.u32 %v1111, 16
        %v1121 = vrot.slane %v1119, 1
        %v1122 = vor.u32 %v1117, %v1121
        %v1124 = vshll.u32 %v1115, 16
        %v1126 = vrot.slane %v1124, 1
        %v1127 = vsel %vm833, %v1122, %v1126
        %v1129 = vrot.slane %v1111, 1
        %v1130 = vrot.slane %v1115, 1
        %v1131 = vsel %vm1042, %v1129, %v1130
        %v1135 = vunpack.c.l.b16 %v686
        %v1136 = vunpack.c.l.b16 %v687
        %v1137 = vpack.c.b16 %v1136, %v1135
        %v1140 = vunpack.c.l.b16 %v688
        %v1141 = vpack.c.b16 %v1140, %v1140
        %v1143 = vshrl.u32 %v1137, 16
        %v1145 = vshll.u32 %v1137, 16
        %v1147 = vrot.slane %v1145, 1
        %v1148 = vor.u32 %v1143, %v1147
        %v1150 = vshll.u32 %v1141, 16
        %v1152 = vrot.slane %v1150, 1
        %v1153 = vsel %vm833, %v1148, %v1152
        %v1155 = vrot.slane %v1137, 1
        %v1156 = vrot.slane %v1141, 1
        %v1157 = vsel %vm1042, %v1155, %v1156
        %v1159 = vld [vmem:[#allocation7] sm:$0xf]
        %v1160 = vld [vmem:[#allocation7 + $0x4] sm:$0xf]
        %v1161 = vld [vmem:[#allocation7 + $0x8] sm:$0xf]
        %v1162 = vld [vmem:[#allocation7 + $0xc] sm:$0xf]
        %v1163 = vld [vmem:[#allocation7 + $0x10] sm:$0xf]
        %v1164 = vld [vmem:[#allocation7 + $0x14] sm:$0xf]
        %v1165 = vld [vmem:[#allocation7 + $0x18] sm:$0xf]
        %v1166 = vld [vmem:[#allocation7 + $0x1c] sm:$0xf]
        %v1167 = vld [vmem:[#allocation7 + $0x20] sm:$0xf]
        %v1168 = vld [vmem:[#allocation7 + $0x24] sm:$0xf]
        %v1169 = vld [vmem:[#allocation7 + $0x28] sm:$0xf]
        %v1170 = vld [vmem:[#allocation7 + $0x2c] sm:$0xf]
        %v1171 = vld [vmem:[#allocation7 + $0x30] sm:$0xf]
        %v1172 = vld [vmem:[#allocation7 + $0x34] sm:$0xf]
        %v1173 = vld [vmem:[#allocation7 + $0x38] sm:$0xf]
        %v1174 = vld [vmem:[#allocation7 + $0x3c] sm:$0xf]
        %v1175 = vld [vmem:[#allocation7 + $0x40] sm:$0xf]
        %v1176 = vld [vmem:[#allocation7 + $0x44] sm:$0xf]
        %v1177 = vld [vmem:[#allocation7 + $0x48] sm:$0xf]
        %v1178 = vld [vmem:[#allocation7 + $0x4c] sm:$0xf]
        %v1179 = vld [vmem:[#allocation7 + $0x50] sm:$0xf]
        %v1180 = vld [vmem:[#allocation7 + $0x54] sm:$0xf]
        %v1181 = vld [vmem:[#allocation7 + $0x58] sm:$0xf]
        %v1182 = vld [vmem:[#allocation7 + $0x5c] sm:$0xf]
        %v1183 = vld [vmem:[#allocation7 + $0x60] sm:$0xf]
        %v1184 = vld [vmem:[#allocation7 + $0x64] sm:$0xf]
        %v1185 = vld [vmem:[#allocation7 + $0x68] sm:$0xf]
        %v1186 = vld [vmem:[#allocation7 + $0x6c] sm:$0xf]
        %v1187 = vld [vmem:[#allocation7 + $0x70] sm:$0xf]
        %v1188 = vld [vmem:[#allocation7 + $0x74] sm:$0xf]
        %v1189 = vld [vmem:[#allocation7 + $0x78] sm:$0xf]
        %v1190 = vld [vmem:[#allocation7 + $0x7c] sm:$0xf]
        %v1191 = vld [vmem:[#allocation7 + $0x80] sm:$0xf]
        %v1192 = vld [vmem:[#allocation7 + $0x84] sm:$0xf]
        %v1193 = vld [vmem:[#allocation7 + $0x88] sm:$0xf]
        %v1194 = vld [vmem:[#allocation7 + $0x8c] sm:$0xf]
        %v1195 = vld [vmem:[#allocation7 + $0x90] sm:$0xf]
        %v1196 = vld [vmem:[#allocation7 + $0x94] sm:$0xf]
        %v1197 = vld [vmem:[#allocation7 + $0x98] sm:$0xf]
        %v1198 = vld [vmem:[#allocation7 + $0x9c] sm:$0xf]
        %v1199 = vld [vmem:[#allocation7 + $0xa0] sm:$0xf]
        %v1200 = vld [vmem:[#allocation7 + $0xa4] sm:$0xf]
        %v1201 = vld [vmem:[#allocation7 + $0xa8] sm:$0xf]
        %v1202 = vld [vmem:[#allocation7 + $0xac] sm:$0xf]
        %v1203 = vld [vmem:[#allocation7 + $0xb0] sm:$0xf]
        %v1204 = vld [vmem:[#allocation7 + $0xb4] sm:$0xf]
        %v1205 = vld [vmem:[#allocation7 + $0xb8] sm:$0xf]
        %v1206 = vld [vmem:[#allocation7 + $0xbc] sm:$0xf]
        %v1207 = vld [vmem:[#allocation7 + $0xc0] sm:$0xf]
        %v1208 = vld [vmem:[#allocation7 + $0xc4] sm:$0xf]
        %v1209 = vld [vmem:[#allocation7 + $0xc8] sm:$0xf]
        %v1210 = vld [vmem:[#allocation7 + $0xcc] sm:$0xf]
        %v1211 = vld [vmem:[#allocation7 + $0xd0] sm:$0xf]
        %v1212 = vld [vmem:[#allocation7 + $0xd4] sm:$0xf]
        %v1213 = vld [vmem:[#allocation7 + $0xd8] sm:$0xf]
        %v1214 = vld [vmem:[#allocation7 + $0xdc] sm:$0xf]
        %v1215 = vld [vmem:[#allocation7 + $0xe0] sm:$0xf]
        %v1216 = vld [vmem:[#allocation7 + $0xe4] sm:$0xf]
        %v1217 = vld [vmem:[#allocation7 + $0xe8] sm:$0xf]
        %v1218 = vld [vmem:[#allocation7 + $0xec] sm:$0xf]
        %v1219 = vld [vmem:[#allocation7 + $0xf0] sm:$0xf]
        %v1220 = vld [vmem:[#allocation7 + $0xf4] sm:$0xf]
        %v1221 = vld [vmem:[#allocation7 + $0xf8] sm:$0xf]
        %v1222 = vld [vmem:[#allocation7 + $0xfc] sm:$0xf]
        %v1223 = vld [vmem:[#allocation7 + $0x100] sm:$0xf]
        %v1224 = vld [vmem:[#allocation7 + $0x104] sm:$0xf]
        %v1225 = vld [vmem:[#allocation7 + $0x108] sm:$0xf]
        %v1226 = vld [vmem:[#allocation7 + $0x10c] sm:$0xf]
        %v1227 = vld [vmem:[#allocation7 + $0x110] sm:$0xf]
        %v1228 = vld [vmem:[#allocation7 + $0x114] sm:$0xf]
        %v1229 = vld [vmem:[#allocation7 + $0x118] sm:$0xf]
        %v1230 = vld [vmem:[#allocation7 + $0x11c] sm:$0xf]
        %v1231 = vld [vmem:[#allocation7 + $0x120] sm:$0xf]
        %v1232 = vld [vmem:[#allocation7 + $0x124] sm:$0xf]
        %v1233 = vld [vmem:[#allocation7 + $0x128] sm:$0xf]
        %v1234 = vld [vmem:[#allocation7 + $0x12c] sm:$0xf]
        %v1235 = vld [vmem:[#allocation7 + $0x130] sm:$0xf]
        %v1236 = vld [vmem:[#allocation7 + $0x134] sm:$0xf]
        %v1237 = vld [vmem:[#allocation7 + $0x138] sm:$0xf]
        %v1238 = vld [vmem:[#allocation7 + $0x13c] sm:$0xf]
        %v1239 = vld [vmem:[#allocation7 + $0x140] sm:$0xf]
        %v1240 = vld [vmem:[#allocation7 + $0x144] sm:$0xf]
        %v1241 = vld [vmem:[#allocation7 + $0x148] sm:$0xf]
        %v1242 = vld [vmem:[#allocation7 + $0x14c] sm:$0xf]
        %v1243 = vld [vmem:[#allocation7 + $0x150] sm:$0xf]
        %v1244 = vld [vmem:[#allocation7 + $0x154] sm:$0xf]
        %v1245 = vld [vmem:[#allocation7 + $0x158] sm:$0xf]
        %v1246 = vld [vmem:[#allocation7 + $0x15c] sm:$0xf]
        %v1247 = vld [vmem:[#allocation7 + $0x160] sm:$0xf]
        %v1248 = vld [vmem:[#allocation7 + $0x164] sm:$0xf]
        %v1249 = vld [vmem:[#allocation7 + $0x168] sm:$0xf]
        %v1250 = vld [vmem:[#allocation7 + $0x16c] sm:$0xf]
        %v1251 = vld [vmem:[#allocation7 + $0x170] sm:$0xf]
        %v1252 = vld [vmem:[#allocation7 + $0x174] sm:$0xf]
        %v1253 = vld [vmem:[#allocation7 + $0x178] sm:$0xf]
        %v1254 = vld [vmem:[#allocation7 + $0x17c] sm:$0xf]
        %v1255 = vld [vmem:[#allocation7 + $0x180] sm:$0xf]
        %v1256 = vld [vmem:[#allocation7 + $0x184] sm:$0xf]
        %v1257 = vld [vmem:[#allocation7 + $0x188] sm:$0xf]
        %v1258 = vld [vmem:[#allocation7 + $0x18c] sm:$0xf]
        %v1259 = vld [vmem:[#allocation7 + $0x190] sm:$0xf]
        %v1260 = vld [vmem:[#allocation7 + $0x194] sm:$0xf]
        %v1261 = vld [vmem:[#allocation7 + $0x198] sm:$0xf]
        %v1262 = vld [vmem:[#allocation7 + $0x19c] sm:$0xf]
        %v1263 = vld [vmem:[#allocation7 + $0x1a0] sm:$0xf]
        %v1264 = vld [vmem:[#allocation7 + $0x1a4] sm:$0xf]
        %v1265 = vld [vmem:[#allocation7 + $0x1a8] sm:$0xf]
        %v1266 = vld [vmem:[#allocation7 + $0x1ac] sm:$0xf]
        %v1267 = vld [vmem:[#allocation7 + $0x1b0] sm:$0xf]
        %v1268 = vld [vmem:[#allocation7 + $0x1b4] sm:$0xf]
        %v1269 = vld [vmem:[#allocation7 + $0x1b8] sm:$0xf]
        %v1270 = vld [vmem:[#allocation7 + $0x1bc] sm:$0xf]
        %v1271 = vld [vmem:[#allocation7 + $0x1c0] sm:$0xf]
        %v1272 = vld [vmem:[#allocation7 + $0x1c4] sm:$0xf]
        %v1273 = vld [vmem:[#allocation7 + $0x1c8] sm:$0xf]
        %v1274 = vld [vmem:[#allocation7 + $0x1cc] sm:$0xf]
        %v1275 = vld [vmem:[#allocation7 + $0x1d0] sm:$0xf]
        %v1276 = vld [vmem:[#allocation7 + $0x1d4] sm:$0xf]
        %v1277 = vld [vmem:[#allocation7 + $0x1d8] sm:$0xf]
        %v1278 = vld [vmem:[#allocation7 + $0x1dc] sm:$0xf]
        %v1279 = vld [vmem:[#allocation7 + $0x1e0] sm:$0xf]
        %v1280 = vld [vmem:[#allocation7 + $0x1e4] sm:$0xf]
        %v1281 = vld [vmem:[#allocation7 + $0x1e8] sm:$0xf]
        %v1282 = vld [vmem:[#allocation7 + $0x1ec] sm:$0xf]
        %v1283 = vld [vmem:[#allocation7 + $0x1f0] sm:$0xf]
        %v1284 = vld [vmem:[#allocation7 + $0x1f4] sm:$0xf]
        %v1285 = vld [vmem:[#allocation7 + $0x1f8] sm:$0xf]
        %v1286 = vld [vmem:[#allocation7 + $0x1fc] sm:$0xf]
        %v1287 = vld [vmem:[#allocation7 + $0x200] sm:$0xf]
        %v1288 = vld [vmem:[#allocation7 + $0x204] sm:$0xf]
        %v1289 = vld [vmem:[#allocation7 + $0x208] sm:$0xf]
        %v1290 = vld [vmem:[#allocation7 + $0x20c] sm:$0xf]
        %v1291 = vld [vmem:[#allocation7 + $0x210] sm:$0xf]
        %v1292 = vld [vmem:[#allocation7 + $0x214] sm:$0xf]
        %v1293 = vld [vmem:[#allocation7 + $0x218] sm:$0xf]
        %v1294 = vld [vmem:[#allocation7 + $0x21c] sm:$0xf]
        %v1295 = vld [vmem:[#allocation7 + $0x220] sm:$0xf]
        %v1296 = vld [vmem:[#allocation7 + $0x224] sm:$0xf]
        %v1297 = vld [vmem:[#allocation7 + $0x228] sm:$0xf]
        %v1298 = vld [vmem:[#allocation7 + $0x22c] sm:$0xf]
        %v1299 = vld [vmem:[#allocation7 + $0x230] sm:$0xf]
        %v1300 = vld [vmem:[#allocation7 + $0x234] sm:$0xf]
        %v1301 = vld [vmem:[#allocation7 + $0x238] sm:$0xf]
        %v1302 = vld [vmem:[#allocation7 + $0x23c] sm:$0xf]
        %v1447 = vunpack.c.l.b16 %v1159
        %v1448 = vunpack.c.l.b16 %v1160
        %v1449 = vunpack.c.l.b16 %v1161
        %v1450 = vunpack.c.l.b16 %v1162
        %v1451 = vunpack.c.l.b16 %v1163
        %v1452 = vunpack.c.l.b16 %v1164
        %v1453 = vunpack.c.l.b16 %v1165
        %v1454 = vunpack.c.l.b16 %v1166
        %v1455 = vunpack.c.l.b16 %v1167
        %v1456 = vunpack.c.l.b16 %v1168
        %v1457 = vunpack.c.l.b16 %v1169
        %v1458 = vunpack.c.l.b16 %v1170
        %v1459 = vunpack.c.l.b16 %v1171
        %v1460 = vunpack.c.l.b16 %v1172
        %v1461 = vunpack.c.l.b16 %v1173
        %v1462 = vunpack.c.l.b16 %v1174
        %v1463 = vunpack.c.l.b16 %v1175
        %v1464 = vunpack.c.l.b16 %v1176
        %v1465 = vunpack.c.l.b16 %v1177
        %v1466 = vunpack.c.l.b16 %v1178
        %v1467 = vunpack.c.l.b16 %v1179
        %v1468 = vunpack.c.l.b16 %v1180
        %v1469 = vunpack.c.l.b16 %v1181
        %v1470 = vunpack.c.l.b16 %v1182
        %v1471 = vunpack.c.l.b16 %v1183
        %v1472 = vunpack.c.l.b16 %v1184
        %v1473 = vunpack.c.l.b16 %v1185
        %v1474 = vunpack.c.l.b16 %v1186
        %v1475 = vunpack.c.l.b16 %v1187
        %v1476 = vunpack.c.l.b16 %v1188
        %v1477 = vunpack.c.l.b16 %v1189
        %v1478 = vunpack.c.l.b16 %v1190
        %v1479 = vunpack.c.l.b16 %v1191
        %v1480 = vunpack.c.l.b16 %v1192
        %v1481 = vunpack.c.l.b16 %v1193
        %v1482 = vunpack.c.l.b16 %v1194
        %v1483 = vunpack.c.l.b16 %v1195
        %v1484 = vunpack.c.l.b16 %v1196
        %v1485 = vunpack.c.l.b16 %v1197
        %v1486 = vunpack.c.l.b16 %v1198
        %v1487 = vunpack.c.l.b16 %v1199
        %v1488 = vunpack.c.l.b16 %v1200
        %v1489 = vunpack.c.l.b16 %v1201
        %v1490 = vunpack.c.l.b16 %v1202
        %v1491 = vunpack.c.l.b16 %v1203
        %v1492 = vunpack.c.l.b16 %v1204
        %v1493 = vunpack.c.l.b16 %v1205
        %v1494 = vunpack.c.l.b16 %v1206
        %v1495 = vunpack.c.l.b16 %v1207
        %v1496 = vunpack.c.l.b16 %v1208
        %v1497 = vunpack.c.l.b16 %v1209
        %v1498 = vunpack.c.l.b16 %v1210
        %v1499 = vunpack.c.l.b16 %v1211
        %v1500 = vunpack.c.l.b16 %v1212
        %v1501 = vunpack.c.l.b16 %v1213
        %v1502 = vunpack.c.l.b16 %v1214
        %v1503 = vunpack.c.l.b16 %v1215
        %v1504 = vunpack.c.l.b16 %v1216
        %v1505 = vunpack.c.l.b16 %v1217
        %v1506 = vunpack.c.l.b16 %v1218
        %v1507 = vunpack.c.l.b16 %v1219
        %v1508 = vunpack.c.l.b16 %v1220
        %v1509 = vunpack.c.l.b16 %v1221
        %v1510 = vunpack.c.l.b16 %v1222
        %v1511 = vunpack.c.l.b16 %v1223
        %v1512 = vunpack.c.l.b16 %v1224
        %v1513 = vunpack.c.l.b16 %v1225
        %v1514 = vunpack.c.l.b16 %v1226
        %v1515 = vunpack.c.l.b16 %v1227
        %v1516 = vunpack.c.l.b16 %v1228
        %v1517 = vunpack.c.l.b16 %v1229
        %v1518 = vunpack.c.l.b16 %v1230
        %v1519 = vunpack.c.l.b16 %v1231
        %v1520 = vunpack.c.l.b16 %v1232
        %v1521 = vunpack.c.l.b16 %v1233
        %v1522 = vunpack.c.l.b16 %v1234
        %v1523 = vunpack.c.l.b16 %v1235
        %v1524 = vunpack.c.l.b16 %v1236
        %v1525 = vunpack.c.l.b16 %v1237
        %v1526 = vunpack.c.l.b16 %v1238
        %v1527 = vunpack.c.l.b16 %v1239
        %v1528 = vunpack.c.l.b16 %v1240
        %v1529 = vunpack.c.l.b16 %v1241
        %v1530 = vunpack.c.l.b16 %v1242
        %v1531 = vunpack.c.l.b16 %v1243
        %v1532 = vunpack.c.l.b16 %v1244
        %v1533 = vunpack.c.l.b16 %v1245
        %v1534 = vunpack.c.l.b16 %v1246
        %v1535 = vunpack.c.l.b16 %v1247
        %v1536 = vunpack.c.l.b16 %v1248
        %v1537 = vunpack.c.l.b16 %v1249
        %v1538 = vunpack.c.l.b16 %v1250
        %v1539 = vunpack.c.l.b16 %v1251
        %v1540 = vunpack.c.l.b16 %v1252
        %v1541 = vunpack.c.l.b16 %v1253
        %v1542 = vunpack.c.l.b16 %v1254
        %v1543 = vunpack.c.l.b16 %v1255
        %v1544 = vunpack.c.l.b16 %v1256
        %v1545 = vunpack.c.l.b16 %v1257
        %v1546 = vunpack.c.l.b16 %v1258
        %v1547 = vunpack.c.l.b16 %v1259
        %v1548 = vunpack.c.l.b16 %v1260
        %v1549 = vunpack.c.l.b16 %v1261
        %v1550 = vunpack.c.l.b16 %v1262
        %v1551 = vunpack.c.l.b16 %v1263
        %v1552 = vunpack.c.l.b16 %v1264
        %v1553 = vunpack.c.l.b16 %v1265
        %v1554 = vunpack.c.l.b16 %v1266
        %v1555 = vunpack.c.l.b16 %v1267
        %v1556 = vunpack.c.l.b16 %v1268
        %v1557 = vunpack.c.l.b16 %v1269
        %v1558 = vunpack.c.l.b16 %v1270
        %v1559 = vunpack.c.l.b16 %v1271
        %v1560 = vunpack.c.l.b16 %v1272
        %v1561 = vunpack.c.l.b16 %v1273
        %v1562 = vunpack.c.l.b16 %v1274
        %v1563 = vunpack.c.l.b16 %v1275
        %v1564 = vunpack.c.l.b16 %v1276
        %v1565 = vunpack.c.l.b16 %v1277
        %v1566 = vunpack.c.l.b16 %v1278
        %v1567 = vunpack.c.l.b16 %v1279
        %v1568 = vunpack.c.l.b16 %v1280
        %v1569 = vunpack.c.l.b16 %v1281
        %v1570 = vunpack.c.l.b16 %v1282
        %v1571 = vunpack.c.l.b16 %v1283
        %v1572 = vunpack.c.l.b16 %v1284
        %v1573 = vunpack.c.l.b16 %v1285
        %v1574 = vunpack.c.l.b16 %v1286
        %v1575 = vunpack.c.l.b16 %v1287
        %v1576 = vunpack.c.l.b16 %v1288
        %v1577 = vunpack.c.l.b16 %v1289
        %v1578 = vunpack.c.l.b16 %v1290
        %v1579 = vunpack.c.l.b16 %v1291
        %v1580 = vunpack.c.l.b16 %v1292
        %v1581 = vunpack.c.l.b16 %v1293
        %v1582 = vunpack.c.l.b16 %v1294
        %v1583 = vunpack.c.l.b16 %v1295
        %v1584 = vunpack.c.l.b16 %v1296
        %v1585 = vunpack.c.l.b16 %v1297
        %v1586 = vunpack.c.l.b16 %v1298
        %v1587 = vunpack.c.l.b16 %v1299
        %v1588 = vunpack.c.l.b16 %v1300
        %v1589 = vunpack.c.l.b16 %v1301
        %v1590 = vunpack.c.l.b16 %v1302
        %v1591 = vpack.c.b16 %v1448, %v1447
        %v1592 = vpack.c.b16 %v1450, %v1449
        %v1593 = vpack.c.b16 %v1452, %v1451
        %v1594 = vpack.c.b16 %v1454, %v1453
        %v1595 = vpack.c.b16 %v1456, %v1455
        %v1596 = vpack.c.b16 %v1458, %v1457
        %v1597 = vpack.c.b16 %v1460, %v1459
        %v1598 = vpack.c.b16 %v1462, %v1461
        %v1599 = vpack.c.b16 %v1464, %v1463
        %v1600 = vpack.c.b16 %v1466, %v1465
        %v1601 = vpack.c.b16 %v1468, %v1467
        %v1602 = vpack.c.b16 %v1470, %v1469
        %v1603 = vpack.c.b16 %v1472, %v1471
        %v1604 = vpack.c.b16 %v1474, %v1473
        %v1605 = vpack.c.b16 %v1476, %v1475
        %v1606 = vpack.c.b16 %v1478, %v1477
        %v1607 = vpack.c.b16 %v1480, %v1479
        %v1608 = vpack.c.b16 %v1482, %v1481
        %v1609 = vpack.c.b16 %v1484, %v1483
        %v1610 = vpack.c.b16 %v1486, %v1485
        %v1611 = vpack.c.b16 %v1488, %v1487
        %v1612 = vpack.c.b16 %v1490, %v1489
        %v1613 = vpack.c.b16 %v1492, %v1491
        %v1614 = vpack.c.b16 %v1494, %v1493
        %v1615 = vpack.c.b16 %v1496, %v1495
        %v1616 = vpack.c.b16 %v1498, %v1497
        %v1617 = vpack.c.b16 %v1500, %v1499
        %v1618 = vpack.c.b16 %v1502, %v1501
        %v1619 = vpack.c.b16 %v1504, %v1503
        %v1620 = vpack.c.b16 %v1506, %v1505
        %v1621 = vpack.c.b16 %v1508, %v1507
        %v1622 = vpack.c.b16 %v1510, %v1509
        %v1623 = vpack.c.b16 %v1512, %v1511
        %v1624 = vpack.c.b16 %v1514, %v1513
        %v1625 = vpack.c.b16 %v1516, %v1515
        %v1626 = vpack.c.b16 %v1518, %v1517
        %v1627 = vpack.c.b16 %v1520, %v1519
        %v1628 = vpack.c.b16 %v1522, %v1521
        %v1629 = vpack.c.b16 %v1524, %v1523
        %v1630 = vpack.c.b16 %v1526, %v1525
        %v1631 = vpack.c.b16 %v1528, %v1527
        %v1632 = vpack.c.b16 %v1530, %v1529
        %v1633 = vpack.c.b16 %v1532, %v1531
        %v1634 = vpack.c.b16 %v1534, %v1533
        %v1635 = vpack.c.b16 %v1536, %v1535
        %v1636 = vpack.c.b16 %v1538, %v1537
        %v1637 = vpack.c.b16 %v1540, %v1539
        %v1638 = vpack.c.b16 %v1542, %v1541
        %v1639 = vpack.c.b16 %v1544, %v1543
        %v1640 = vpack.c.b16 %v1546, %v1545
        %v1641 = vpack.c.b16 %v1548, %v1547
        %v1642 = vpack.c.b16 %v1550, %v1549
        %v1643 = vpack.c.b16 %v1552, %v1551
        %v1644 = vpack.c.b16 %v1554, %v1553
        %v1645 = vpack.c.b16 %v1556, %v1555
        %v1646 = vpack.c.b16 %v1558, %v1557
        %v1647 = vpack.c.b16 %v1560, %v1559
        %v1648 = vpack.c.b16 %v1562, %v1561
        %v1649 = vpack.c.b16 %v1564, %v1563
        %v1650 = vpack.c.b16 %v1566, %v1565
        %v1651 = vpack.c.b16 %v1568, %v1567
        %v1652 = vpack.c.b16 %v1570, %v1569
        %v1653 = vpack.c.b16 %v1572, %v1571
        %v1654 = vpack.c.b16 %v1574, %v1573
        %v1655 = vpack.c.b16 %v1576, %v1575
        %v1656 = vpack.c.b16 %v1578, %v1577
        %v1657 = vpack.c.b16 %v1580, %v1579
        %v1658 = vpack.c.b16 %v1582, %v1581
        %v1659 = vpack.c.b16 %v1584, %v1583
        %v1660 = vpack.c.b16 %v1586, %v1585
        %v1661 = vpack.c.b16 %v1588, %v1587
        %v1662 = vpack.c.b16 %v1590, %v1589
        %1735 = vmatpush.bf16.msra.mxu0 %v1598
        %1736 = vmatpush.bf16.msra.mxu0 %v1597
        %1737 = vmatpush.bf16.msra.mxu0 %v1596
        %1738 = vmatpush.bf16.msra.mxu0 %v1595
        %1739 = vmatpush.bf16.msra.mxu0 %v1594
        %1740 = vmatpush.bf16.msra.mxu0 %v1593
        %1741 = vmatpush.bf16.msra.mxu0 %v1592
        %1742 = vmatpush.bf16.msra.mxu0 %v1591
        %1743 = vmatmul.bf16.gmra.mxu0 %v753
        %v1744 = vpop.f32.mrf.mxu0
        %v1745 = vadd.f32 0.0, %v1744
        %v1746 = vpop.f32.mrf.mxu0
        %v1747 = vadd.f32 0.0, %v1746
        %1748 = vmatmul.bf16.gmra.mxu0 %v754
        %v1749 = vpop.f32.mrf.mxu0
        %v1750 = vadd.f32 0.0, %v1749
        %v1751 = vpop.f32.mrf.mxu0
        %v1752 = vadd.f32 0.0, %v1751
        %1753 = vmatmul.bf16.gmra.mxu0 %v755
        %v1754 = vpop.f32.mrf.mxu0
        %v1755 = vadd.f32 0.0, %v1754
        %v1756 = vpop.f32.mrf.mxu0
        %v1757 = vadd.f32 0.0, %v1756
        %1758 = vmatmul.bf16.gmra.mxu0 %v756
        %v1759 = vpop.f32.mrf.mxu0
        %v1760 = vadd.f32 0.0, %v1759
        %v1761 = vpop.f32.mrf.mxu0
        %v1762 = vadd.f32 0.0, %v1761
        %1763 = vmatmul.bf16.gmra.mxu0 %v757
        %v1764 = vpop.f32.mrf.mxu0
        %v1765 = vadd.f32 0.0, %v1764
        %v1766 = vpop.f32.mrf.mxu0
        %v1767 = vadd.f32 0.0, %v1766
        %1768 = vmatmul.bf16.gmra.mxu0 %v758
        %v1769 = vpop.f32.mrf.mxu0
        %v1770 = vadd.f32 0.0, %v1769
        %v1771 = vpop.f32.mrf.mxu0
        %v1772 = vadd.f32 0.0, %v1771
        %1773 = vmatmul.bf16.gmra.mxu0 %v759
        %v1774 = vpop.f32.mrf.mxu0
        %v1775 = vadd.f32 0.0, %v1774
        %v1776 = vpop.f32.mrf.mxu0
        %v1777 = vadd.f32 0.0, %v1776
        %1778 = vmatmul.bf16.gmra.mxu0 %v760
        %v1779 = vpop.f32.mrf.mxu0
        %v1780 = vadd.f32 0.0, %v1779
        %v1781 = vpop.f32.mrf.mxu0
        %v1782 = vadd.f32 0.0, %v1781
        %1783 = vmatmul.bf16.gmra.mxu0 %v761
        %v1784 = vpop.f32.mrf.mxu0
        %v1785 = vadd.f32 0.0, %v1784
        %v1786 = vpop.f32.mrf.mxu0
        %v1787 = vadd.f32 0.0, %v1786
        %1788 = vmatmul.bf16.gmra.mxu0 %v762
        %v1789 = vpop.f32.mrf.mxu0
        %v1790 = vadd.f32 0.0, %v1789
        %v1791 = vpop.f32.mrf.mxu0
        %v1792 = vadd.f32 0.0, %v1791
        %1793 = vmatmul.bf16.gmra.mxu0 %v763
        %v1794 = vpop.f32.mrf.mxu0
        %v1795 = vadd.f32 0.0, %v1794
        %v1796 = vpop.f32.mrf.mxu0
        %v1797 = vadd.f32 0.0, %v1796
        %1798 = vmatmul.bf16.gmra.mxu0 %v764
        %v1799 = vpop.f32.mrf.mxu0
        %v1800 = vadd.f32 0.0, %v1799
        %v1801 = vpop.f32.mrf.mxu0
        %v1802 = vadd.f32 0.0, %v1801
        %1803 = vmatmul.bf16.gmra.mxu0 %v765
        %v1804 = vpop.f32.mrf.mxu0
        %v1805 = vadd.f32 0.0, %v1804
        %v1806 = vpop.f32.mrf.mxu0
        %v1807 = vadd.f32 0.0, %v1806
        %1808 = vmatmul.bf16.gmra.mxu0 %v766
        %v1809 = vpop.f32.mrf.mxu0
        %v1810 = vadd.f32 0.0, %v1809
        %v1811 = vpop.f32.mrf.mxu0
        %v1812 = vadd.f32 0.0, %v1811
        %1813 = vmatmul.bf16.gmra.mxu0 %v767
        %v1814 = vpop.f32.mrf.mxu0
        %v1815 = vadd.f32 0.0, %v1814
        %v1816 = vpop.f32.mrf.mxu0
        %v1817 = vadd.f32 0.0, %v1816
        %1818 = vmatmul.bf16.gmra.mxu0 %v768
        %v1819 = vpop.f32.mrf.mxu0
        %v1820 = vadd.f32 0.0, %v1819
        %v1821 = vpop.f32.mrf.mxu0
        %v1822 = vadd.f32 0.0, %v1821
        %1823 = vdwg.mxu0
        %1824 = vmatpush.bf16.msra.mxu0 %v1606
        %1825 = vmatpush.bf16.msra.mxu0 %v1605
        %1826 = vmatpush.bf16.msra.mxu0 %v1604
        %1827 = vmatpush.bf16.msra.mxu0 %v1603
        %1828 = vmatpush.bf16.msra.mxu0 %v1602
        %1829 = vmatpush.bf16.msra.mxu0 %v1601
        %1830 = vmatpush.bf16.msra.mxu0 %v1600
        %1831 = vmatpush.bf16.msra.mxu0 %v1599
        %1832 = vmatmul.bf16.gmra.mxu0 %v845
        %v1833 = vpop.f32.mrf.mxu0
        %v1834 = vadd.f32 %v1745, %v1833
        %v1835 = vpop.f32.mrf.mxu0
        %v1836 = vadd.f32 %v1747, %v1835
        %1837 = vmatmul.bf16.gmra.mxu0 %v857
        %v1838 = vpop.f32.mrf.mxu0
        %v1839 = vadd.f32 %v1750, %v1838
        %v1840 = vpop.f32.mrf.mxu0
        %v1841 = vadd.f32 %v1752, %v1840
        %1842 = vmatmul.bf16.gmra.mxu0 %v869
        %v1843 = vpop.f32.mrf.mxu0
        %v1844 = vadd.f32 %v1755, %v1843
        %v1845 = vpop.f32.mrf.mxu0
        %v1846 = vadd.f32 %v1757, %v1845
        %1847 = vmatmul.bf16.gmra.mxu0 %v881
        %v1848 = vpop.f32.mrf.mxu0
        %v1849 = vadd.f32 %v1760, %v1848
        %v1850 = vpop.f32.mrf.mxu0
        %v1851 = vadd.f32 %v1762, %v1850
        %1852 = vmatmul.bf16.gmra.mxu0 %v893
        %v1853 = vpop.f32.mrf.mxu0
        %v1854 = vadd.f32 %v1765, %v1853
        %v1855 = vpop.f32.mrf.mxu0
        %v1856 = vadd.f32 %v1767, %v1855
        %1857 = vmatmul.bf16.gmra.mxu0 %v905
        %v1858 = vpop.f32.mrf.mxu0
        %v1859 = vadd.f32 %v1770, %v1858
        %v1860 = vpop.f32.mrf.mxu0
        %v1861 = vadd.f32 %v1772, %v1860
        %1862 = vmatmul.bf16.gmra.mxu0 %v917
        %v1863 = vpop.f32.mrf.mxu0
        %v1864 = vadd.f32 %v1775, %v1863
        %v1865 = vpop.f32.mrf.mxu0
        %v1866 = vadd.f32 %v1777, %v1865
        %1867 = vmatmul.bf16.gmra.mxu0 %v929
        %v1868 = vpop.f32.mrf.mxu0
        %v1869 = vadd.f32 %v1780, %v1868
        %v1870 = vpop.f32.mrf.mxu0
        %v1871 = vadd.f32 %v1782, %v1870
        %1872 = vmatmul.bf16.gmra.mxu0 %v941
        %v1873 = vpop.f32.mrf.mxu0
        %v1874 = vadd.f32 %v1785, %v1873
        %v1875 = vpop.f32.mrf.mxu0
        %v1876 = vadd.f32 %v1787, %v1875
        %1877 = vmatmul.bf16.gmra.mxu0 %v953
        %v1878 = vpop.f32.mrf.mxu0
        %v1879 = vadd.f32 %v1790, %v1878
        %v1880 = vpop.f32.mrf.mxu0
        %v1881 = vadd.f32 %v1792, %v1880
        %1882 = vmatmul.bf16.gmra.mxu0 %v965
        %v1883 = vpop.f32.mrf.mxu0
        %v1884 = vadd.f32 %v1795, %v1883
        %v1885 = vpop.f32.mrf.mxu0
        %v1886 = vadd.f32 %v1797, %v1885
        %1887 = vmatmul.bf16.gmra.mxu0 %v977
        %v1888 = vpop.f32.mrf.mxu0
        %v1889 = vadd.f32 %v1800, %v1888
        %v1890 = vpop.f32.mrf.mxu0
        %v1891 = vadd.f32 %v1802, %v1890
        %1892 = vmatmul.bf16.gmra.mxu0 %v989
        %v1893 = vpop.f32.mrf.mxu0
        %v1894 = vadd.f32 %v1805, %v1893
        %v1895 = vpop.f32.mrf.mxu0
        %v1896 = vadd.f32 %v1807, %v1895
        %1897 = vmatmul.bf16.gmra.mxu0 %v1001
        %v1898 = vpop.f32.mrf.mxu0
        %v1899 = vadd.f32 %v1810, %v1898
        %v1900 = vpop.f32.mrf.mxu0
        %v1901 = vadd.f32 %v1812, %v1900
        %1902 = vmatmul.bf16.gmra.mxu0 %v1013
        %v1903 = vpop.f32.mrf.mxu0
        %v1904 = vadd.f32 %v1815, %v1903
        %v1905 = vpop.f32.mrf.mxu0
        %v1906 = vadd.f32 %v1817, %v1905
        %1907 = vmatmul.bf16.gmra.mxu0 %v1025
        %v1908 = vpop.f32.mrf.mxu0
        %v1909 = vadd.f32 %v1820, %v1908
        %v1910 = vpop.f32.mrf.mxu0
        %v1911 = vadd.f32 %v1822, %v1910
        %1912 = vdwg.mxu0
        %1913 = vmatpush.bf16.msra.mxu0 %v1614
        %1914 = vmatpush.bf16.msra.mxu0 %v1613
        %1915 = vmatpush.bf16.msra.mxu0 %v1612
        %1916 = vmatpush.bf16.msra.mxu0 %v1611
        %1917 = vmatpush.bf16.msra.mxu0 %v1610
        %1918 = vmatpush.bf16.msra.mxu0 %v1609
        %1919 = vmatpush.bf16.msra.mxu0 %v1608
        %1920 = vmatpush.bf16.msra.mxu0 %v1607
        %1921 = vmatmul.bf16.gmra.mxu0 %v1045
        %v1922 = vpop.f32.mrf.mxu0
        %v1923 = vadd.f32 %v1834, %v1922
        %v1924 = vpop.f32.mrf.mxu0
        %v1925 = vadd.f32 %v1836, %v1924
        %1926 = vmatmul.bf16.gmra.mxu0 %v1048
        %v1927 = vpop.f32.mrf.mxu0
        %v1928 = vadd.f32 %v1839, %v1927
        %v1929 = vpop.f32.mrf.mxu0
        %v1930 = vadd.f32 %v1841, %v1929
        %1931 = vmatmul.bf16.gmra.mxu0 %v1051
        %v1932 = vpop.f32.mrf.mxu0
        %v1933 = vadd.f32 %v1844, %v1932
        %v1934 = vpop.f32.mrf.mxu0
        %v1935 = vadd.f32 %v1846, %v1934
        %1936 = vmatmul.bf16.gmra.mxu0 %v1054
        %v1937 = vpop.f32.mrf.mxu0
        %v1938 = vadd.f32 %v1849, %v1937
        %v1939 = vpop.f32.mrf.mxu0
        %v1940 = vadd.f32 %v1851, %v1939
        %1941 = vmatmul.bf16.gmra.mxu0 %v1057
        %v1942 = vpop.f32.mrf.mxu0
        %v1943 = vadd.f32 %v1854, %v1942
        %v1944 = vpop.f32.mrf.mxu0
        %v1945 = vadd.f32 %v1856, %v1944
        %1946 = vmatmul.bf16.gmra.mxu0 %v1060
        %v1947 = vpop.f32.mrf.mxu0
        %v1948 = vadd.f32 %v1859, %v1947
        %v1949 = vpop.f32.mrf.mxu0
        %v1950 = vadd.f32 %v1861, %v1949
        %1951 = vmatmul.bf16.gmra.mxu0 %v1063
        %v1952 = vpop.f32.mrf.mxu0
        %v1953 = vadd.f32 %v1864, %v1952
        %v1954 = vpop.f32.mrf.mxu0
        %v1955 = vadd.f32 %v1866, %v1954
        %1956 = vmatmul.bf16.gmra.mxu0 %v1066
        %v1957 = vpop.f32.mrf.mxu0
        %v1958 = vadd.f32 %v1869, %v1957
        %v1959 = vpop.f32.mrf.mxu0
        %v1960 = vadd.f32 %v1871, %v1959
        %1961 = vmatmul.bf16.gmra.mxu0 %v1069
        %v1962 = vpop.f32.mrf.mxu0
        %v1963 = vadd.f32 %v1874, %v1962
        %v1964 = vpop.f32.mrf.mxu0
        %v1965 = vadd.f32 %v1876, %v1964
        %1966 = vmatmul.bf16.gmra.mxu0 %v1072
        %v1967 = vpop.f32.mrf.mxu0
        %v1968 = vadd.f32 %v1879, %v1967
        %v1969 = vpop.f32.mrf.mxu0
        %v1970 = vadd.f32 %v1881, %v1969
        %1971 = vmatmul.bf16.gmra.mxu0 %v1075
        %v1972 = vpop.f32.mrf.mxu0
        %v1973 = vadd.f32 %v1884, %v1972
        %v1974 = vpop.f32.mrf.mxu0
        %v1975 = vadd.f32 %v1886, %v1974
        %1976 = vmatmul.bf16.gmra.mxu0 %v1078
        %v1977 = vpop.f32.mrf.mxu0
        %v1978 = vadd.f32 %v1889, %v1977
        %v1979 = vpop.f32.mrf.mxu0
        %v1980 = vadd.f32 %v1891, %v1979
        %1981 = vmatmul.bf16.gmra.mxu0 %v1081
        %v1982 = vpop.f32.mrf.mxu0
        %v1983 = vadd.f32 %v1894, %v1982
        %v1984 = vpop.f32.mrf.mxu0
        %v1985 = vadd.f32 %v1896, %v1984
        %1986 = vmatmul.bf16.gmra.mxu0 %v1084
        %v1987 = vpop.f32.mrf.mxu0
        %v1988 = vadd.f32 %v1899, %v1987
        %v1989 = vpop.f32.mrf.mxu0
        %v1990 = vadd.f32 %v1901, %v1989
        %1991 = vmatmul.bf16.gmra.mxu0 %v1087
        %v1992 = vpop.f32.mrf.mxu0
        %v1993 = vadd.f32 %v1904, %v1992
        %v1994 = vpop.f32.mrf.mxu0
        %v1995 = vadd.f32 %v1906, %v1994
        %1996 = vmatmul.bf16.gmra.mxu0 %v1090
        %v1997 = vpop.f32.mrf.mxu0
        %v1998 = vadd.f32 %v1909, %v1997
        %v1999 = vpop.f32.mrf.mxu0
        %v2000 = vadd.f32 %v1911, %v1999
        %2001 = vdwg.mxu0
        %2002 = vmatpush.bf16.msra.mxu0 %v1622
        %2003 = vmatpush.bf16.msra.mxu0 %v1621
        %2004 = vmatpush.bf16.msra.mxu0 %v1620
        %2005 = vmatpush.bf16.msra.mxu0 %v1619
        %2006 = vmatpush.bf16.msra.mxu0 %v1618
        %2007 = vmatpush.bf16.msra.mxu0 %v1617
        %2008 = vmatpush.bf16.msra.mxu0 %v1616
        %2009 = vmatpush.bf16.msra.mxu0 %v1615
        %2010 = vmatmul.bf16.gmra.mxu0 %v754
        %v2011 = vpop.f32.mrf.mxu0
        %v2012 = vadd.f32 %v1923, %v2011
        %v2013 = vpop.f32.mrf.mxu0
        %v2014 = vadd.f32 %v1925, %v2013
        %2015 = vmatmul.bf16.gmra.mxu0 %v755
        %v2016 = vpop.f32.mrf.mxu0
        %v2017 = vadd.f32 %v1928, %v2016
        %v2018 = vpop.f32.mrf.mxu0
        %v2019 = vadd.f32 %v1930, %v2018
        %2020 = vmatmul.bf16.gmra.mxu0 %v756
        %v2021 = vpop.f32.mrf.mxu0
        %v2022 = vadd.f32 %v1933, %v2021
        %v2023 = vpop.f32.mrf.mxu0
        %v2024 = vadd.f32 %v1935, %v2023
        %2025 = vmatmul.bf16.gmra.mxu0 %v757
        %v2026 = vpop.f32.mrf.mxu0
        %v2027 = vadd.f32 %v1938, %v2026
        %v2028 = vpop.f32.mrf.mxu0
        %v2029 = vadd.f32 %v1940, %v2028
        %2030 = vmatmul.bf16.gmra.mxu0 %v758
        %v2031 = vpop.f32.mrf.mxu0
        %v2032 = vadd.f32 %v1943, %v2031
        %v2033 = vpop.f32.mrf.mxu0
        %v2034 = vadd.f32 %v1945, %v2033
        %2035 = vmatmul.bf16.gmra.mxu0 %v759
        %v2036 = vpop.f32.mrf.mxu0
        %v2037 = vadd.f32 %v1948, %v2036
        %v2038 = vpop.f32.mrf.mxu0
        %v2039 = vadd.f32 %v1950, %v2038
        %2040 = vmatmul.bf16.gmra.mxu0 %v760
        %v2041 = vpop.f32.mrf.mxu0
        %v2042 = vadd.f32 %v1953, %v2041
        %v2043 = vpop.f32.mrf.mxu0
        %v2044 = vadd.f32 %v1955, %v2043
        %2045 = vmatmul.bf16.gmra.mxu0 %v761
        %v2046 = vpop.f32.mrf.mxu0
        %v2047 = vadd.f32 %v1958, %v2046
        %v2048 = vpop.f32.mrf.mxu0
        %v2049 = vadd.f32 %v1960, %v2048
        %2050 = vmatmul.bf16.gmra.mxu0 %v762
        %v2051 = vpop.f32.mrf.mxu0
        %v2052 = vadd.f32 %v1963, %v2051
        %v2053 = vpop.f32.mrf.mxu0
        %v2054 = vadd.f32 %v1965, %v2053
        %2055 = vmatmul.bf16.gmra.mxu0 %v763
        %v2056 = vpop.f32.mrf.mxu0
        %v2057 = vadd.f32 %v1968, %v2056
        %v2058 = vpop.f32.mrf.mxu0
        %v2059 = vadd.f32 %v1970, %v2058
        %2060 = vmatmul.bf16.gmra.mxu0 %v764
        %v2061 = vpop.f32.mrf.mxu0
        %v2062 = vadd.f32 %v1973, %v2061
        %v2063 = vpop.f32.mrf.mxu0
        %v2064 = vadd.f32 %v1975, %v2063
        %2065 = vmatmul.bf16.gmra.mxu0 %v765
        %v2066 = vpop.f32.mrf.mxu0
        %v2067 = vadd.f32 %v1978, %v2066
        %v2068 = vpop.f32.mrf.mxu0
        %v2069 = vadd.f32 %v1980, %v2068
        %2070 = vmatmul.bf16.gmra.mxu0 %v766
        %v2071 = vpop.f32.mrf.mxu0
        %v2072 = vadd.f32 %v1983, %v2071
        %v2073 = vpop.f32.mrf.mxu0
        %v2074 = vadd.f32 %v1985, %v2073
        %2075 = vmatmul.bf16.gmra.mxu0 %v767
        %v2076 = vpop.f32.mrf.mxu0
        %v2077 = vadd.f32 %v1988, %v2076
        %v2078 = vpop.f32.mrf.mxu0
        %v2079 = vadd.f32 %v1990, %v2078
        %2080 = vmatmul.bf16.gmra.mxu0 %v768
        %v2081 = vpop.f32.mrf.mxu0
        %v2082 = vadd.f32 %v1993, %v2081
        %v2083 = vpop.f32.mrf.mxu0
        %v2084 = vadd.f32 %v1995, %v2083
        %2085 = vmatmul.bf16.gmra.mxu0 %v1111
        %v2086 = vpop.f32.mrf.mxu0
        %v2087 = vadd.f32 %v1998, %v2086
        %v2088 = vpop.f32.mrf.mxu0
        %v2089 = vadd.f32 %v2000, %v2088
        %2090 = vdwg.mxu0
        %2091 = vmatpush.bf16.msra.mxu0 %v1630
        %2092 = vmatpush.bf16.msra.mxu0 %v1629
        %2093 = vmatpush.bf16.msra.mxu0 %v1628
        %2094 = vmatpush.bf16.msra.mxu0 %v1627
        %2095 = vmatpush.bf16.msra.mxu0 %v1626
        %2096 = vmatpush.bf16.msra.mxu0 %v1625
        %2097 = vmatpush.bf16.msra.mxu0 %v1624
        %2098 = vmatpush.bf16.msra.mxu0 %v1623
        %2099 = vmatmul.bf16.gmra.mxu0 %v857
        %v2100 = vpop.f32.mrf.mxu0
        %v2101 = vadd.f32 %v2012, %v2100
        %v2102 = vpop.f32.mrf.mxu0
        %v2103 = vadd.f32 %v2014, %v2102
        %2104 = vmatmul.bf16.gmra.mxu0 %v869
        %v2105 = vpop.f32.mrf.mxu0
        %v2106 = vadd.f32 %v2017, %v2105
        %v2107 = vpop.f32.mrf.mxu0
        %v2108 = vadd.f32 %v2019, %v2107
        %2109 = vmatmul.bf16.gmra.mxu0 %v881
        %v2110 = vpop.f32.mrf.mxu0
        %v2111 = vadd.f32 %v2022, %v2110
        %v2112 = vpop.f32.mrf.mxu0
        %v2113 = vadd.f32 %v2024, %v2112
        %2114 = vmatmul.bf16.gmra.mxu0 %v893
        %v2115 = vpop.f32.mrf.mxu0
        %v2116 = vadd.f32 %v2027, %v2115
        %v2117 = vpop.f32.mrf.mxu0
        %v2118 = vadd.f32 %v2029, %v2117
        %2119 = vmatmul.bf16.gmra.mxu0 %v905
        %v2120 = vpop.f32.mrf.mxu0
        %v2121 = vadd.f32 %v2032, %v2120
        %v2122 = vpop.f32.mrf.mxu0
        %v2123 = vadd.f32 %v2034, %v2122
        %2124 = vmatmul.bf16.gmra.mxu0 %v917
        %v2125 = vpop.f32.mrf.mxu0
        %v2126 = vadd.f32 %v2037, %v2125
        %v2127 = vpop.f32.mrf.mxu0
        %v2128 = vadd.f32 %v2039, %v2127
        %2129 = vmatmul.bf16.gmra.mxu0 %v929
        %v2130 = vpop.f32.mrf.mxu0
        %v2131 = vadd.f32 %v2042, %v2130
        %v2132 = vpop.f32.mrf.mxu0
        %v2133 = vadd.f32 %v2044, %v2132
        %2134 = vmatmul.bf16.gmra.mxu0 %v941
        %v2135 = vpop.f32.mrf.mxu0
        %v2136 = vadd.f32 %v2047, %v2135
        %v2137 = vpop.f32.mrf.mxu0
        %v2138 = vadd.f32 %v2049, %v2137
        %2139 = vmatmul.bf16.gmra.mxu0 %v953
        %v2140 = vpop.f32.mrf.mxu0
        %v2141 = vadd.f32 %v2052, %v2140
        %v2142 = vpop.f32.mrf.mxu0
        %v2143 = vadd.f32 %v2054, %v2142
        %2144 = vmatmul.bf16.gmra.mxu0 %v965
        %v2145 = vpop.f32.mrf.mxu0
        %v2146 = vadd.f32 %v2057, %v2145
        %v2147 = vpop.f32.mrf.mxu0
        %v2148 = vadd.f32 %v2059, %v2147
        %2149 = vmatmul.bf16.gmra.mxu0 %v977
        %v2150 = vpop.f32.mrf.mxu0
        %v2151 = vadd.f32 %v2062, %v2150
        %v2152 = vpop.f32.mrf.mxu0
        %v2153 = vadd.f32 %v2064, %v2152
        %2154 = vmatmul.bf16.gmra.mxu0 %v989
        %v2155 = vpop.f32.mrf.mxu0
        %v2156 = vadd.f32 %v2067, %v2155
        %v2157 = vpop.f32.mrf.mxu0
        %v2158 = vadd.f32 %v2069, %v2157
        %2159 = vmatmul.bf16.gmra.mxu0 %v1001
        %v2160 = vpop.f32.mrf.mxu0
        %v2161 = vadd.f32 %v2072, %v2160
        %v2162 = vpop.f32.mrf.mxu0
        %v2163 = vadd.f32 %v2074, %v2162
        %2164 = vmatmul.bf16.gmra.mxu0 %v1013
        %v2165 = vpop.f32.mrf.mxu0
        %v2166 = vadd.f32 %v2077, %v2165
        %v2167 = vpop.f32.mrf.mxu0
        %v2168 = vadd.f32 %v2079, %v2167
        %2169 = vmatmul.bf16.gmra.mxu0 %v1025
        %v2170 = vpop.f32.mrf.mxu0
        %v2171 = vadd.f32 %v2082, %v2170
        %v2172 = vpop.f32.mrf.mxu0
        %v2173 = vadd.f32 %v2084, %v2172
        %2174 = vmatmul.bf16.gmra.mxu0 %v1127
        %v2175 = vpop.f32.mrf.mxu0
        %v2176 = vadd.f32 %v2087, %v2175
        %v2177 = vpop.f32.mrf.mxu0
        %v2178 = vadd.f32 %v2089, %v2177
        %2179 = vdwg.mxu0
        %2180 = vmatpush.bf16.msra.mxu0 %v1638
        %2181 = vmatpush.bf16.msra.mxu0 %v1637
        %2182 = vmatpush.bf16.msra.mxu0 %v1636
        %2183 = vmatpush.bf16.msra.mxu0 %v1635
        %2184 = vmatpush.bf16.msra.mxu0 %v1634
        %2185 = vmatpush.bf16.msra.mxu0 %v1633
        %2186 = vmatpush.bf16.msra.mxu0 %v1632
        %2187 = vmatpush.bf16.msra.mxu0 %v1631
        %2188 = vmatmul.bf16.gmra.mxu0 %v1048
        %v2189 = vpop.f32.mrf.mxu0
        %v2190 = vadd.f32 %v2101, %v2189
        %v2191 = vpop.f32.mrf.mxu0
        %v2192 = vadd.f32 %v2103, %v2191
        %2193 = vmatmul.bf16.gmra.mxu0 %v1051
        %v2194 = vpop.f32.mrf.mxu0
        %v2195 = vadd.f32 %v2106, %v2194
        %v2196 = vpop.f32.mrf.mxu0
        %v2197 = vadd.f32 %v2108, %v2196
        %2198 = vmatmul.bf16.gmra.mxu0 %v1054
        %v2199 = vpop.f32.mrf.mxu0
        %v2200 = vadd.f32 %v2111, %v2199
        %v2201 = vpop.f32.mrf.mxu0
        %v2202 = vadd.f32 %v2113, %v2201
        %2203 = vmatmul.bf16.gmra.mxu0 %v1057
        %v2204 = vpop.f32.mrf.mxu0
        %v2205 = vadd.f32 %v2116, %v2204
        %v2206 = vpop.f32.mrf.mxu0
        %v2207 = vadd.f32 %v2118, %v2206
        %2208 = vmatmul.bf16.gmra.mxu0 %v1060
        %v2209 = vpop.f32.mrf.mxu0
        %v2210 = vadd.f32 %v2121, %v2209
        %v2211 = vpop.f32.mrf.mxu0
        %v2212 = vadd.f32 %v2123, %v2211
        %2213 = vmatmul.bf16.gmra.mxu0 %v1063
        %v2214 = vpop.f32.mrf.mxu0
        %v2215 = vadd.f32 %v2126, %v2214
        %v2216 = vpop.f32.mrf.mxu0
        %v2217 = vadd.f32 %v2128, %v2216
        %2218 = vmatmul.bf16.gmra.mxu0 %v1066
        %v2219 = vpop.f32.mrf.mxu0
        %v2220 = vadd.f32 %v2131, %v2219
        %v2221 = vpop.f32.mrf.mxu0
        %v2222 = vadd.f32 %v2133, %v2221
        %2223 = vmatmul.bf16.gmra.mxu0 %v1069
        %v2224 = vpop.f32.mrf.mxu0
        %v2225 = vadd.f32 %v2136, %v2224
        %v2226 = vpop.f32.mrf.mxu0
        %v2227 = vadd.f32 %v2138, %v2226
        %2228 = vmatmul.bf16.gmra.mxu0 %v1072
        %v2229 = vpop.f32.mrf.mxu0
        %v2230 = vadd.f32 %v2141, %v2229
        %v2231 = vpop.f32.mrf.mxu0
        %v2232 = vadd.f32 %v2143, %v2231
        %2233 = vmatmul.bf16.gmra.mxu0 %v1075
        %v2234 = vpop.f32.mrf.mxu0
        %v2235 = vadd.f32 %v2146, %v2234
        %v2236 = vpop.f32.mrf.mxu0
        %v2237 = vadd.f32 %v2148, %v2236
        %2238 = vmatmul.bf16.gmra.mxu0 %v1078
        %v2239 = vpop.f32.mrf.mxu0
        %v2240 = vadd.f32 %v2151, %v2239
        %v2241 = vpop.f32.mrf.mxu0
        %v2242 = vadd.f32 %v2153, %v2241
        %2243 = vmatmul.bf16.gmra.mxu0 %v1081
        %v2244 = vpop.f32.mrf.mxu0
        %v2245 = vadd.f32 %v2156, %v2244
        %v2246 = vpop.f32.mrf.mxu0
        %v2247 = vadd.f32 %v2158, %v2246
        %2248 = vmatmul.bf16.gmra.mxu0 %v1084
        %v2249 = vpop.f32.mrf.mxu0
        %v2250 = vadd.f32 %v2161, %v2249
        %v2251 = vpop.f32.mrf.mxu0
        %v2252 = vadd.f32 %v2163, %v2251
        %2253 = vmatmul.bf16.gmra.mxu0 %v1087
        %v2254 = vpop.f32.mrf.mxu0
        %v2255 = vadd.f32 %v2166, %v2254
        %v2256 = vpop.f32.mrf.mxu0
        %v2257 = vadd.f32 %v2168, %v2256
        %2258 = vmatmul.bf16.gmra.mxu0 %v1090
        %v2259 = vpop.f32.mrf.mxu0
        %v2260 = vadd.f32 %v2171, %v2259
        %v2261 = vpop.f32.mrf.mxu0
        %v2262 = vadd.f32 %v2173, %v2261
        %2263 = vmatmul.bf16.gmra.mxu0 %v1131
        %v2264 = vpop.f32.mrf.mxu0
        %v2265 = vadd.f32 %v2176, %v2264
        %v2266 = vpop.f32.mrf.mxu0
        %v2267 = vadd.f32 %v2178, %v2266
        %2268 = vdwg.mxu0
        %2269 = vmatpush.bf16.msra.mxu0 %v1646
        %2270 = vmatpush.bf16.msra.mxu0 %v1645
        %2271 = vmatpush.bf16.msra.mxu0 %v1644
        %2272 = vmatpush.bf16.msra.mxu0 %v1643
        %2273 = vmatpush.bf16.msra.mxu0 %v1642
        %2274 = vmatpush.bf16.msra.mxu0 %v1641
        %2275 = vmatpush.bf16.msra.mxu0 %v1640
        %2276 = vmatpush.bf16.msra.mxu0 %v1639
        %2277 = vmatmul.bf16.gmra.mxu0 %v755
        %v2278 = vpop.f32.mrf.mxu0
        %v2279 = vadd.f32 %v2190, %v2278
        %v2280 = vpop.f32.mrf.mxu0
        %v2281 = vadd.f32 %v2192, %v2280
        %2282 = vmatmul.bf16.gmra.mxu0 %v756
        %v2283 = vpop.f32.mrf.mxu0
        %v2284 = vadd.f32 %v2195, %v2283
        %v2285 = vpop.f32.mrf.mxu0
        %v2286 = vadd.f32 %v2197, %v2285
        %2287 = vmatmul.bf16.gmra.mxu0 %v757
        %v2288 = vpop.f32.mrf.mxu0
        %v2289 = vadd.f32 %v2200, %v2288
        %v2290 = vpop.f32.mrf.mxu0
        %v2291 = vadd.f32 %v2202, %v2290
        %2292 = vmatmul.bf16.gmra.mxu0 %v758
        %v2293 = vpop.f32.mrf.mxu0
        %v2294 = vadd.f32 %v2205, %v2293
        %v2295 = vpop.f32.mrf.mxu0
        %v2296 = vadd.f32 %v2207, %v2295
        %2297 = vmatmul.bf16.gmra.mxu0 %v759
        %v2298 = vpop.f32.mrf.mxu0
        %v2299 = vadd.f32 %v2210, %v2298
        %v2300 = vpop.f32.mrf.mxu0
        %v2301 = vadd.f32 %v2212, %v2300
        %2302 = vmatmul.bf16.gmra.mxu0 %v760
        %v2303 = vpop.f32.mrf.mxu0
        %v2304 = vadd.f32 %v2215, %v2303
        %v2305 = vpop.f32.mrf.mxu0
        %v2306 = vadd.f32 %v2217, %v2305
        %2307 = vmatmul.bf16.gmra.mxu0 %v761
        %v2308 = vpop.f32.mrf.mxu0
        %v2309 = vadd.f32 %v2220, %v2308
        %v2310 = vpop.f32.mrf.mxu0
        %v2311 = vadd.f32 %v2222, %v2310
        %2312 = vmatmul.bf16.gmra.mxu0 %v762
        %v2313 = vpop.f32.mrf.mxu0
        %v2314 = vadd.f32 %v2225, %v2313
        %v2315 = vpop.f32.mrf.mxu0
        %v2316 = vadd.f32 %v2227, %v2315
        %2317 = vmatmul.bf16.gmra.mxu0 %v763
        %v2318 = vpop.f32.mrf.mxu0
        %v2319 = vadd.f32 %v2230, %v2318
        %v2320 = vpop.f32.mrf.mxu0
        %v2321 = vadd.f32 %v2232, %v2320
        %2322 = vmatmul.bf16.gmra.mxu0 %v764
        %v2323 = vpop.f32.mrf.mxu0
        %v2324 = vadd.f32 %v2235, %v2323
        %v2325 = vpop.f32.mrf.mxu0
        %v2326 = vadd.f32 %v2237, %v2325
        %2327 = vmatmul.bf16.gmra.mxu0 %v765
        %v2328 = vpop.f32.mrf.mxu0
        %v2329 = vadd.f32 %v2240, %v2328
        %v2330 = vpop.f32.mrf.mxu0
        %v2331 = vadd.f32 %v2242, %v2330
        %2332 = vmatmul.bf16.gmra.mxu0 %v766
        %v2333 = vpop.f32.mrf.mxu0
        %v2334 = vadd.f32 %v2245, %v2333
        %v2335 = vpop.f32.mrf.mxu0
        %v2336 = vadd.f32 %v2247, %v2335
        %2337 = vmatmul.bf16.gmra.mxu0 %v767
        %v2338 = vpop.f32.mrf.mxu0
        %v2339 = vadd.f32 %v2250, %v2338
        %v2340 = vpop.f32.mrf.mxu0
        %v2341 = vadd.f32 %v2252, %v2340
        %2342 = vmatmul.bf16.gmra.mxu0 %v768
        %v2343 = vpop.f32.mrf.mxu0
        %v2344 = vadd.f32 %v2255, %v2343
        %v2345 = vpop.f32.mrf.mxu0
        %v2346 = vadd.f32 %v2257, %v2345
        %2347 = vmatmul.bf16.gmra.mxu0 %v1111
        %v2348 = vpop.f32.mrf.mxu0
        %v2349 = vadd.f32 %v2260, %v2348
        %v2350 = vpop.f32.mrf.mxu0
        %v2351 = vadd.f32 %v2262, %v2350
        %2352 = vmatmul.bf16.gmra.mxu0 %v1137
        %v2353 = vpop.f32.mrf.mxu0
        %v2354 = vadd.f32 %v2265, %v2353
        %v2355 = vpop.f32.mrf.mxu0
        %v2356 = vadd.f32 %v2267, %v2355
        %2357 = vdwg.mxu0
        %2358 = vmatpush.bf16.msra.mxu0 %v1654
        %2359 = vmatpush.bf16.msra.mxu0 %v1653
        %2360 = vmatpush.bf16.msra.mxu0 %v1652
        %2361 = vmatpush.bf16.msra.mxu0 %v1651
        %2362 = vmatpush.bf16.msra.mxu0 %v1650
        %2363 = vmatpush.bf16.msra.mxu0 %v1649
        %2364 = vmatpush.bf16.msra.mxu0 %v1648
        %2365 = vmatpush.bf16.msra.mxu0 %v1647
        %2366 = vmatmul.bf16.gmra.mxu0 %v869
        %v2367 = vpop.f32.mrf.mxu0
        %v2368 = vadd.f32 %v2279, %v2367
        %v2369 = vpop.f32.mrf.mxu0
        %v2370 = vadd.f32 %v2281, %v2369
        %2371 = vmatmul.bf16.gmra.mxu0 %v881
        %v2372 = vpop.f32.mrf.mxu0
        %v2373 = vadd.f32 %v2284, %v2372
        %v2374 = vpop.f32.mrf.mxu0
        %v2375 = vadd.f32 %v2286, %v2374
        %2376 = vmatmul.bf16.gmra.mxu0 %v893
        %v2377 = vpop.f32.mrf.mxu0
        %v2378 = vadd.f32 %v2289, %v2377
        %v2379 = vpop.f32.mrf.mxu0
        %v2380 = vadd.f32 %v2291, %v2379
        %2381 = vmatmul.bf16.gmra.mxu0 %v905
        %v2382 = vpop.f32.mrf.mxu0
        %v2383 = vadd.f32 %v2294, %v2382
        %v2384 = vpop.f32.mrf.mxu0
        %v2385 = vadd.f32 %v2296, %v2384
        %2386 = vmatmul.bf16.gmra.mxu0 %v917
        %v2387 = vpop.f32.mrf.mxu0
        %v2388 = vadd.f32 %v2299, %v2387
        %v2389 = vpop.f32.mrf.mxu0
        %v2390 = vadd.f32 %v2301, %v2389
        %2391 = vmatmul.bf16.gmra.mxu0 %v929
        %v2392 = vpop.f32.mrf.mxu0
        %v2393 = vadd.f32 %v2304, %v2392
        %v2394 = vpop.f32.mrf.mxu0
        %v2395 = vadd.f32 %v2306, %v2394
        %2396 = vmatmul.bf16.gmra.mxu0 %v941
        %v2397 = vpop.f32.mrf.mxu0
        %v2398 = vadd.f32 %v2309, %v2397
        %v2399 = vpop.f32.mrf.mxu0
        %v2400 = vadd.f32 %v2311, %v2399
        %2401 = vmatmul.bf16.gmra.mxu0 %v953
        %v2402 = vpop.f32.mrf.mxu0
        %v2403 = vadd.f32 %v2314, %v2402
        %v2404 = vpop.f32.mrf.mxu0
        %v2405 = vadd.f32 %v2316, %v2404
        %2406 = vmatmul.bf16.gmra.mxu0 %v965
        %v2407 = vpop.f32.mrf.mxu0
        %v2408 = vadd.f32 %v2319, %v2407
        %v2409 = vpop.f32.mrf.mxu0
        %v2410 = vadd.f32 %v2321, %v2409
        %2411 = vmatmul.bf16.gmra.mxu0 %v977
        %v2412 = vpop.f32.mrf.mxu0
        %v2413 = vadd.f32 %v2324, %v2412
        %v2414 = vpop.f32.mrf.mxu0
        %v2415 = vadd.f32 %v2326, %v2414
        %2416 = vmatmul.bf16.gmra.mxu0 %v989
        %v2417 = vpop.f32.mrf.mxu0
        %v2418 = vadd.f32 %v2329, %v2417
        %v2419 = vpop.f32.mrf.mxu0
        %v2420 = vadd.f32 %v2331, %v2419
        %2421 = vmatmul.bf16.gmra.mxu0 %v1001
        %v2422 = vpop.f32.mrf.mxu0
        %v2423 = vadd.f32 %v2334, %v2422
        %v2424 = vpop.f32.mrf.mxu0
        %v2425 = vadd.f32 %v2336, %v2424
        %2426 = vmatmul.bf16.gmra.mxu0 %v1013
        %v2427 = vpop.f32.mrf.mxu0
        %v2428 = vadd.f32 %v2339, %v2427
        %v2429 = vpop.f32.mrf.mxu0
        %v2430 = vadd.f32 %v2341, %v2429
        %2431 = vmatmul.bf16.gmra.mxu0 %v1025
        %v2432 = vpop.f32.mrf.mxu0
        %v2433 = vadd.f32 %v2344, %v2432
        %v2434 = vpop.f32.mrf.mxu0
        %v2435 = vadd.f32 %v2346, %v2434
        %2436 = vmatmul.bf16.gmra.mxu0 %v1127
        %v2437 = vpop.f32.mrf.mxu0
        %v2438 = vadd.f32 %v2349, %v2437
        %v2439 = vpop.f32.mrf.mxu0
        %v2440 = vadd.f32 %v2351, %v2439
        %2441 = vmatmul.bf16.gmra.mxu0 %v1153
        %v2442 = vpop.f32.mrf.mxu0
        %v2443 = vadd.f32 %v2354, %v2442
        %v2444 = vpop.f32.mrf.mxu0
        %v2445 = vadd.f32 %v2356, %v2444
        %2446 = vdwg.mxu0
        %2447 = vmatpush.bf16.msra.mxu0 %v1662
        %2448 = vmatpush.bf16.msra.mxu0 %v1661
        %2449 = vmatpush.bf16.msra.mxu0 %v1660
        %2450 = vmatpush.bf16.msra.mxu0 %v1659
        %2451 = vmatpush.bf16.msra.mxu0 %v1658
        %2452 = vmatpush.bf16.msra.mxu0 %v1657
        %2453 = vmatpush.bf16.msra.mxu0 %v1656
        %2454 = vmatpush.bf16.msra.mxu0 %v1655
        %2455 = vmatmul.bf16.gmra.mxu0 %v1051
        %v2456 = vpop.f32.mrf.mxu0
        %v2457 = vadd.f32 %v2368, %v2456
        %v2458 = vpop.f32.mrf.mxu0
        %v2459 = vadd.f32 %v2370, %v2458
        %2460 = vmatmul.bf16.gmra.mxu0 %v1054
        %v2461 = vpop.f32.mrf.mxu0
        %v2462 = vadd.f32 %v2373, %v2461
        %v2463 = vpop.f32.mrf.mxu0
        %v2464 = vadd.f32 %v2375, %v2463
        %2465 = vmatmul.bf16.gmra.mxu0 %v1057
        %v2466 = vpop.f32.mrf.mxu0
        %v2467 = vadd.f32 %v2378, %v2466
        %v2468 = vpop.f32.mrf.mxu0
        %v2469 = vadd.f32 %v2380, %v2468
        %2470 = vmatmul.bf16.gmra.mxu0 %v1060
        %v2471 = vpop.f32.mrf.mxu0
        %v2472 = vadd.f32 %v2383, %v2471
        %v2473 = vpop.f32.mrf.mxu0
        %v2474 = vadd.f32 %v2385, %v2473
        %2475 = vmatmul.bf16.gmra.mxu0 %v1063
        %v2476 = vpop.f32.mrf.mxu0
        %v2477 = vadd.f32 %v2388, %v2476
        %v2478 = vpop.f32.mrf.mxu0
        %v2479 = vadd.f32 %v2390, %v2478
        %2480 = vmatmul.bf16.gmra.mxu0 %v1066
        %v2481 = vpop.f32.mrf.mxu0
        %v2482 = vadd.f32 %v2393, %v2481
        %v2483 = vpop.f32.mrf.mxu0
        %v2484 = vadd.f32 %v2395, %v2483
        %2485 = vmatmul.bf16.gmra.mxu0 %v1069
        %v2486 = vpop.f32.mrf.mxu0
        %v2487 = vadd.f32 %v2398, %v2486
        %v2488 = vpop.f32.mrf.mxu0
        %v2489 = vadd.f32 %v2400, %v2488
        %2490 = vmatmul.bf16.gmra.mxu0 %v1072
        %v2491 = vpop.f32.mrf.mxu0
        %v2492 = vadd.f32 %v2403, %v2491
        %v2493 = vpop.f32.mrf.mxu0
        %v2494 = vadd.f32 %v2405, %v2493
        %2495 = vmatmul.bf16.gmra.mxu0 %v1075
        %v2496 = vpop.f32.mrf.mxu0
        %v2497 = vadd.f32 %v2408, %v2496
        %v2498 = vpop.f32.mrf.mxu0
        %v2499 = vadd.f32 %v2410, %v2498
        %2500 = vmatmul.bf16.gmra.mxu0 %v1078
        %v2501 = vpop.f32.mrf.mxu0
        %v2502 = vadd.f32 %v2413, %v2501
        %v2503 = vpop.f32.mrf.mxu0
        %v2504 = vadd.f32 %v2415, %v2503
        %2505 = vmatmul.bf16.gmra.mxu0 %v1081
        %v2506 = vpop.f32.mrf.mxu0
        %v2507 = vadd.f32 %v2418, %v2506
        %v2508 = vpop.f32.mrf.mxu0
        %v2509 = vadd.f32 %v2420, %v2508
        %2510 = vmatmul.bf16.gmra.mxu0 %v1084
        %v2511 = vpop.f32.mrf.mxu0
        %v2512 = vadd.f32 %v2423, %v2511
        %v2513 = vpop.f32.mrf.mxu0
        %v2514 = vadd.f32 %v2425, %v2513
        %2515 = vmatmul.bf16.gmra.mxu0 %v1087
        %v2516 = vpop.f32.mrf.mxu0
        %v2517 = vadd.f32 %v2428, %v2516
        %v2518 = vpop.f32.mrf.mxu0
        %v2519 = vadd.f32 %v2430, %v2518
        %2520 = vmatmul.bf16.gmra.mxu0 %v1090
        %v2521 = vpop.f32.mrf.mxu0
        %v2522 = vadd.f32 %v2433, %v2521
        %v2523 = vpop.f32.mrf.mxu0
        %v2524 = vadd.f32 %v2435, %v2523
        %2525 = vmatmul.bf16.gmra.mxu0 %v1131
        %v2526 = vpop.f32.mrf.mxu0
        %v2527 = vadd.f32 %v2438, %v2526
        %v2528 = vpop.f32.mrf.mxu0
        %v2529 = vadd.f32 %v2440, %v2528
        %2530 = vmatmul.bf16.gmra.mxu0 %v1157
        %v2531 = vpop.f32.mrf.mxu0
        %v2532 = vadd.f32 %v2443, %v2531
        %v2533 = vpop.f32.mrf.mxu0
        %v2534 = vadd.f32 %v2445, %v2533
        %2535 = vdwg.mxu0
        %v2536 = vld [vmem:[%s2] sm:$0x1]
        %v2538 = vperm.slane %v2536, 0
        %v2540 = vmul.f32 %v2457, %v2538
        %v2541 = vmul.f32 %v2459, %v2538
        %v2542 = vmul.f32 %v2462, %v2538
        %v2543 = vmul.f32 %v2464, %v2538
        %v2544 = vmul.f32 %v2467, %v2538
        %v2545 = vmul.f32 %v2469, %v2538
        %v2546 = vmul.f32 %v2472, %v2538
        %v2547 = vmul.f32 %v2474, %v2538
        %v2548 = vmul.f32 %v2477, %v2538
        %v2549 = vmul.f32 %v2479, %v2538
        %v2550 = vmul.f32 %v2482, %v2538
        %v2551 = vmul.f32 %v2484, %v2538
        %v2552 = vmul.f32 %v2487, %v2538
        %v2553 = vmul.f32 %v2489, %v2538
        %v2554 = vmul.f32 %v2492, %v2538
        %v2555 = vmul.f32 %v2494, %v2538
        %v2556 = vmul.f32 %v2497, %v2538
        %v2557 = vmul.f32 %v2499, %v2538
        %v2558 = vmul.f32 %v2502, %v2538
        %v2559 = vmul.f32 %v2504, %v2538
        %v2560 = vmul.f32 %v2507, %v2538
        %v2561 = vmul.f32 %v2509, %v2538
        %v2562 = vmul.f32 %v2512, %v2538
        %v2563 = vmul.f32 %v2514, %v2538
        %v2564 = vmul.f32 %v2517, %v2538
        %v2565 = vmul.f32 %v2519, %v2538
        %v2566 = vmul.f32 %v2522, %v2538
        %v2567 = vmul.f32 %v2524, %v2538
        %v2568 = vmul.f32 %v2527, %v2538
        %v2569 = vmul.f32 %v2529, %v2538
        %v2570 = vmul.f32 %v2532, %v2538
        %v2571 = vmul.f32 %v2534, %v2538
        %v2572 = vld [vmem:[%s3] sm:$0x1]
        %v2574 = vperm.slane %v2572, 0
        %v2576 = vadd.f32 %v2540, %v2574
        %v2577 = vadd.f32 %v2541, %v2574
        %v2578 = vadd.f32 %v2542, %v2574
        %v2579 = vadd.f32 %v2543, %v2574
        %v2580 = vadd.f32 %v2544, %v2574
        %v2581 = vadd.f32 %v2545, %v2574
        %v2582 = vadd.f32 %v2546, %v2574
        %v2583 = vadd.f32 %v2547, %v2574
        %v2584 = vadd.f32 %v2548, %v2574
        %v2585 = vadd.f32 %v2549, %v2574
        %v2586 = vadd.f32 %v2550, %v2574
        %v2587 = vadd.f32 %v2551, %v2574
        %v2588 = vadd.f32 %v2552, %v2574
        %v2589 = vadd.f32 %v2553, %v2574
        %v2590 = vadd.f32 %v2554, %v2574
        %v2591 = vadd.f32 %v2555, %v2574
        %v2592 = vadd.f32 %v2556, %v2574
        %v2593 = vadd.f32 %v2557, %v2574
        %v2594 = vadd.f32 %v2558, %v2574
        %v2595 = vadd.f32 %v2559, %v2574
        %v2596 = vadd.f32 %v2560, %v2574
        %v2597 = vadd.f32 %v2561, %v2574
        %v2598 = vadd.f32 %v2562, %v2574
        %v2599 = vadd.f32 %v2563, %v2574
        %v2600 = vadd.f32 %v2564, %v2574
        %v2601 = vadd.f32 %v2565, %v2574
        %v2602 = vadd.f32 %v2566, %v2574
        %v2603 = vadd.f32 %v2567, %v2574
        %v2604 = vadd.f32 %v2568, %v2574
        %v2605 = vadd.f32 %v2569, %v2574
        %v2606 = vadd.f32 %v2570, %v2574
        %v2607 = vadd.f32 %v2571, %v2574
        %v2608 = vmax.f32 %v2576, 0.0
        %v2609 = vmax.f32 %v2577, 0.0
        %v2610 = vmax.f32 %v2578, 0.0
        %v2611 = vmax.f32 %v2579, 0.0
        %v2612 = vmax.f32 %v2580, 0.0
        %v2613 = vmax.f32 %v2581, 0.0
        %v2614 = vmax.f32 %v2582, 0.0
        %v2615 = vmax.f32 %v2583, 0.0
        %v2616 = vmax.f32 %v2584, 0.0
        %v2617 = vmax.f32 %v2585, 0.0
        %v2618 = vmax.f32 %v2586, 0.0
        %v2619 = vmax.f32 %v2587, 0.0
        %v2620 = vmax.f32 %v2588, 0.0
        %v2621 = vmax.f32 %v2589, 0.0
        %v2622 = vmax.f32 %v2590, 0.0
        %v2623 = vmax.f32 %v2591, 0.0
        %v2624 = vmax.f32 %v2592, 0.0
        %v2625 = vmax.f32 %v2593, 0.0
        %v2626 = vmax.f32 %v2594, 0.0
        %v2627 = vmax.f32 %v2595, 0.0
        %v2628 = vmax.f32 %v2596, 0.0
        %v2629 = vmax.f32 %v2597, 0.0
        %v2630 = vmax.f32 %v2598, 0.0
        %v2631 = vmax.f32 %v2599, 0.0
        %v2632 = vmax.f32 %v2600, 0.0
        %v2633 = vmax.f32 %v2601, 0.0
        %v2634 = vmax.f32 %v2602, 0.0
        %v2635 = vmax.f32 %v2603, 0.0
        %v2636 = vmax.f32 %v2604, 0.0
        %v2637 = vmax.f32 %v2605, 0.0
        %v2638 = vmax.f32 %v2606, 0.0
        %v2639 = vmax.f32 %v2607, 0.0
        %2640 = vst [vmem:[#allocation3] sm:$0xff] 0.0
        %2641 = vst [vmem:[#allocation3 + $0x8] sm:$0xff] 0.0
        %2642 = vst [vmem:[#allocation3 + $0x10] sm:$0x3] 0.0
        %2643 = vst [vmem:[#allocation3 + $0x18] sm:$0xff] 0.0
        %2644 = vst [vmem:[#allocation3 + $0x20] sm:$0xff] 0.0
        %2645 = vst [vmem:[#allocation3 + $0x28] sm:$0x3] 0.0
        %2646 = vst [vmem:[#allocation3 + $0x30] sm:$0xff] 0.0
        %2647 = vst [vmem:[#allocation3 + $0x38] sm:$0xff] 0.0
        %2648 = vst [vmem:[#allocation3 + $0x40] sm:$0x3] 0.0
        %2649 = vst [vmem:[#allocation3 + $0x48] sm:$0xff] 0.0
        %2650 = vst [vmem:[#allocation3 + $0x50] sm:$0xff] 0.0
        %2651 = vst [vmem:[#allocation3 + $0x58] sm:$0x3] 0.0
        %2652 = vst [vmem:[#allocation3 + $0x60] sm:$0xff] 0.0
        %2653 = vst [vmem:[#allocation3 + $0x68] sm:$0xff] 0.0
        %2654 = vst [vmem:[#allocation3 + $0x70] sm:$0x3] 0.0
        %2655 = vst [vmem:[#allocation3 + $0x78] sm:$0xff] 0.0
        %2656 = vst [vmem:[#allocation3 + $0x80] sm:$0xff] 0.0
        %2657 = vst [vmem:[#allocation3 + $0x88] sm:$0x3] 0.0
        %2658 = vst [vmem:[#allocation3 + $0x90] sm:$0xff] 0.0
        %2659 = vst [vmem:[#allocation3 + $0x98] sm:$0xff] 0.0
        %2660 = vst [vmem:[#allocation3 + $0xa0] sm:$0x3] 0.0
        %2661 = vst [vmem:[#allocation3 + $0xa8] sm:$0xff] 0.0
        %2662 = vst [vmem:[#allocation3 + $0xb0] sm:$0xff] 0.0
        %2663 = vst [vmem:[#allocation3 + $0xb8] sm:$0x3] 0.0
        %2664 = vst [vmem:[#allocation3 + $0xc0] sm:$0xff] 0.0
        %2665 = vst [vmem:[#allocation3 + $0xc8] sm:$0xff] 0.0
        %2666 = vst [vmem:[#allocation3 + $0xd0] sm:$0x3] 0.0
        %2667 = vst [vmem:[#allocation3 + $0xd8] sm:$0xff] 0.0
        %2668 = vst [vmem:[#allocation3 + $0xe0] sm:$0xff] 0.0
        %2669 = vst [vmem:[#allocation3 + $0xe8] sm:$0x3] 0.0
        %2670 = vst [vmem:[#allocation3 + $0xf0] sm:$0xff] 0.0
        %2671 = vst [vmem:[#allocation3 + $0xf8] sm:$0xff] 0.0
        %2672 = vst [vmem:[#allocation3 + $0x100] sm:$0x3] 0.0
        %2673 = vst [vmem:[#allocation3 + $0x108] sm:$0xff] 0.0
        %2674 = vst [vmem:[#allocation3 + $0x110] sm:$0xff] 0.0
        %2675 = vst [vmem:[#allocation3 + $0x118] sm:$0x3] 0.0
        %2676 = vst [vmem:[#allocation3 + $0x120] sm:$0xff] 0.0
        %2677 = vst [vmem:[#allocation3 + $0x128] sm:$0xff] 0.0
        %2678 = vst [vmem:[#allocation3 + $0x130] sm:$0x3] 0.0
        %2679 = vst [vmem:[#allocation3 + $0x138] sm:$0xff] 0.0
        %2680 = vst [vmem:[#allocation3 + $0x140] sm:$0xff] 0.0
        %2681 = vst [vmem:[#allocation3 + $0x148] sm:$0x3] 0.0
        %2682 = vst [vmem:[#allocation3 + $0x150] sm:$0xff] 0.0
        %2683 = vst [vmem:[#allocation3 + $0x158] sm:$0xff] 0.0
        %2684 = vst [vmem:[#allocation3 + $0x160] sm:$0x3] 0.0
        %2685 = vst [vmem:[#allocation3 + $0x168] sm:$0xff] 0.0
        %2686 = vst [vmem:[#allocation3 + $0x170] sm:$0xff] 0.0
        %2687 = vst [vmem:[#allocation3 + $0x178] sm:$0x3] 0.0
        %2688 = vst [vmem:[#allocation3 + $0x180] sm:$0xff] 0.0
        %2689 = vst [vmem:[#allocation3 + $0x188] sm:$0xff] 0.0
        %2690 = vst [vmem:[#allocation3 + $0x190] sm:$0x3] 0.0
        %2691 = vst [vmem:[#allocation3 + $0x198] sm:$0xff] 0.0
        %2692 = vst [vmem:[#allocation3 + $0x1a0] sm:$0xff] 0.0
        %2693 = vst [vmem:[#allocation3 + $0x1a8] sm:$0x3] 0.0
        %s2694 = scalar_lea.vmem [#allocation3], 24
        %2695 = vst [vmem:[%s2694 + $0x1] sm:$0xff] %v2608
        %2696 = vst [vmem:[%s2694 + $0x9] sm:$0xff] %v2609
        %2697 = vst [vmem:[%s2694 + $0x19] sm:$0xff] %v2610
        %2698 = vst [vmem:[%s2694 + $0x21] sm:$0xff] %v2611
        %2699 = vst [vmem:[%s2694 + $0x31] sm:$0xff] %v2612
        %2700 = vst [vmem:[%s2694 + $0x39] sm:$0xff] %v2613
        %2701 = vst [vmem:[%s2694 + $0x49] sm:$0xff] %v2614
        %2702 = vst [vmem:[%s2694 + $0x51] sm:$0xff] %v2615
        %2703 = vst [vmem:[%s2694 + $0x61] sm:$0xff] %v2616
        %2704 = vst [vmem:[%s2694 + $0x69] sm:$0xff] %v2617
        %2705 = vst [vmem:[%s2694 + $0x79] sm:$0xff] %v2618
        %2706 = vst [vmem:[%s2694 + $0x81] sm:$0xff] %v2619
        %2707 = vst [vmem:[%s2694 + $0x91] sm:$0xff] %v2620
        %2708 = vst [vmem:[%s2694 + $0x99] sm:$0xff] %v2621
        %2709 = vst [vmem:[%s2694 + $0xa9] sm:$0xff] %v2622
        %2710 = vst [vmem:[%s2694 + $0xb1] sm:$0xff] %v2623
        %2711 = vst [vmem:[%s2694 + $0xc1] sm:$0xff] %v2624
        %2712 = vst [vmem:[%s2694 + $0xc9] sm:$0xff] %v2625
        %2713 = vst [vmem:[%s2694 + $0xd9] sm:$0xff] %v2626
        %2714 = vst [vmem:[%s2694 + $0xe1] sm:$0xff] %v2627
        %2715 = vst [vmem:[%s2694 + $0xf1] sm:$0xff] %v2628
        %2716 = vst [vmem:[%s2694 + $0xf9] sm:$0xff] %v2629
        %2717 = vst [vmem:[%s2694 + $0x109] sm:$0xff] %v2630
        %2718 = vst [vmem:[%s2694 + $0x111] sm:$0xff] %v2631
        %2719 = vst [vmem:[%s2694 + $0x121] sm:$0xff] %v2632
        %2720 = vst [vmem:[%s2694 + $0x129] sm:$0xff] %v2633
        %2721 = vst [vmem:[%s2694 + $0x139] sm:$0xff] %v2634
        %2722 = vst [vmem:[%s2694 + $0x141] sm:$0xff] %v2635
        %2723 = vst [vmem:[%s2694 + $0x151] sm:$0xff] %v2636
        %2724 = vst [vmem:[%s2694 + $0x159] sm:$0xff] %v2637
        %2725 = vst [vmem:[%s2694 + $0x169] sm:$0xff] %v2638
        %2726 = vst [vmem:[%s2694 + $0x171] sm:$0xff] %v2639
        %v2727 = vld [vmem:[#allocation3] sm:$0xff]
        %v2728 = vld [vmem:[#allocation3 + $0x8] sm:$0xff]
        %v2729 = vld [vmem:[#allocation3 + $0x10] sm:$0x3]
        %v2730 = vld [vmem:[#allocation3 + $0x18] sm:$0xff]
        %v2731 = vld [vmem:[#allocation3 + $0x20] sm:$0xff]
        %v2732 = vld [vmem:[#allocation3 + $0x28] sm:$0x3]
        %v2733 = vld [vmem:[#allocation3 + $0x30] sm:$0xff]
        %v2734 = vld [vmem:[#allocation3 + $0x38] sm:$0xff]
        %v2735 = vld [vmem:[#allocation3 + $0x40] sm:$0x3]
        %v2736 = vld [vmem:[#allocation3 + $0x48] sm:$0xff]
        %v2737 = vld [vmem:[#allocation3 + $0x50] sm:$0xff]
        %v2738 = vld [vmem:[#allocation3 + $0x58] sm:$0x3]
        %v2739 = vld [vmem:[#allocation3 + $0x60] sm:$0xff]
        %v2740 = vld [vmem:[#allocation3 + $0x68] sm:$0xff]
        %v2741 = vld [vmem:[#allocation3 + $0x70] sm:$0x3]
        %v2742 = vld [vmem:[#allocation3 + $0x78] sm:$0xff]
        %v2743 = vld [vmem:[#allocation3 + $0x80] sm:$0xff]
        %v2744 = vld [vmem:[#allocation3 + $0x88] sm:$0x3]
        %v2745 = vld [vmem:[#allocation3 + $0x90] sm:$0xff]
        %v2746 = vld [vmem:[#allocation3 + $0x98] sm:$0xff]
        %v2747 = vld [vmem:[#allocation3 + $0xa0] sm:$0x3]
        %v2748 = vld [vmem:[#allocation3 + $0xa8] sm:$0xff]
        %v2749 = vld [vmem:[#allocation3 + $0xb0] sm:$0xff]
        %v2750 = vld [vmem:[#allocation3 + $0xb8] sm:$0x3]
        %v2751 = vld [vmem:[#allocation3 + $0xc0] sm:$0xff]
        %v2752 = vld [vmem:[#allocation3 + $0xc8] sm:$0xff]
        %v2753 = vld [vmem:[#allocation3 + $0xd0] sm:$0x3]
        %v2754 = vld [vmem:[#allocation3 + $0xd8] sm:$0xff]
        %v2755 = vld [vmem:[#allocation3 + $0xe0] sm:$0xff]
        %v2756 = vld [vmem:[#allocation3 + $0xe8] sm:$0x3]
        %v2757 = vld [vmem:[#allocation3 + $0xf0] sm:$0xff]
        %v2758 = vld [vmem:[#allocation3 + $0xf8] sm:$0xff]
        %v2759 = vld [vmem:[#allocation3 + $0x100] sm:$0x3]
        %v2760 = vld [vmem:[#allocation3 + $0x108] sm:$0xff]
        %v2761 = vld [vmem:[#allocation3 + $0x110] sm:$0xff]
        %v2762 = vld [vmem:[#allocation3 + $0x118] sm:$0x3]
        %v2763 = vld [vmem:[#allocation3 + $0x120] sm:$0xff]
        %v2764 = vld [vmem:[#allocation3 + $0x128] sm:$0xff]
        %v2765 = vld [vmem:[#allocation3 + $0x130] sm:$0x3]
        %v2766 = vld [vmem:[#allocation3 + $0x138] sm:$0xff]
        %v2767 = vld [vmem:[#allocation3 + $0x140] sm:$0xff]
        %v2768 = vld [vmem:[#allocation3 + $0x148] sm:$0x3]
        %v2769 = vld [vmem:[#allocation3 + $0x150] sm:$0xff]
        %v2770 = vld [vmem:[#allocation3 + $0x158] sm:$0xff]
        %v2771 = vld [vmem:[#allocation3 + $0x160] sm:$0x3]
        %v2772 = vld [vmem:[#allocation3 + $0x168] sm:$0xff]
        %v2773 = vld [vmem:[#allocation3 + $0x170] sm:$0xff]
        %v2774 = vld [vmem:[#allocation3 + $0x178] sm:$0x3]
        %v2775 = vld [vmem:[#allocation3 + $0x180] sm:$0xff]
        %v2776 = vld [vmem:[#allocation3 + $0x188] sm:$0xff]
        %v2777 = vld [vmem:[#allocation3 + $0x190] sm:$0x3]
        %v2778 = vld [vmem:[#allocation3 + $0x198] sm:$0xff]
        %v2779 = vld [vmem:[#allocation3 + $0x1a0] sm:$0xff]
        %v2780 = vld [vmem:[#allocation3 + $0x1a8] sm:$0x3]
        %v2781 = vpack.c.bf16 %v2727, %v2727
        %v2782 = vpack.c.bf16 %v2728, %v2728
        %v2783 = vpack.c.bf16 %v2729, %v2729
        %v2784 = vpack.c.bf16 %v2730, %v2730
        %v2785 = vpack.c.bf16 %v2731, %v2731
        %v2786 = vpack.c.bf16 %v2732, %v2732
        %v2787 = vpack.c.bf16 %v2733, %v2733
        %v2788 = vpack.c.bf16 %v2734, %v2734
        %v2789 = vpack.c.bf16 %v2735, %v2735
        %v2790 = vpack.c.bf16 %v2736, %v2736
        %v2791 = vpack.c.bf16 %v2737, %v2737
        %v2792 = vpack.c.bf16 %v2738, %v2738
        %v2793 = vpack.c.bf16 %v2739, %v2739
        %v2794 = vpack.c.bf16 %v2740, %v2740
        %v2795 = vpack.c.bf16 %v2741, %v2741
        %v2796 = vpack.c.bf16 %v2742, %v2742
        %v2797 = vpack.c.bf16 %v2743, %v2743
        %v2798 = vpack.c.bf16 %v2744, %v2744
        %v2799 = vpack.c.bf16 %v2745, %v2745
        %v2800 = vpack.c.bf16 %v2746, %v2746
        %v2801 = vpack.c.bf16 %v2747, %v2747
        %v2802 = vpack.c.bf16 %v2748, %v2748
        %v2803 = vpack.c.bf16 %v2749, %v2749
        %v2804 = vpack.c.bf16 %v2750, %v2750
        %v2805 = vpack.c.bf16 %v2751, %v2751
        %v2806 = vpack.c.bf16 %v2752, %v2752
        %v2807 = vpack.c.bf16 %v2753, %v2753
        %v2808 = vpack.c.bf16 %v2754, %v2754
        %v2809 = vpack.c.bf16 %v2755, %v2755
        %v2810 = vpack.c.bf16 %v2756, %v2756
        %v2811 = vpack.c.bf16 %v2757, %v2757
        %v2812 = vpack.c.bf16 %v2758, %v2758
        %v2813 = vpack.c.bf16 %v2759, %v2759
        %v2814 = vpack.c.bf16 %v2760, %v2760
        %v2815 = vpack.c.bf16 %v2761, %v2761
        %v2816 = vpack.c.bf16 %v2762, %v2762
        %v2817 = vpack.c.bf16 %v2763, %v2763
        %v2818 = vpack.c.bf16 %v2764, %v2764
        %v2819 = vpack.c.bf16 %v2765, %v2765
        %v2820 = vpack.c.bf16 %v2766, %v2766
        %v2821 = vpack.c.bf16 %v2767, %v2767
        %v2822 = vpack.c.bf16 %v2768, %v2768
        %v2823 = vpack.c.bf16 %v2769, %v2769
        %v2824 = vpack.c.bf16 %v2770, %v2770
        %v2825 = vpack.c.bf16 %v2771, %v2771
        %v2826 = vpack.c.bf16 %v2772, %v2772
        %v2827 = vpack.c.bf16 %v2773, %v2773
        %v2828 = vpack.c.bf16 %v2774, %v2774
        %v2829 = vpack.c.bf16 %v2775, %v2775
        %v2830 = vpack.c.bf16 %v2776, %v2776
        %v2831 = vpack.c.bf16 %v2777, %v2777
        %v2832 = vpack.c.bf16 %v2778, %v2778
        %v2833 = vpack.c.bf16 %v2779, %v2779
        %v2834 = vpack.c.bf16 %v2780, %v2780
        %v2867 = vunpack.c.l.b16 %v2781
        %v2868 = vunpack.c.l.b16 %v2782
        %v2869 = vunpack.c.l.b16 %v2784
        %v2870 = vunpack.c.l.b16 %v2785
        %v2871 = vunpack.c.l.b16 %v2787
        %v2872 = vunpack.c.l.b16 %v2788
        %v2873 = vunpack.c.l.b16 %v2790
        %v2874 = vunpack.c.l.b16 %v2791
        %v2875 = vunpack.c.l.b16 %v2793
        %v2876 = vunpack.c.l.b16 %v2794
        %v2877 = vunpack.c.l.b16 %v2796
        %v2878 = vunpack.c.l.b16 %v2797
        %v2879 = vunpack.c.l.b16 %v2799
        %v2880 = vunpack.c.l.b16 %v2800
        %v2881 = vunpack.c.l.b16 %v2802
        %v2882 = vunpack.c.l.b16 %v2803
        %v2883 = vunpack.c.l.b16 %v2805
        %v2884 = vunpack.c.l.b16 %v2806
        %v2885 = vunpack.c.l.b16 %v2808
        %v2886 = vunpack.c.l.b16 %v2809
        %v2887 = vunpack.c.l.b16 %v2811
        %v2888 = vunpack.c.l.b16 %v2812
        %v2889 = vunpack.c.l.b16 %v2814
        %v2890 = vunpack.c.l.b16 %v2815
        %v2891 = vunpack.c.l.b16 %v2817
        %v2892 = vunpack.c.l.b16 %v2818
        %v2893 = vunpack.c.l.b16 %v2820
        %v2894 = vunpack.c.l.b16 %v2821
        %v2895 = vunpack.c.l.b16 %v2823
        %v2896 = vunpack.c.l.b16 %v2824
        %v2897 = vunpack.c.l.b16 %v2826
        %v2898 = vunpack.c.l.b16 %v2827
        %v2899 = vpack.c.b16 %v2868, %v2867
        %v2900 = vpack.c.b16 %v2870, %v2869
        %v2901 = vpack.c.b16 %v2872, %v2871
        %v2902 = vpack.c.b16 %v2874, %v2873
        %v2903 = vpack.c.b16 %v2876, %v2875
        %v2904 = vpack.c.b16 %v2878, %v2877
        %v2905 = vpack.c.b16 %v2880, %v2879
        %v2906 = vpack.c.b16 %v2882, %v2881
        %v2907 = vpack.c.b16 %v2884, %v2883
        %v2908 = vpack.c.b16 %v2886, %v2885
        %v2909 = vpack.c.b16 %v2888, %v2887
        %v2910 = vpack.c.b16 %v2890, %v2889
        %v2911 = vpack.c.b16 %v2892, %v2891
        %v2912 = vpack.c.b16 %v2894, %v2893
        %v2913 = vpack.c.b16 %v2896, %v2895
        %v2914 = vpack.c.b16 %v2898, %v2897
        %v2947 = vunpack.c.l.b16 %v2783
        %v2948 = vunpack.c.l.b16 %v2786
        %v2949 = vunpack.c.l.b16 %v2789
        %v2950 = vunpack.c.l.b16 %v2792
        %v2951 = vunpack.c.l.b16 %v2795
        %v2952 = vunpack.c.l.b16 %v2798
        %v2953 = vunpack.c.l.b16 %v2801
        %v2954 = vunpack.c.l.b16 %v2804
        %v2955 = vunpack.c.l.b16 %v2807
        %v2956 = vunpack.c.l.b16 %v2810
        %v2957 = vunpack.c.l.b16 %v2813
        %v2958 = vunpack.c.l.b16 %v2816
        %v2959 = vunpack.c.l.b16 %v2819
        %v2960 = vunpack.c.l.b16 %v2822
        %v2961 = vunpack.c.l.b16 %v2825
        %v2962 = vunpack.c.l.b16 %v2828
        %v2963 = vpack.c.b16 %v2947, %v2947
        %v2964 = vpack.c.b16 %v2948, %v2948
        %v2965 = vpack.c.b16 %v2949, %v2949
        %v2966 = vpack.c.b16 %v2950, %v2950
        %v2967 = vpack.c.b16 %v2951, %v2951
        %v2968 = vpack.c.b16 %v2952, %v2952
        %v2969 = vpack.c.b16 %v2953, %v2953
        %v2970 = vpack.c.b16 %v2954, %v2954
        %v2971 = vpack.c.b16 %v2955, %v2955
        %v2972 = vpack.c.b16 %v2956, %v2956
        %v2973 = vpack.c.b16 %v2957, %v2957
        %v2974 = vpack.c.b16 %v2958, %v2958
        %v2975 = vpack.c.b16 %v2959, %v2959
        %v2976 = vpack.c.b16 %v2960, %v2960
        %v2977 = vpack.c.b16 %v2961, %v2961
        %v2978 = vpack.c.b16 %v2962, %v2962
        %v2980 = vshrl.u32 %v2899, 16
        %v2982 = vshll.u32 %v2899, 16
        %v2984 = vrot.slane %v2982, 1
        %v2985 = vor.u32 %v2980, %v2984
        %v2987 = vshll.u32 %v2963, 16
        %v2989 = vrot.slane %v2987, 1
        %v2990 = vsel %vm833, %v2985, %v2989
        %v2992 = vshrl.u32 %v2900, 16
        %v2994 = vshll.u32 %v2900, 16
        %v2996 = vrot.slane %v2994, 1
        %v2997 = vor.u32 %v2992, %v2996
        %v2999 = vshll.u32 %v2964, 16
        %v3001 = vrot.slane %v2999, 1
        %v3002 = vsel %vm833, %v2997, %v3001
        %v3004 = vshrl.u32 %v2901, 16
        %v3006 = vshll.u32 %v2901, 16
        %v3008 = vrot.slane %v3006, 1
        %v3009 = vor.u32 %v3004, %v3008
        %v3011 = vshll.u32 %v2965, 16
        %v3013 = vrot.slane %v3011, 1
        %v3014 = vsel %vm833, %v3009, %v3013
        %v3016 = vshrl.u32 %v2902, 16
        %v3018 = vshll.u32 %v2902, 16
        %v3020 = vrot.slane %v3018, 1
        %v3021 = vor.u32 %v3016, %v3020
        %v3023 = vshll.u32 %v2966, 16
        %v3025 = vrot.slane %v3023, 1
        %v3026 = vsel %vm833, %v3021, %v3025
        %v3028 = vshrl.u32 %v2903, 16
        %v3030 = vshll.u32 %v2903, 16
        %v3032 = vrot.slane %v3030, 1
        %v3033 = vor.u32 %v3028, %v3032
        %v3035 = vshll.u32 %v2967, 16
        %v3037 = vrot.slane %v3035, 1
        %v3038 = vsel %vm833, %v3033, %v3037
        %v3040 = vshrl.u32 %v2904, 16
        %v3042 = vshll.u32 %v2904, 16
        %v3044 = vrot.slane %v3042, 1
        %v3045 = vor.u32 %v3040, %v3044
        %v3047 = vshll.u32 %v2968, 16
        %v3049 = vrot.slane %v3047, 1
        %v3050 = vsel %vm833, %v3045, %v3049
        %v3052 = vshrl.u32 %v2905, 16
        %v3054 = vshll.u32 %v2905, 16
        %v3056 = vrot.slane %v3054, 1
        %v3057 = vor.u32 %v3052, %v3056
        %v3059 = vshll.u32 %v2969, 16
        %v3061 = vrot.slane %v3059, 1
        %v3062 = vsel %vm833, %v3057, %v3061
        %v3064 = vshrl.u32 %v2906, 16
        %v3066 = vshll.u32 %v2906, 16
        %v3068 = vrot.slane %v3066, 1
        %v3069 = vor.u32 %v3064, %v3068
        %v3071 = vshll.u32 %v2970, 16
        %v3073 = vrot.slane %v3071, 1
        %v3074 = vsel %vm833, %v3069, %v3073
        %v3076 = vshrl.u32 %v2907, 16
        %v3078 = vshll.u32 %v2907, 16
        %v3080 = vrot.slane %v3078, 1
        %v3081 = vor.u32 %v3076, %v3080
        %v3083 = vshll.u32 %v2971, 16
        %v3085 = vrot.slane %v3083, 1
        %v3086 = vsel %vm833, %v3081, %v3085
        %v3088 = vshrl.u32 %v2908, 16
        %v3090 = vshll.u32 %v2908, 16
        %v3092 = vrot.slane %v3090, 1
        %v3093 = vor.u32 %v3088, %v3092
        %v3095 = vshll.u32 %v2972, 16
        %v3097 = vrot.slane %v3095, 1
        %v3098 = vsel %vm833, %v3093, %v3097
        %v3100 = vshrl.u32 %v2909, 16
        %v3102 = vshll.u32 %v2909, 16
        %v3104 = vrot.slane %v3102, 1
        %v3105 = vor.u32 %v3100, %v3104
        %v3107 = vshll.u32 %v2973, 16
        %v3109 = vrot.slane %v3107, 1
        %v3110 = vsel %vm833, %v3105, %v3109
        %v3112 = vshrl.u32 %v2910, 16
        %v3114 = vshll.u32 %v2910, 16
        %v3116 = vrot.slane %v3114, 1
        %v3117 = vor.u32 %v3112, %v3116
        %v3119 = vshll.u32 %v2974, 16
        %v3121 = vrot.slane %v3119, 1
        %v3122 = vsel %vm833, %v3117, %v3121
        %v3124 = vshrl.u32 %v2911, 16
        %v3126 = vshll.u32 %v2911, 16
        %v3128 = vrot.slane %v3126, 1
        %v3129 = vor.u32 %v3124, %v3128
        %v3131 = vshll.u32 %v2975, 16
        %v3133 = vrot.slane %v3131, 1
        %v3134 = vsel %vm833, %v3129, %v3133
        %v3136 = vshrl.u32 %v2912, 16
        %v3138 = vshll.u32 %v2912, 16
        %v3140 = vrot.slane %v3138, 1
        %v3141 = vor.u32 %v3136, %v3140
        %v3143 = vshll.u32 %v2976, 16
        %v3145 = vrot.slane %v3143, 1
        %v3146 = vsel %vm833, %v3141, %v3145
        %v3148 = vshrl.u32 %v2913, 16
        %v3150 = vshll.u32 %v2913, 16
        %v3152 = vrot.slane %v3150, 1
        %v3153 = vor.u32 %v3148, %v3152
        %v3155 = vshll.u32 %v2977, 16
        %v3157 = vrot.slane %v3155, 1
        %v3158 = vsel %vm833, %v3153, %v3157
        %v3160 = vshrl.u32 %v2914, 16
        %v3162 = vshll.u32 %v2914, 16
        %v3164 = vrot.slane %v3162, 1
        %v3165 = vor.u32 %v3160, %v3164
        %v3167 = vshll.u32 %v2978, 16
        %v3169 = vrot.slane %v3167, 1
        %v3170 = vsel %vm833, %v3165, %v3169
        %v3187 = vrot.slane %v2899, 1
        %v3188 = vrot.slane %v2963, 1
        %v3189 = vsel %vm1042, %v3187, %v3188
        %v3190 = vrot.slane %v2900, 1
        %v3191 = vrot.slane %v2964, 1
        %v3192 = vsel %vm1042, %v3190, %v3191
        %v3193 = vrot.slane %v2901, 1
        %v3194 = vrot.slane %v2965, 1
        %v3195 = vsel %vm1042, %v3193, %v3194
        %v3196 = vrot.slane %v2902, 1
        %v3197 = vrot.slane %v2966, 1
        %v3198 = vsel %vm1042, %v3196, %v3197
        %v3199 = vrot.slane %v2903, 1
        %v3200 = vrot.slane %v2967, 1
        %v3201 = vsel %vm1042, %v3199, %v3200
        %v3202 = vrot.slane %v2904, 1
        %v3203 = vrot.slane %v2968, 1
        %v3204 = vsel %vm1042, %v3202, %v3203
        %v3205 = vrot.slane %v2905, 1
        %v3206 = vrot.slane %v2969, 1
        %v3207 = vsel %vm1042, %v3205, %v3206
        %v3208 = vrot.slane %v2906, 1
        %v3209 = vrot.slane %v2970, 1
        %v3210 = vsel %vm1042, %v3208, %v3209
        %v3211 = vrot.slane %v2907, 1
        %v3212 = vrot.slane %v2971, 1
        %v3213 = vsel %vm1042, %v3211, %v3212
        %v3214 = vrot.slane %v2908, 1
        %v3215 = vrot.slane %v2972, 1
        %v3216 = vsel %vm1042, %v3214, %v3215
        %v3217 = vrot.slane %v2909, 1
        %v3218 = vrot.slane %v2973, 1
        %v3219 = vsel %vm1042, %v3217, %v3218
        %v3220 = vrot.slane %v2910, 1
        %v3221 = vrot.slane %v2974, 1
        %v3222 = vsel %vm1042, %v3220, %v3221
        %v3223 = vrot.slane %v2911, 1
        %v3224 = vrot.slane %v2975, 1
        %v3225 = vsel %vm1042, %v3223, %v3224
        %v3226 = vrot.slane %v2912, 1
        %v3227 = vrot.slane %v2976, 1
        %v3228 = vsel %vm1042, %v3226, %v3227
        %v3229 = vrot.slane %v2913, 1
        %v3230 = vrot.slane %v2977, 1
        %v3231 = vsel %vm1042, %v3229, %v3230
        %v3232 = vrot.slane %v2914, 1
        %v3233 = vrot.slane %v2978, 1
        %v3234 = vsel %vm1042, %v3232, %v3233
        %v3253 = vunpack.c.l.b16 %v2829
        %v3254 = vunpack.c.l.b16 %v2830
        %v3255 = vpack.c.b16 %v3254, %v3253
        %v3258 = vunpack.c.l.b16 %v2831
        %v3259 = vpack.c.b16 %v3258, %v3258
        %v3261 = vshrl.u32 %v3255, 16
        %v3263 = vshll.u32 %v3255, 16
        %v3265 = vrot.slane %v3263, 1
        %v3266 = vor.u32 %v3261, %v3265
        %v3268 = vshll.u32 %v3259, 16
        %v3270 = vrot.slane %v3268, 1
        %v3271 = vsel %vm833, %v3266, %v3270
        %v3273 = vrot.slane %v3255, 1
        %v3274 = vrot.slane %v3259, 1
        %v3275 = vsel %vm1042, %v3273, %v3274
        %v3279 = vunpack.c.l.b16 %v2832
        %v3280 = vunpack.c.l.b16 %v2833
        %v3281 = vpack.c.b16 %v3280, %v3279
        %v3284 = vunpack.c.l.b16 %v2834
        %v3285 = vpack.c.b16 %v3284, %v3284
        %v3287 = vshrl.u32 %v3281, 16
        %v3289 = vshll.u32 %v3281, 16
        %v3291 = vrot.slane %v3289, 1
        %v3292 = vor.u32 %v3287, %v3291
        %v3294 = vshll.u32 %v3285, 16
        %v3296 = vrot.slane %v3294, 1
        %v3297 = vsel %vm833, %v3292, %v3296
        %v3299 = vrot.slane %v3281, 1
        %v3300 = vrot.slane %v3285, 1
        %v3301 = vsel %vm1042, %v3299, %v3300
        %v3303 = vld [vmem:[#allocation9] sm:$0xf]
        %v3304 = vld [vmem:[#allocation9 + $0x4] sm:$0xf]
        %v3305 = vld [vmem:[#allocation9 + $0x8] sm:$0xf]
        %v3306 = vld [vmem:[#allocation9 + $0xc] sm:$0xf]
        %v3307 = vld [vmem:[#allocation9 + $0x10] sm:$0xf]
        %v3308 = vld [vmem:[#allocation9 + $0x14] sm:$0xf]
        %v3309 = vld [vmem:[#allocation9 + $0x18] sm:$0xf]
        %v3310 = vld [vmem:[#allocation9 + $0x1c] sm:$0xf]
        %v3311 = vld [vmem:[#allocation9 + $0x20] sm:$0xf]
        %v3312 = vld [vmem:[#allocation9 + $0x24] sm:$0xf]
        %v3313 = vld [vmem:[#allocation9 + $0x28] sm:$0xf]
        %v3314 = vld [vmem:[#allocation9 + $0x2c] sm:$0xf]
        %v3315 = vld [vmem:[#allocation9 + $0x30] sm:$0xf]
        %v3316 = vld [vmem:[#allocation9 + $0x34] sm:$0xf]
        %v3317 = vld [vmem:[#allocation9 + $0x38] sm:$0xf]
        %v3318 = vld [vmem:[#allocation9 + $0x3c] sm:$0xf]
        %v3319 = vld [vmem:[#allocation9 + $0x40] sm:$0xf]
        %v3320 = vld [vmem:[#allocation9 + $0x44] sm:$0xf]
        %v3321 = vld [vmem:[#allocation9 + $0x48] sm:$0xf]
        %v3322 = vld [vmem:[#allocation9 + $0x4c] sm:$0xf]
        %v3323 = vld [vmem:[#allocation9 + $0x50] sm:$0xf]
        %v3324 = vld [vmem:[#allocation9 + $0x54] sm:$0xf]
        %v3325 = vld [vmem:[#allocation9 + $0x58] sm:$0xf]
        %v3326 = vld [vmem:[#allocation9 + $0x5c] sm:$0xf]
        %v3327 = vld [vmem:[#allocation9 + $0x60] sm:$0xf]
        %v3328 = vld [vmem:[#allocation9 + $0x64] sm:$0xf]
        %v3329 = vld [vmem:[#allocation9 + $0x68] sm:$0xf]
        %v3330 = vld [vmem:[#allocation9 + $0x6c] sm:$0xf]
        %v3331 = vld [vmem:[#allocation9 + $0x70] sm:$0xf]
        %v3332 = vld [vmem:[#allocation9 + $0x74] sm:$0xf]
        %v3333 = vld [vmem:[#allocation9 + $0x78] sm:$0xf]
        %v3334 = vld [vmem:[#allocation9 + $0x7c] sm:$0xf]
        %v3335 = vld [vmem:[#allocation9 + $0x80] sm:$0xf]
        %v3336 = vld [vmem:[#allocation9 + $0x84] sm:$0xf]
        %v3337 = vld [vmem:[#allocation9 + $0x88] sm:$0xf]
        %v3338 = vld [vmem:[#allocation9 + $0x8c] sm:$0xf]
        %v3339 = vld [vmem:[#allocation9 + $0x90] sm:$0xf]
        %v3340 = vld [vmem:[#allocation9 + $0x94] sm:$0xf]
        %v3341 = vld [vmem:[#allocation9 + $0x98] sm:$0xf]
        %v3342 = vld [vmem:[#allocation9 + $0x9c] sm:$0xf]
        %v3343 = vld [vmem:[#allocation9 + $0xa0] sm:$0xf]
        %v3344 = vld [vmem:[#allocation9 + $0xa4] sm:$0xf]
        %v3345 = vld [vmem:[#allocation9 + $0xa8] sm:$0xf]
        %v3346 = vld [vmem:[#allocation9 + $0xac] sm:$0xf]
        %v3347 = vld [vmem:[#allocation9 + $0xb0] sm:$0xf]
        %v3348 = vld [vmem:[#allocation9 + $0xb4] sm:$0xf]
        %v3349 = vld [vmem:[#allocation9 + $0xb8] sm:$0xf]
        %v3350 = vld [vmem:[#allocation9 + $0xbc] sm:$0xf]
        %v3351 = vld [vmem:[#allocation9 + $0xc0] sm:$0xf]
        %v3352 = vld [vmem:[#allocation9 + $0xc4] sm:$0xf]
        %v3353 = vld [vmem:[#allocation9 + $0xc8] sm:$0xf]
        %v3354 = vld [vmem:[#allocation9 + $0xcc] sm:$0xf]
        %v3355 = vld [vmem:[#allocation9 + $0xd0] sm:$0xf]
        %v3356 = vld [vmem:[#allocation9 + $0xd4] sm:$0xf]
        %v3357 = vld [vmem:[#allocation9 + $0xd8] sm:$0xf]
        %v3358 = vld [vmem:[#allocation9 + $0xdc] sm:$0xf]
        %v3359 = vld [vmem:[#allocation9 + $0xe0] sm:$0xf]
        %v3360 = vld [vmem:[#allocation9 + $0xe4] sm:$0xf]
        %v3361 = vld [vmem:[#allocation9 + $0xe8] sm:$0xf]
        %v3362 = vld [vmem:[#allocation9 + $0xec] sm:$0xf]
        %v3363 = vld [vmem:[#allocation9 + $0xf0] sm:$0xf]
        %v3364 = vld [vmem:[#allocation9 + $0xf4] sm:$0xf]
        %v3365 = vld [vmem:[#allocation9 + $0xf8] sm:$0xf]
        %v3366 = vld [vmem:[#allocation9 + $0xfc] sm:$0xf]
        %v3367 = vld [vmem:[#allocation9 + $0x100] sm:$0xf]
        %v3368 = vld [vmem:[#allocation9 + $0x104] sm:$0xf]
        %v3369 = vld [vmem:[#allocation9 + $0x108] sm:$0xf]
        %v3370 = vld [vmem:[#allocation9 + $0x10c] sm:$0xf]
        %v3371 = vld [vmem:[#allocation9 + $0x110] sm:$0xf]
        %v3372 = vld [vmem:[#allocation9 + $0x114] sm:$0xf]
        %v3373 = vld [vmem:[#allocation9 + $0x118] sm:$0xf]
        %v3374 = vld [vmem:[#allocation9 + $0x11c] sm:$0xf]
        %v3375 = vld [vmem:[#allocation9 + $0x120] sm:$0xf]
        %v3376 = vld [vmem:[#allocation9 + $0x124] sm:$0xf]
        %v3377 = vld [vmem:[#allocation9 + $0x128] sm:$0xf]
        %v3378 = vld [vmem:[#allocation9 + $0x12c] sm:$0xf]
        %v3379 = vld [vmem:[#allocation9 + $0x130] sm:$0xf]
        %v3380 = vld [vmem:[#allocation9 + $0x134] sm:$0xf]
        %v3381 = vld [vmem:[#allocation9 + $0x138] sm:$0xf]
        %v3382 = vld [vmem:[#allocation9 + $0x13c] sm:$0xf]
        %v3383 = vld [vmem:[#allocation9 + $0x140] sm:$0xf]
        %v3384 = vld [vmem:[#allocation9 + $0x144] sm:$0xf]
        %v3385 = vld [vmem:[#allocation9 + $0x148] sm:$0xf]
        %v3386 = vld [vmem:[#allocation9 + $0x14c] sm:$0xf]
        %v3387 = vld [vmem:[#allocation9 + $0x150] sm:$0xf]
        %v3388 = vld [vmem:[#allocation9 + $0x154] sm:$0xf]
        %v3389 = vld [vmem:[#allocation9 + $0x158] sm:$0xf]
        %v3390 = vld [vmem:[#allocation9 + $0x15c] sm:$0xf]
        %v3391 = vld [vmem:[#allocation9 + $0x160] sm:$0xf]
        %v3392 = vld [vmem:[#allocation9 + $0x164] sm:$0xf]
        %v3393 = vld [vmem:[#allocation9 + $0x168] sm:$0xf]
        %v3394 = vld [vmem:[#allocation9 + $0x16c] sm:$0xf]
        %v3395 = vld [vmem:[#allocation9 + $0x170] sm:$0xf]
        %v3396 = vld [vmem:[#allocation9 + $0x174] sm:$0xf]
        %v3397 = vld [vmem:[#allocation9 + $0x178] sm:$0xf]
        %v3398 = vld [vmem:[#allocation9 + $0x17c] sm:$0xf]
        %v3399 = vld [vmem:[#allocation9 + $0x180] sm:$0xf]
        %v3400 = vld [vmem:[#allocation9 + $0x184] sm:$0xf]
        %v3401 = vld [vmem:[#allocation9 + $0x188] sm:$0xf]
        %v3402 = vld [vmem:[#allocation9 + $0x18c] sm:$0xf]
        %v3403 = vld [vmem:[#allocation9 + $0x190] sm:$0xf]
        %v3404 = vld [vmem:[#allocation9 + $0x194] sm:$0xf]
        %v3405 = vld [vmem:[#allocation9 + $0x198] sm:$0xf]
        %v3406 = vld [vmem:[#allocation9 + $0x19c] sm:$0xf]
        %v3407 = vld [vmem:[#allocation9 + $0x1a0] sm:$0xf]
        %v3408 = vld [vmem:[#allocation9 + $0x1a4] sm:$0xf]
        %v3409 = vld [vmem:[#allocation9 + $0x1a8] sm:$0xf]
        %v3410 = vld [vmem:[#allocation9 + $0x1ac] sm:$0xf]
        %v3411 = vld [vmem:[#allocation9 + $0x1b0] sm:$0xf]
        %v3412 = vld [vmem:[#allocation9 + $0x1b4] sm:$0xf]
        %v3413 = vld [vmem:[#allocation9 + $0x1b8] sm:$0xf]
        %v3414 = vld [vmem:[#allocation9 + $0x1bc] sm:$0xf]
        %v3415 = vld [vmem:[#allocation9 + $0x1c0] sm:$0xf]
        %v3416 = vld [vmem:[#allocation9 + $0x1c4] sm:$0xf]
        %v3417 = vld [vmem:[#allocation9 + $0x1c8] sm:$0xf]
        %v3418 = vld [vmem:[#allocation9 + $0x1cc] sm:$0xf]
        %v3419 = vld [vmem:[#allocation9 + $0x1d0] sm:$0xf]
        %v3420 = vld [vmem:[#allocation9 + $0x1d4] sm:$0xf]
        %v3421 = vld [vmem:[#allocation9 + $0x1d8] sm:$0xf]
        %v3422 = vld [vmem:[#allocation9 + $0x1dc] sm:$0xf]
        %v3423 = vld [vmem:[#allocation9 + $0x1e0] sm:$0xf]
        %v3424 = vld [vmem:[#allocation9 + $0x1e4] sm:$0xf]
        %v3425 = vld [vmem:[#allocation9 + $0x1e8] sm:$0xf]
        %v3426 = vld [vmem:[#allocation9 + $0x1ec] sm:$0xf]
        %v3427 = vld [vmem:[#allocation9 + $0x1f0] sm:$0xf]
        %v3428 = vld [vmem:[#allocation9 + $0x1f4] sm:$0xf]
        %v3429 = vld [vmem:[#allocation9 + $0x1f8] sm:$0xf]
        %v3430 = vld [vmem:[#allocation9 + $0x1fc] sm:$0xf]
        %v3431 = vld [vmem:[#allocation9 + $0x200] sm:$0xf]
        %v3432 = vld [vmem:[#allocation9 + $0x204] sm:$0xf]
        %v3433 = vld [vmem:[#allocation9 + $0x208] sm:$0xf]
        %v3434 = vld [vmem:[#allocation9 + $0x20c] sm:$0xf]
        %v3435 = vld [vmem:[#allocation9 + $0x210] sm:$0xf]
        %v3436 = vld [vmem:[#allocation9 + $0x214] sm:$0xf]
        %v3437 = vld [vmem:[#allocation9 + $0x218] sm:$0xf]
        %v3438 = vld [vmem:[#allocation9 + $0x21c] sm:$0xf]
        %v3439 = vld [vmem:[#allocation9 + $0x220] sm:$0xf]
        %v3440 = vld [vmem:[#allocation9 + $0x224] sm:$0xf]
        %v3441 = vld [vmem:[#allocation9 + $0x228] sm:$0xf]
        %v3442 = vld [vmem:[#allocation9 + $0x22c] sm:$0xf]
        %v3443 = vld [vmem:[#allocation9 + $0x230] sm:$0xf]
        %v3444 = vld [vmem:[#allocation9 + $0x234] sm:$0xf]
        %v3445 = vld [vmem:[#allocation9 + $0x238] sm:$0xf]
        %v3446 = vld [vmem:[#allocation9 + $0x23c] sm:$0xf]
        %v3591 = vunpack.c.l.b16 %v3303
        %v3592 = vunpack.c.l.b16 %v3304
        %v3593 = vunpack.c.l.b16 %v3305
        %v3594 = vunpack.c.l.b16 %v3306
        %v3595 = vunpack.c.l.b16 %v3307
        %v3596 = vunpack.c.l.b16 %v3308
        %v3597 = vunpack.c.l.b16 %v3309
        %v3598 = vunpack.c.l.b16 %v3310
        %v3599 = vunpack.c.l.b16 %v3311
        %v3600 = vunpack.c.l.b16 %v3312
        %v3601 = vunpack.c.l.b16 %v3313
        %v3602 = vunpack.c.l.b16 %v3314
        %v3603 = vunpack.c.l.b16 %v3315
        %v3604 = vunpack.c.l.b16 %v3316
        %v3605 = vunpack.c.l.b16 %v3317
        %v3606 = vunpack.c.l.b16 %v3318
        %v3607 = vunpack.c.l.b16 %v3319
        %v3608 = vunpack.c.l.b16 %v3320
        %v3609 = vunpack.c.l.b16 %v3321
        %v3610 = vunpack.c.l.b16 %v3322
        %v3611 = vunpack.c.l.b16 %v3323
        %v3612 = vunpack.c.l.b16 %v3324
        %v3613 = vunpack.c.l.b16 %v3325
        %v3614 = vunpack.c.l.b16 %v3326
        %v3615 = vunpack.c.l.b16 %v3327
        %v3616 = vunpack.c.l.b16 %v3328
        %v3617 = vunpack.c.l.b16 %v3329
        %v3618 = vunpack.c.l.b16 %v3330
        %v3619 = vunpack.c.l.b16 %v3331
        %v3620 = vunpack.c.l.b16 %v3332
        %v3621 = vunpack.c.l.b16 %v3333
        %v3622 = vunpack.c.l.b16 %v3334
        %v3623 = vunpack.c.l.b16 %v3335
        %v3624 = vunpack.c.l.b16 %v3336
        %v3625 = vunpack.c.l.b16 %v3337
        %v3626 = vunpack.c.l.b16 %v3338
        %v3627 = vunpack.c.l.b16 %v3339
        %v3628 = vunpack.c.l.b16 %v3340
        %v3629 = vunpack.c.l.b16 %v3341
        %v3630 = vunpack.c.l.b16 %v3342
        %v3631 = vunpack.c.l.b16 %v3343
        %v3632 = vunpack.c.l.b16 %v3344
        %v3633 = vunpack.c.l.b16 %v3345
        %v3634 = vunpack.c.l.b16 %v3346
        %v3635 = vunpack.c.l.b16 %v3347
        %v3636 = vunpack.c.l.b16 %v3348
        %v3637 = vunpack.c.l.b16 %v3349
        %v3638 = vunpack.c.l.b16 %v3350
        %v3639 = vunpack.c.l.b16 %v3351
        %v3640 = vunpack.c.l.b16 %v3352
        %v3641 = vunpack.c.l.b16 %v3353
        %v3642 = vunpack.c.l.b16 %v3354
        %v3643 = vunpack.c.l.b16 %v3355
        %v3644 = vunpack.c.l.b16 %v3356
        %v3645 = vunpack.c.l.b16 %v3357
        %v3646 = vunpack.c.l.b16 %v3358
        %v3647 = vunpack.c.l.b16 %v3359
        %v3648 = vunpack.c.l.b16 %v3360
        %v3649 = vunpack.c.l.b16 %v3361
        %v3650 = vunpack.c.l.b16 %v3362
        %v3651 = vunpack.c.l.b16 %v3363
        %v3652 = vunpack.c.l.b16 %v3364
        %v3653 = vunpack.c.l.b16 %v3365
        %v3654 = vunpack.c.l.b16 %v3366
        %v3655 = vunpack.c.l.b16 %v3367
        %v3656 = vunpack.c.l.b16 %v3368
        %v3657 = vunpack.c.l.b16 %v3369
        %v3658 = vunpack.c.l.b16 %v3370
        %v3659 = vunpack.c.l.b16 %v3371
        %v3660 = vunpack.c.l.b16 %v3372
        %v3661 = vunpack.c.l.b16 %v3373
        %v3662 = vunpack.c.l.b16 %v3374
        %v3663 = vunpack.c.l.b16 %v3375
        %v3664 = vunpack.c.l.b16 %v3376
        %v3665 = vunpack.c.l.b16 %v3377
        %v3666 = vunpack.c.l.b16 %v3378
        %v3667 = vunpack.c.l.b16 %v3379
        %v3668 = vunpack.c.l.b16 %v3380
        %v3669 = vunpack.c.l.b16 %v3381
        %v3670 = vunpack.c.l.b16 %v3382
        %v3671 = vunpack.c.l.b16 %v3383
        %v3672 = vunpack.c.l.b16 %v3384
        %v3673 = vunpack.c.l.b16 %v3385
        %v3674 = vunpack.c.l.b16 %v3386
        %v3675 = vunpack.c.l.b16 %v3387
        %v3676 = vunpack.c.l.b16 %v3388
        %v3677 = vunpack.c.l.b16 %v3389
        %v3678 = vunpack.c.l.b16 %v3390
        %v3679 = vunpack.c.l.b16 %v3391
        %v3680 = vunpack.c.l.b16 %v3392
        %v3681 = vunpack.c.l.b16 %v3393
        %v3682 = vunpack.c.l.b16 %v3394
        %v3683 = vunpack.c.l.b16 %v3395
        %v3684 = vunpack.c.l.b16 %v3396
        %v3685 = vunpack.c.l.b16 %v3397
        %v3686 = vunpack.c.l.b16 %v3398
        %v3687 = vunpack.c.l.b16 %v3399
        %v3688 = vunpack.c.l.b16 %v3400
        %v3689 = vunpack.c.l.b16 %v3401
        %v3690 = vunpack.c.l.b16 %v3402
        %v3691 = vunpack.c.l.b16 %v3403
        %v3692 = vunpack.c.l.b16 %v3404
        %v3693 = vunpack.c.l.b16 %v3405
        %v3694 = vunpack.c.l.b16 %v3406
        %v3695 = vunpack.c.l.b16 %v3407
        %v3696 = vunpack.c.l.b16 %v3408
        %v3697 = vunpack.c.l.b16 %v3409
        %v3698 = vunpack.c.l.b16 %v3410
        %v3699 = vunpack.c.l.b16 %v3411
        %v3700 = vunpack.c.l.b16 %v3412
        %v3701 = vunpack.c.l.b16 %v3413
        %v3702 = vunpack.c.l.b16 %v3414
        %v3703 = vunpack.c.l.b16 %v3415
        %v3704 = vunpack.c.l.b16 %v3416
        %v3705 = vunpack.c.l.b16 %v3417
        %v3706 = vunpack.c.l.b16 %v3418
        %v3707 = vunpack.c.l.b16 %v3419
        %v3708 = vunpack.c.l.b16 %v3420
        %v3709 = vunpack.c.l.b16 %v3421
        %v3710 = vunpack.c.l.b16 %v3422
        %v3711 = vunpack.c.l.b16 %v3423
        %v3712 = vunpack.c.l.b16 %v3424
        %v3713 = vunpack.c.l.b16 %v3425
        %v3714 = vunpack.c.l.b16 %v3426
        %v3715 = vunpack.c.l.b16 %v3427
        %v3716 = vunpack.c.l.b16 %v3428
        %v3717 = vunpack.c.l.b16 %v3429
        %v3718 = vunpack.c.l.b16 %v3430
        %v3719 = vunpack.c.l.b16 %v3431
        %v3720 = vunpack.c.l.b16 %v3432
        %v3721 = vunpack.c.l.b16 %v3433
        %v3722 = vunpack.c.l.b16 %v3434
        %v3723 = vunpack.c.l.b16 %v3435
        %v3724 = vunpack.c.l.b16 %v3436
        %v3725 = vunpack.c.l.b16 %v3437
        %v3726 = vunpack.c.l.b16 %v3438
        %v3727 = vunpack.c.l.b16 %v3439
        %v3728 = vunpack.c.l.b16 %v3440
        %v3729 = vunpack.c.l.b16 %v3441
        %v3730 = vunpack.c.l.b16 %v3442
        %v3731 = vunpack.c.l.b16 %v3443
        %v3732 = vunpack.c.l.b16 %v3444
        %v3733 = vunpack.c.l.b16 %v3445
        %v3734 = vunpack.c.l.b16 %v3446
        %v3735 = vpack.c.b16 %v3592, %v3591
        %v3736 = vpack.c.b16 %v3594, %v3593
        %v3737 = vpack.c.b16 %v3596, %v3595
        %v3738 = vpack.c.b16 %v3598, %v3597
        %v3739 = vpack.c.b16 %v3600, %v3599
        %v3740 = vpack.c.b16 %v3602, %v3601
        %v3741 = vpack.c.b16 %v3604, %v3603
        %v3742 = vpack.c.b16 %v3606, %v3605
        %v3743 = vpack.c.b16 %v3608, %v3607
        %v3744 = vpack.c.b16 %v3610, %v3609
        %v3745 = vpack.c.b16 %v3612, %v3611
        %v3746 = vpack.c.b16 %v3614, %v3613
        %v3747 = vpack.c.b16 %v3616, %v3615
        %v3748 = vpack.c.b16 %v3618, %v3617
        %v3749 = vpack.c.b16 %v3620, %v3619
        %v3750 = vpack.c.b16 %v3622, %v3621
        %v3751 = vpack.c.b16 %v3624, %v3623
        %v3752 = vpack.c.b16 %v3626, %v3625
        %v3753 = vpack.c.b16 %v3628, %v3627
        %v3754 = vpack.c.b16 %v3630, %v3629
        %v3755 = vpack.c.b16 %v3632, %v3631
        %v3756 = vpack.c.b16 %v3634, %v3633
        %v3757 = vpack.c.b16 %v3636, %v3635
        %v3758 = vpack.c.b16 %v3638, %v3637
        %v3759 = vpack.c.b16 %v3640, %v3639
        %v3760 = vpack.c.b16 %v3642, %v3641
        %v3761 = vpack.c.b16 %v3644, %v3643
        %v3762 = vpack.c.b16 %v3646, %v3645
        %v3763 = vpack.c.b16 %v3648, %v3647
        %v3764 = vpack.c.b16 %v3650, %v3649
        %v3765 = vpack.c.b16 %v3652, %v3651
        %v3766 = vpack.c.b16 %v3654, %v3653
        %v3767 = vpack.c.b16 %v3656, %v3655
        %v3768 = vpack.c.b16 %v3658, %v3657
        %v3769 = vpack.c.b16 %v3660, %v3659
        %v3770 = vpack.c.b16 %v3662, %v3661
        %v3771 = vpack.c.b16 %v3664, %v3663
        %v3772 = vpack.c.b16 %v3666, %v3665
        %v3773 = vpack.c.b16 %v3668, %v3667
        %v3774 = vpack.c.b16 %v3670, %v3669
        %v3775 = vpack.c.b16 %v3672, %v3671
        %v3776 = vpack.c.b16 %v3674, %v3673
        %v3777 = vpack.c.b16 %v3676, %v3675
        %v3778 = vpack.c.b16 %v3678, %v3677
        %v3779 = vpack.c.b16 %v3680, %v3679
        %v3780 = vpack.c.b16 %v3682, %v3681
        %v3781 = vpack.c.b16 %v3684, %v3683
        %v3782 = vpack.c.b16 %v3686, %v3685
        %v3783 = vpack.c.b16 %v3688, %v3687
        %v3784 = vpack.c.b16 %v3690, %v3689
        %v3785 = vpack.c.b16 %v3692, %v3691
        %v3786 = vpack.c.b16 %v3694, %v3693
        %v3787 = vpack.c.b16 %v3696, %v3695
        %v3788 = vpack.c.b16 %v3698, %v3697
        %v3789 = vpack.c.b16 %v3700, %v3699
        %v3790 = vpack.c.b16 %v3702, %v3701
        %v3791 = vpack.c.b16 %v3704, %v3703
        %v3792 = vpack.c.b16 %v3706, %v3705
        %v3793 = vpack.c.b16 %v3708, %v3707
        %v3794 = vpack.c.b16 %v3710, %v3709
        %v3795 = vpack.c.b16 %v3712, %v3711
        %v3796 = vpack.c.b16 %v3714, %v3713
        %v3797 = vpack.c.b16 %v3716, %v3715
        %v3798 = vpack.c.b16 %v3718, %v3717
        %v3799 = vpack.c.b16 %v3720, %v3719
        %v3800 = vpack.c.b16 %v3722, %v3721
        %v3801 = vpack.c.b16 %v3724, %v3723
        %v3802 = vpack.c.b16 %v3726, %v3725
        %v3803 = vpack.c.b16 %v3728, %v3727
        %v3804 = vpack.c.b16 %v3730, %v3729
        %v3805 = vpack.c.b16 %v3732, %v3731
        %v3806 = vpack.c.b16 %v3734, %v3733
        %3879 = vmatpush.bf16.msra.mxu0 %v3742
        %3880 = vmatpush.bf16.msra.mxu0 %v3741
        %3881 = vmatpush.bf16.msra.mxu0 %v3740
        %3882 = vmatpush.bf16.msra.mxu0 %v3739
        %3883 = vmatpush.bf16.msra.mxu0 %v3738
        %3884 = vmatpush.bf16.msra.mxu0 %v3737
        %3885 = vmatpush.bf16.msra.mxu0 %v3736
        %3886 = vmatpush.bf16.msra.mxu0 %v3735
        %3887 = vmatmul.bf16.gmra.mxu0 %v2899
        %v3888 = vpop.f32.mrf.mxu0
        %v3889 = vadd.f32 0.0, %v3888
        %v3890 = vpop.f32.mrf.mxu0
        %v3891 = vadd.f32 0.0, %v3890
        %3892 = vmatmul.bf16.gmra.mxu0 %v2900
        %v3893 = vpop.f32.mrf.mxu0
        %v3894 = vadd.f32 0.0, %v3893
        %v3895 = vpop.f32.mrf.mxu0
        %v3896 = vadd.f32 0.0, %v3895
        %3897 = vmatmul.bf16.gmra.mxu0 %v2901
        %v3898 = vpop.f32.mrf.mxu0
        %v3899 = vadd.f32 0.0, %v3898
        %v3900 = vpop.f32.mrf.mxu0
        %v3901 = vadd.f32 0.0, %v3900
        %3902 = vmatmul.bf16.gmra.mxu0 %v2902
        %v3903 = vpop.f32.mrf.mxu0
        %v3904 = vadd.f32 0.0, %v3903
        %v3905 = vpop.f32.mrf.mxu0
        %v3906 = vadd.f32 0.0, %v3905
        %3907 = vmatmul.bf16.gmra.mxu0 %v2903
        %v3908 = vpop.f32.mrf.mxu0
        %v3909 = vadd.f32 0.0, %v3908
        %v3910 = vpop.f32.mrf.mxu0
        %v3911 = vadd.f32 0.0, %v3910
        %3912 = vmatmul.bf16.gmra.mxu0 %v2904
        %v3913 = vpop.f32.mrf.mxu0
        %v3914 = vadd.f32 0.0, %v3913
        %v3915 = vpop.f32.mrf.mxu0
        %v3916 = vadd.f32 0.0, %v3915
        %3917 = vmatmul.bf16.gmra.mxu0 %v2905
        %v3918 = vpop.f32.mrf.mxu0
        %v3919 = vadd.f32 0.0, %v3918
        %v3920 = vpop.f32.mrf.mxu0
        %v3921 = vadd.f32 0.0, %v3920
        %3922 = vmatmul.bf16.gmra.mxu0 %v2906
        %v3923 = vpop.f32.mrf.mxu0
        %v3924 = vadd.f32 0.0, %v3923
        %v3925 = vpop.f32.mrf.mxu0
        %v3926 = vadd.f32 0.0, %v3925
        %3927 = vmatmul.bf16.gmra.mxu0 %v2907
        %v3928 = vpop.f32.mrf.mxu0
        %v3929 = vadd.f32 0.0, %v3928
        %v3930 = vpop.f32.mrf.mxu0
        %v3931 = vadd.f32 0.0, %v3930
        %3932 = vmatmul.bf16.gmra.mxu0 %v2908
        %v3933 = vpop.f32.mrf.mxu0
        %v3934 = vadd.f32 0.0, %v3933
        %v3935 = vpop.f32.mrf.mxu0
        %v3936 = vadd.f32 0.0, %v3935
        %3937 = vmatmul.bf16.gmra.mxu0 %v2909
        %v3938 = vpop.f32.mrf.mxu0
        %v3939 = vadd.f32 0.0, %v3938
        %v3940 = vpop.f32.mrf.mxu0
        %v3941 = vadd.f32 0.0, %v3940
        %3942 = vmatmul.bf16.gmra.mxu0 %v2910
        %v3943 = vpop.f32.mrf.mxu0
        %v3944 = vadd.f32 0.0, %v3943
        %v3945 = vpop.f32.mrf.mxu0
        %v3946 = vadd.f32 0.0, %v3945
        %3947 = vmatmul.bf16.gmra.mxu0 %v2911
        %v3948 = vpop.f32.mrf.mxu0
        %v3949 = vadd.f32 0.0, %v3948
        %v3950 = vpop.f32.mrf.mxu0
        %v3951 = vadd.f32 0.0, %v3950
        %3952 = vmatmul.bf16.gmra.mxu0 %v2912
        %v3953 = vpop.f32.mrf.mxu0
        %v3954 = vadd.f32 0.0, %v3953
        %v3955 = vpop.f32.mrf.mxu0
        %v3956 = vadd.f32 0.0, %v3955
        %3957 = vmatmul.bf16.gmra.mxu0 %v2913
        %v3958 = vpop.f32.mrf.mxu0
        %v3959 = vadd.f32 0.0, %v3958
        %v3960 = vpop.f32.mrf.mxu0
        %v3961 = vadd.f32 0.0, %v3960
        %3962 = vmatmul.bf16.gmra.mxu0 %v2914
        %v3963 = vpop.f32.mrf.mxu0
        %v3964 = vadd.f32 0.0, %v3963
        %v3965 = vpop.f32.mrf.mxu0
        %v3966 = vadd.f32 0.0, %v3965
        %3967 = vdwg.mxu0
        %3968 = vmatpush.bf16.msra.mxu0 %v3750
        %3969 = vmatpush.bf16.msra.mxu0 %v3749
        %3970 = vmatpush.bf16.msra.mxu0 %v3748
        %3971 = vmatpush.bf16.msra.mxu0 %v3747
        %3972 = vmatpush.bf16.msra.mxu0 %v3746
        %3973 = vmatpush.bf16.msra.mxu0 %v3745
        %3974 = vmatpush.bf16.msra.mxu0 %v3744
        %3975 = vmatpush.bf16.msra.mxu0 %v3743
        %3976 = vmatmul.bf16.gmra.mxu0 %v2990
        %v3977 = vpop.f32.mrf.mxu0
        %v3978 = vadd.f32 %v3889, %v3977
        %v3979 = vpop.f32.mrf.mxu0
        %v3980 = vadd.f32 %v3891, %v3979
        %3981 = vmatmul.bf16.gmra.mxu0 %v3002
        %v3982 = vpop.f32.mrf.mxu0
        %v3983 = vadd.f32 %v3894, %v3982
        %v3984 = vpop.f32.mrf.mxu0
        %v3985 = vadd.f32 %v3896, %v3984
        %3986 = vmatmul.bf16.gmra.mxu0 %v3014
        %v3987 = vpop.f32.mrf.mxu0
        %v3988 = vadd.f32 %v3899, %v3987
        %v3989 = vpop.f32.mrf.mxu0
        %v3990 = vadd.f32 %v3901, %v3989
        %3991 = vmatmul.bf16.gmra.mxu0 %v3026
        %v3992 = vpop.f32.mrf.mxu0
        %v3993 = vadd.f32 %v3904, %v3992
        %v3994 = vpop.f32.mrf.mxu0
        %v3995 = vadd.f32 %v3906, %v3994
        %3996 = vmatmul.bf16.gmra.mxu0 %v3038
        %v3997 = vpop.f32.mrf.mxu0
        %v3998 = vadd.f32 %v3909, %v3997
        %v3999 = vpop.f32.mrf.mxu0
        %v4000 = vadd.f32 %v3911, %v3999
        %4001 = vmatmul.bf16.gmra.mxu0 %v3050
        %v4002 = vpop.f32.mrf.mxu0
        %v4003 = vadd.f32 %v3914, %v4002
        %v4004 = vpop.f32.mrf.mxu0
        %v4005 = vadd.f32 %v3916, %v4004
        %4006 = vmatmul.bf16.gmra.mxu0 %v3062
        %v4007 = vpop.f32.mrf.mxu0
        %v4008 = vadd.f32 %v3919, %v4007
        %v4009 = vpop.f32.mrf.mxu0
        %v4010 = vadd.f32 %v3921, %v4009
        %4011 = vmatmul.bf16.gmra.mxu0 %v3074
        %v4012 = vpop.f32.mrf.mxu0
        %v4013 = vadd.f32 %v3924, %v4012
        %v4014 = vpop.f32.mrf.mxu0
        %v4015 = vadd.f32 %v3926, %v4014
        %4016 = vmatmul.bf16.gmra.mxu0 %v3086
        %v4017 = vpop.f32.mrf.mxu0
        %v4018 = vadd.f32 %v3929, %v4017
        %v4019 = vpop.f32.mrf.mxu0
        %v4020 = vadd.f32 %v3931, %v4019
        %4021 = vmatmul.bf16.gmra.mxu0 %v3098
        %v4022 = vpop.f32.mrf.mxu0
        %v4023 = vadd.f32 %v3934, %v4022
        %v4024 = vpop.f32.mrf.mxu0
        %v4025 = vadd.f32 %v3936, %v4024
        %4026 = vmatmul.bf16.gmra.mxu0 %v3110
        %v4027 = vpop.f32.mrf.mxu0
        %v4028 = vadd.f32 %v3939, %v4027
        %v4029 = vpop.f32.mrf.mxu0
        %v4030 = vadd.f32 %v3941, %v4029
        %4031 = vmatmul.bf16.gmra.mxu0 %v3122
        %v4032 = vpop.f32.mrf.mxu0
        %v4033 = vadd.f32 %v3944, %v4032
        %v4034 = vpop.f32.mrf.mxu0
        %v4035 = vadd.f32 %v3946, %v4034
        %4036 = vmatmul.bf16.gmra.mxu0 %v3134
        %v4037 = vpop.f32.mrf.mxu0
        %v4038 = vadd.f32 %v3949, %v4037
        %v4039 = vpop.f32.mrf.mxu0
        %v4040 = vadd.f32 %v3951, %v4039
        %4041 = vmatmul.bf16.gmra.mxu0 %v3146
        %v4042 = vpop.f32.mrf.mxu0
        %v4043 = vadd.f32 %v3954, %v4042
        %v4044 = vpop.f32.mrf.mxu0
        %v4045 = vadd.f32 %v3956, %v4044
        %4046 = vmatmul.bf16.gmra.mxu0 %v3158
        %v4047 = vpop.f32.mrf.mxu0
        %v4048 = vadd.f32 %v3959, %v4047
        %v4049 = vpop.f32.mrf.mxu0
        %v4050 = vadd.f32 %v3961, %v4049
        %4051 = vmatmul.bf16.gmra.mxu0 %v3170
        %v4052 = vpop.f32.mrf.mxu0
        %v4053 = vadd.f32 %v3964, %v4052
        %v4054 = vpop.f32.mrf.mxu0
        %v4055 = vadd.f32 %v3966, %v4054
        %4056 = vdwg.mxu0
        %4057 = vmatpush.bf16.msra.mxu0 %v3758
        %4058 = vmatpush.bf16.msra.mxu0 %v3757
        %4059 = vmatpush.bf16.msra.mxu0 %v3756
        %4060 = vmatpush.bf16.msra.mxu0 %v3755
        %4061 = vmatpush.bf16.msra.mxu0 %v3754
        %4062 = vmatpush.bf16.msra.mxu0 %v3753
        %4063 = vmatpush.bf16.msra.mxu0 %v3752
        %4064 = vmatpush.bf16.msra.mxu0 %v3751
        %4065 = vmatmul.bf16.gmra.mxu0 %v3189
        %v4066 = vpop.f32.mrf.mxu0
        %v4067 = vadd.f32 %v3978, %v4066
        %v4068 = vpop.f32.mrf.mxu0
        %v4069 = vadd.f32 %v3980, %v4068
        %4070 = vmatmul.bf16.gmra.mxu0 %v3192
        %v4071 = vpop.f32.mrf.mxu0
        %v4072 = vadd.f32 %v3983, %v4071
        %v4073 = vpop.f32.mrf.mxu0
        %v4074 = vadd.f32 %v3985, %v4073
        %4075 = vmatmul.bf16.gmra.mxu0 %v3195
        %v4076 = vpop.f32.mrf.mxu0
        %v4077 = vadd.f32 %v3988, %v4076
        %v4078 = vpop.f32.mrf.mxu0
        %v4079 = vadd.f32 %v3990, %v4078
        %4080 = vmatmul.bf16.gmra.mxu0 %v3198
        %v4081 = vpop.f32.mrf.mxu0
        %v4082 = vadd.f32 %v3993, %v4081
        %v4083 = vpop.f32.mrf.mxu0
        %v4084 = vadd.f32 %v3995, %v4083
        %4085 = vmatmul.bf16.gmra.mxu0 %v3201
        %v4086 = vpop.f32.mrf.mxu0
        %v4087 = vadd.f32 %v3998, %v4086
        %v4088 = vpop.f32.mrf.mxu0
        %v4089 = vadd.f32 %v4000, %v4088
        %4090 = vmatmul.bf16.gmra.mxu0 %v3204
        %v4091 = vpop.f32.mrf.mxu0
        %v4092 = vadd.f32 %v4003, %v4091
        %v4093 = vpop.f32.mrf.mxu0
        %v4094 = vadd.f32 %v4005, %v4093
        %4095 = vmatmul.bf16.gmra.mxu0 %v3207
        %v4096 = vpop.f32.mrf.mxu0
        %v4097 = vadd.f32 %v4008, %v4096
        %v4098 = vpop.f32.mrf.mxu0
        %v4099 = vadd.f32 %v4010, %v4098
        %4100 = vmatmul.bf16.gmra.mxu0 %v3210
        %v4101 = vpop.f32.mrf.mxu0
        %v4102 = vadd.f32 %v4013, %v4101
        %v4103 = vpop.f32.mrf.mxu0
        %v4104 = vadd.f32 %v4015, %v4103
        %4105 = vmatmul.bf16.gmra.mxu0 %v3213
        %v4106 = vpop.f32.mrf.mxu0
        %v4107 = vadd.f32 %v4018, %v4106
        %v4108 = vpop.f32.mrf.mxu0
        %v4109 = vadd.f32 %v4020, %v4108
        %4110 = vmatmul.bf16.gmra.mxu0 %v3216
        %v4111 = vpop.f32.mrf.mxu0
        %v4112 = vadd.f32 %v4023, %v4111
        %v4113 = vpop.f32.mrf.mxu0
        %v4114 = vadd.f32 %v4025, %v4113
        %4115 = vmatmul.bf16.gmra.mxu0 %v3219
        %v4116 = vpop.f32.mrf.mxu0
        %v4117 = vadd.f32 %v4028, %v4116
        %v4118 = vpop.f32.mrf.mxu0
        %v4119 = vadd.f32 %v4030, %v4118
        %4120 = vmatmul.bf16.gmra.mxu0 %v3222
        %v4121 = vpop.f32.mrf.mxu0
        %v4122 = vadd.f32 %v4033, %v4121
        %v4123 = vpop.f32.mrf.mxu0
        %v4124 = vadd.f32 %v4035, %v4123
        %4125 = vmatmul.bf16.gmra.mxu0 %v3225
        %v4126 = vpop.f32.mrf.mxu0
        %v4127 = vadd.f32 %v4038, %v4126
        %v4128 = vpop.f32.mrf.mxu0
        %v4129 = vadd.f32 %v4040, %v4128
        %4130 = vmatmul.bf16.gmra.mxu0 %v3228
        %v4131 = vpop.f32.mrf.mxu0
        %v4132 = vadd.f32 %v4043, %v4131
        %v4133 = vpop.f32.mrf.mxu0
        %v4134 = vadd.f32 %v4045, %v4133
        %4135 = vmatmul.bf16.gmra.mxu0 %v3231
        %v4136 = vpop.f32.mrf.mxu0
        %v4137 = vadd.f32 %v4048, %v4136
        %v4138 = vpop.f32.mrf.mxu0
        %v4139 = vadd.f32 %v4050, %v4138
        %4140 = vmatmul.bf16.gmra.mxu0 %v3234
        %v4141 = vpop.f32.mrf.mxu0
        %v4142 = vadd.f32 %v4053, %v4141
        %v4143 = vpop.f32.mrf.mxu0
        %v4144 = vadd.f32 %v4055, %v4143
        %4145 = vdwg.mxu0
        %4146 = vmatpush.bf16.msra.mxu0 %v3766
        %4147 = vmatpush.bf16.msra.mxu0 %v3765
        %4148 = vmatpush.bf16.msra.mxu0 %v3764
        %4149 = vmatpush.bf16.msra.mxu0 %v3763
        %4150 = vmatpush.bf16.msra.mxu0 %v3762
        %4151 = vmatpush.bf16.msra.mxu0 %v3761
        %4152 = vmatpush.bf16.msra.mxu0 %v3760
        %4153 = vmatpush.bf16.msra.mxu0 %v3759
        %4154 = vmatmul.bf16.gmra.mxu0 %v2900
        %v4155 = vpop.f32.mrf.mxu0
        %v4156 = vadd.f32 %v4067, %v4155
        %v4157 = vpop.f32.mrf.mxu0
        %v4158 = vadd.f32 %v4069, %v4157
        %4159 = vmatmul.bf16.gmra.mxu0 %v2901
        %v4160 = vpop.f32.mrf.mxu0
        %v4161 = vadd.f32 %v4072, %v4160
        %v4162 = vpop.f32.mrf.mxu0
        %v4163 = vadd.f32 %v4074, %v4162
        %4164 = vmatmul.bf16.gmra.mxu0 %v2902
        %v4165 = vpop.f32.mrf.mxu0
        %v4166 = vadd.f32 %v4077, %v4165
        %v4167 = vpop.f32.mrf.mxu0
        %v4168 = vadd.f32 %v4079, %v4167
        %4169 = vmatmul.bf16.gmra.mxu0 %v2903
        %v4170 = vpop.f32.mrf.mxu0
        %v4171 = vadd.f32 %v4082, %v4170
        %v4172 = vpop.f32.mrf.mxu0
        %v4173 = vadd.f32 %v4084, %v4172
        %4174 = vmatmul.bf16.gmra.mxu0 %v2904
        %v4175 = vpop.f32.mrf.mxu0
        %v4176 = vadd.f32 %v4087, %v4175
        %v4177 = vpop.f32.mrf.mxu0
        %v4178 = vadd.f32 %v4089, %v4177
        %4179 = vmatmul.bf16.gmra.mxu0 %v2905
        %v4180 = vpop.f32.mrf.mxu0
        %v4181 = vadd.f32 %v4092, %v4180
        %v4182 = vpop.f32.mrf.mxu0
        %v4183 = vadd.f32 %v4094, %v4182
        %4184 = vmatmul.bf16.gmra.mxu0 %v2906
        %v4185 = vpop.f32.mrf.mxu0
        %v4186 = vadd.f32 %v4097, %v4185
        %v4187 = vpop.f32.mrf.mxu0
        %v4188 = vadd.f32 %v4099, %v4187
        %4189 = vmatmul.bf16.gmra.mxu0 %v2907
        %v4190 = vpop.f32.mrf.mxu0
        %v4191 = vadd.f32 %v4102, %v4190
        %v4192 = vpop.f32.mrf.mxu0
        %v4193 = vadd.f32 %v4104, %v4192
        %4194 = vmatmul.bf16.gmra.mxu0 %v2908
        %v4195 = vpop.f32.mrf.mxu0
        %v4196 = vadd.f32 %v4107, %v4195
        %v4197 = vpop.f32.mrf.mxu0
        %v4198 = vadd.f32 %v4109, %v4197
        %4199 = vmatmul.bf16.gmra.mxu0 %v2909
        %v4200 = vpop.f32.mrf.mxu0
        %v4201 = vadd.f32 %v4112, %v4200
        %v4202 = vpop.f32.mrf.mxu0
        %v4203 = vadd.f32 %v4114, %v4202
        %4204 = vmatmul.bf16.gmra.mxu0 %v2910
        %v4205 = vpop.f32.mrf.mxu0
        %v4206 = vadd.f32 %v4117, %v4205
        %v4207 = vpop.f32.mrf.mxu0
        %v4208 = vadd.f32 %v4119, %v4207
        %4209 = vmatmul.bf16.gmra.mxu0 %v2911
        %v4210 = vpop.f32.mrf.mxu0
        %v4211 = vadd.f32 %v4122, %v4210
        %v4212 = vpop.f32.mrf.mxu0
        %v4213 = vadd.f32 %v4124, %v4212
        %4214 = vmatmul.bf16.gmra.mxu0 %v2912
        %v4215 = vpop.f32.mrf.mxu0
        %v4216 = vadd.f32 %v4127, %v4215
        %v4217 = vpop.f32.mrf.mxu0
        %v4218 = vadd.f32 %v4129, %v4217
        %4219 = vmatmul.bf16.gmra.mxu0 %v2913
        %v4220 = vpop.f32.mrf.mxu0
        %v4221 = vadd.f32 %v4132, %v4220
        %v4222 = vpop.f32.mrf.mxu0
        %v4223 = vadd.f32 %v4134, %v4222
        %4224 = vmatmul.bf16.gmra.mxu0 %v2914
        %v4225 = vpop.f32.mrf.mxu0
        %v4226 = vadd.f32 %v4137, %v4225
        %v4227 = vpop.f32.mrf.mxu0
        %v4228 = vadd.f32 %v4139, %v4227
        %4229 = vmatmul.bf16.gmra.mxu0 %v3255
        %v4230 = vpop.f32.mrf.mxu0
        %v4231 = vadd.f32 %v4142, %v4230
        %v4232 = vpop.f32.mrf.mxu0
        %v4233 = vadd.f32 %v4144, %v4232
        %4234 = vdwg.mxu0
        %4235 = vmatpush.bf16.msra.mxu0 %v3774
        %4236 = vmatpush.bf16.msra.mxu0 %v3773
        %4237 = vmatpush.bf16.msra.mxu0 %v3772
        %4238 = vmatpush.bf16.msra.mxu0 %v3771
        %4239 = vmatpush.bf16.msra.mxu0 %v3770
        %4240 = vmatpush.bf16.msra.mxu0 %v3769
        %4241 = vmatpush.bf16.msra.mxu0 %v3768
        %4242 = vmatpush.bf16.msra.mxu0 %v3767
        %4243 = vmatmul.bf16.gmra.mxu0 %v3002
        %v4244 = vpop.f32.mrf.mxu0
        %v4245 = vadd.f32 %v4156, %v4244
        %v4246 = vpop.f32.mrf.mxu0
        %v4247 = vadd.f32 %v4158, %v4246
        %4248 = vmatmul.bf16.gmra.mxu0 %v3014
        %v4249 = vpop.f32.mrf.mxu0
        %v4250 = vadd.f32 %v4161, %v4249
        %v4251 = vpop.f32.mrf.mxu0
        %v4252 = vadd.f32 %v4163, %v4251
        %4253 = vmatmul.bf16.gmra.mxu0 %v3026
        %v4254 = vpop.f32.mrf.mxu0
        %v4255 = vadd.f32 %v4166, %v4254
        %v4256 = vpop.f32.mrf.mxu0
        %v4257 = vadd.f32 %v4168, %v4256
        %4258 = vmatmul.bf16.gmra.mxu0 %v3038
        %v4259 = vpop.f32.mrf.mxu0
        %v4260 = vadd.f32 %v4171, %v4259
        %v4261 = vpop.f32.mrf.mxu0
        %v4262 = vadd.f32 %v4173, %v4261
        %4263 = vmatmul.bf16.gmra.mxu0 %v3050
        %v4264 = vpop.f32.mrf.mxu0
        %v4265 = vadd.f32 %v4176, %v4264
        %v4266 = vpop.f32.mrf.mxu0
        %v4267 = vadd.f32 %v4178, %v4266
        %4268 = vmatmul.bf16.gmra.mxu0 %v3062
        %v4269 = vpop.f32.mrf.mxu0
        %v4270 = vadd.f32 %v4181, %v4269
        %v4271 = vpop.f32.mrf.mxu0
        %v4272 = vadd.f32 %v4183, %v4271
        %4273 = vmatmul.bf16.gmra.mxu0 %v3074
        %v4274 = vpop.f32.mrf.mxu0
        %v4275 = vadd.f32 %v4186, %v4274
        %v4276 = vpop.f32.mrf.mxu0
        %v4277 = vadd.f32 %v4188, %v4276
        %4278 = vmatmul.bf16.gmra.mxu0 %v3086
        %v4279 = vpop.f32.mrf.mxu0
        %v4280 = vadd.f32 %v4191, %v4279
        %v4281 = vpop.f32.mrf.mxu0
        %v4282 = vadd.f32 %v4193, %v4281
        %4283 = vmatmul.bf16.gmra.mxu0 %v3098
        %v4284 = vpop.f32.mrf.mxu0
        %v4285 = vadd.f32 %v4196, %v4284
        %v4286 = vpop.f32.mrf.mxu0
        %v4287 = vadd.f32 %v4198, %v4286
        %4288 = vmatmul.bf16.gmra.mxu0 %v3110
        %v4289 = vpop.f32.mrf.mxu0
        %v4290 = vadd.f32 %v4201, %v4289
        %v4291 = vpop.f32.mrf.mxu0
        %v4292 = vadd.f32 %v4203, %v4291
        %4293 = vmatmul.bf16.gmra.mxu0 %v3122
        %v4294 = vpop.f32.mrf.mxu0
        %v4295 = vadd.f32 %v4206, %v4294
        %v4296 = vpop.f32.mrf.mxu0
        %v4297 = vadd.f32 %v4208, %v4296
        %4298 = vmatmul.bf16.gmra.mxu0 %v3134
        %v4299 = vpop.f32.mrf.mxu0
        %v4300 = vadd.f32 %v4211, %v4299
        %v4301 = vpop.f32.mrf.mxu0
        %v4302 = vadd.f32 %v4213, %v4301
        %4303 = vmatmul.bf16.gmra.mxu0 %v3146
        %v4304 = vpop.f32.mrf.mxu0
        %v4305 = vadd.f32 %v4216, %v4304
        %v4306 = vpop.f32.mrf.mxu0
        %v4307 = vadd.f32 %v4218, %v4306
        %4308 = vmatmul.bf16.gmra.mxu0 %v3158
        %v4309 = vpop.f32.mrf.mxu0
        %v4310 = vadd.f32 %v4221, %v4309
        %v4311 = vpop.f32.mrf.mxu0
        %v4312 = vadd.f32 %v4223, %v4311
        %4313 = vmatmul.bf16.gmra.mxu0 %v3170
        %v4314 = vpop.f32.mrf.mxu0
        %v4315 = vadd.f32 %v4226, %v4314
        %v4316 = vpop.f32.mrf.mxu0
        %v4317 = vadd.f32 %v4228, %v4316
        %4318 = vmatmul.bf16.gmra.mxu0 %v3271
        %v4319 = vpop.f32.mrf.mxu0
        %v4320 = vadd.f32 %v4231, %v4319
        %v4321 = vpop.f32.mrf.mxu0
        %v4322 = vadd.f32 %v4233, %v4321
        %4323 = vdwg.mxu0
        %4324 = vmatpush.bf16.msra.mxu0 %v3782
        %4325 = vmatpush.bf16.msra.mxu0 %v3781
        %4326 = vmatpush.bf16.msra.mxu0 %v3780
        %4327 = vmatpush.bf16.msra.mxu0 %v3779
        %4328 = vmatpush.bf16.msra.mxu0 %v3778
        %4329 = vmatpush.bf16.msra.mxu0 %v3777
        %4330 = vmatpush.bf16.msra.mxu0 %v3776
        %4331 = vmatpush.bf16.msra.mxu0 %v3775
        %4332 = vmatmul.bf16.gmra.mxu0 %v3192
        %v4333 = vpop.f32.mrf.mxu0
        %v4334 = vadd.f32 %v4245, %v4333
        %v4335 = vpop.f32.mrf.mxu0
        %v4336 = vadd.f32 %v4247, %v4335
        %4337 = vmatmul.bf16.gmra.mxu0 %v3195
        %v4338 = vpop.f32.mrf.mxu0
        %v4339 = vadd.f32 %v4250, %v4338
        %v4340 = vpop.f32.mrf.mxu0
        %v4341 = vadd.f32 %v4252, %v4340
        %4342 = vmatmul.bf16.gmra.mxu0 %v3198
        %v4343 = vpop.f32.mrf.mxu0
        %v4344 = vadd.f32 %v4255, %v4343
        %v4345 = vpop.f32.mrf.mxu0
        %v4346 = vadd.f32 %v4257, %v4345
        %4347 = vmatmul.bf16.gmra.mxu0 %v3201
        %v4348 = vpop.f32.mrf.mxu0
        %v4349 = vadd.f32 %v4260, %v4348
        %v4350 = vpop.f32.mrf.mxu0
        %v4351 = vadd.f32 %v4262, %v4350
        %4352 = vmatmul.bf16.gmra.mxu0 %v3204
        %v4353 = vpop.f32.mrf.mxu0
        %v4354 = vadd.f32 %v4265, %v4353
        %v4355 = vpop.f32.mrf.mxu0
        %v4356 = vadd.f32 %v4267, %v4355
        %4357 = vmatmul.bf16.gmra.mxu0 %v3207
        %v4358 = vpop.f32.mrf.mxu0
        %v4359 = vadd.f32 %v4270, %v4358
        %v4360 = vpop.f32.mrf.mxu0
        %v4361 = vadd.f32 %v4272, %v4360
        %4362 = vmatmul.bf16.gmra.mxu0 %v3210
        %v4363 = vpop.f32.mrf.mxu0
        %v4364 = vadd.f32 %v4275, %v4363
        %v4365 = vpop.f32.mrf.mxu0
        %v4366 = vadd.f32 %v4277, %v4365
        %4367 = vmatmul.bf16.gmra.mxu0 %v3213
        %v4368 = vpop.f32.mrf.mxu0
        %v4369 = vadd.f32 %v4280, %v4368
        %v4370 = vpop.f32.mrf.mxu0
        %v4371 = vadd.f32 %v4282, %v4370
        %4372 = vmatmul.bf16.gmra.mxu0 %v3216
        %v4373 = vpop.f32.mrf.mxu0
        %v4374 = vadd.f32 %v4285, %v4373
        %v4375 = vpop.f32.mrf.mxu0
        %v4376 = vadd.f32 %v4287, %v4375
        %4377 = vmatmul.bf16.gmra.mxu0 %v3219
        %v4378 = vpop.f32.mrf.mxu0
        %v4379 = vadd.f32 %v4290, %v4378
        %v4380 = vpop.f32.mrf.mxu0
        %v4381 = vadd.f32 %v4292, %v4380
        %4382 = vmatmul.bf16.gmra.mxu0 %v3222
        %v4383 = vpop.f32.mrf.mxu0
        %v4384 = vadd.f32 %v4295, %v4383
        %v4385 = vpop.f32.mrf.mxu0
        %v4386 = vadd.f32 %v4297, %v4385
        %4387 = vmatmul.bf16.gmra.mxu0 %v3225
        %v4388 = vpop.f32.mrf.mxu0
        %v4389 = vadd.f32 %v4300, %v4388
        %v4390 = vpop.f32.mrf.mxu0
        %v4391 = vadd.f32 %v4302, %v4390
        %4392 = vmatmul.bf16.gmra.mxu0 %v3228
        %v4393 = vpop.f32.mrf.mxu0
        %v4394 = vadd.f32 %v4305, %v4393
        %v4395 = vpop.f32.mrf.mxu0
        %v4396 = vadd.f32 %v4307, %v4395
        %4397 = vmatmul.bf16.gmra.mxu0 %v3231
        %v4398 = vpop.f32.mrf.mxu0
        %v4399 = vadd.f32 %v4310, %v4398
        %v4400 = vpop.f32.mrf.mxu0
        %v4401 = vadd.f32 %v4312, %v4400
        %4402 = vmatmul.bf16.gmra.mxu0 %v3234
        %v4403 = vpop.f32.mrf.mxu0
        %v4404 = vadd.f32 %v4315, %v4403
        %v4405 = vpop.f32.mrf.mxu0
        %v4406 = vadd.f32 %v4317, %v4405
        %4407 = vmatmul.bf16.gmra.mxu0 %v3275
        %v4408 = vpop.f32.mrf.mxu0
        %v4409 = vadd.f32 %v4320, %v4408
        %v4410 = vpop.f32.mrf.mxu0
        %v4411 = vadd.f32 %v4322, %v4410
        %4412 = vdwg.mxu0
        %4413 = vmatpush.bf16.msra.mxu0 %v3790
        %4414 = vmatpush.bf16.msra.mxu0 %v3789
        %4415 = vmatpush.bf16.msra.mxu0 %v3788
        %4416 = vmatpush.bf16.msra.mxu0 %v3787
        %4417 = vmatpush.bf16.msra.mxu0 %v3786
        %4418 = vmatpush.bf16.msra.mxu0 %v3785
        %4419 = vmatpush.bf16.msra.mxu0 %v3784
        %4420 = vmatpush.bf16.msra.mxu0 %v3783
        %4421 = vmatmul.bf16.gmra.mxu0 %v2901
        %v4422 = vpop.f32.mrf.mxu0
        %v4423 = vadd.f32 %v4334, %v4422
        %v4424 = vpop.f32.mrf.mxu0
        %v4425 = vadd.f32 %v4336, %v4424
        %4426 = vmatmul.bf16.gmra.mxu0 %v2902
        %v4427 = vpop.f32.mrf.mxu0
        %v4428 = vadd.f32 %v4339, %v4427
        %v4429 = vpop.f32.mrf.mxu0
        %v4430 = vadd.f32 %v4341, %v4429
        %4431 = vmatmul.bf16.gmra.mxu0 %v2903
        %v4432 = vpop.f32.mrf.mxu0
        %v4433 = vadd.f32 %v4344, %v4432
        %v4434 = vpop.f32.mrf.mxu0
        %v4435 = vadd.f32 %v4346, %v4434
        %4436 = vmatmul.bf16.gmra.mxu0 %v2904
        %v4437 = vpop.f32.mrf.mxu0
        %v4438 = vadd.f32 %v4349, %v4437
        %v4439 = vpop.f32.mrf.mxu0
        %v4440 = vadd.f32 %v4351, %v4439
        %4441 = vmatmul.bf16.gmra.mxu0 %v2905
        %v4442 = vpop.f32.mrf.mxu0
        %v4443 = vadd.f32 %v4354, %v4442
        %v4444 = vpop.f32.mrf.mxu0
        %v4445 = vadd.f32 %v4356, %v4444
        %4446 = vmatmul.bf16.gmra.mxu0 %v2906
        %v4447 = vpop.f32.mrf.mxu0
        %v4448 = vadd.f32 %v4359, %v4447
        %v4449 = vpop.f32.mrf.mxu0
        %v4450 = vadd.f32 %v4361, %v4449
        %4451 = vmatmul.bf16.gmra.mxu0 %v2907
        %v4452 = vpop.f32.mrf.mxu0
        %v4453 = vadd.f32 %v4364, %v4452
        %v4454 = vpop.f32.mrf.mxu0
        %v4455 = vadd.f32 %v4366, %v4454
        %4456 = vmatmul.bf16.gmra.mxu0 %v2908
        %v4457 = vpop.f32.mrf.mxu0
        %v4458 = vadd.f32 %v4369, %v4457
        %v4459 = vpop.f32.mrf.mxu0
        %v4460 = vadd.f32 %v4371, %v4459
        %4461 = vmatmul.bf16.gmra.mxu0 %v2909
        %v4462 = vpop.f32.mrf.mxu0
        %v4463 = vadd.f32 %v4374, %v4462
        %v4464 = vpop.f32.mrf.mxu0
        %v4465 = vadd.f32 %v4376, %v4464
        %4466 = vmatmul.bf16.gmra.mxu0 %v2910
        %v4467 = vpop.f32.mrf.mxu0
        %v4468 = vadd.f32 %v4379, %v4467
        %v4469 = vpop.f32.mrf.mxu0
        %v4470 = vadd.f32 %v4381, %v4469
        %4471 = vmatmul.bf16.gmra.mxu0 %v2911
        %v4472 = vpop.f32.mrf.mxu0
        %v4473 = vadd.f32 %v4384, %v4472
        %v4474 = vpop.f32.mrf.mxu0
        %v4475 = vadd.f32 %v4386, %v4474
        %4476 = vmatmul.bf16.gmra.mxu0 %v2912
        %v4477 = vpop.f32.mrf.mxu0
        %v4478 = vadd.f32 %v4389, %v4477
        %v4479 = vpop.f32.mrf.mxu0
        %v4480 = vadd.f32 %v4391, %v4479
        %4481 = vmatmul.bf16.gmra.mxu0 %v2913
        %v4482 = vpop.f32.mrf.mxu0
        %v4483 = vadd.f32 %v4394, %v4482
        %v4484 = vpop.f32.mrf.mxu0
        %v4485 = vadd.f32 %v4396, %v4484
        %4486 = vmatmul.bf16.gmra.mxu0 %v2914
        %v4487 = vpop.f32.mrf.mxu0
        %v4488 = vadd.f32 %v4399, %v4487
        %v4489 = vpop.f32.mrf.mxu0
        %v4490 = vadd.f32 %v4401, %v4489
        %4491 = vmatmul.bf16.gmra.mxu0 %v3255
        %v4492 = vpop.f32.mrf.mxu0
        %v4493 = vadd.f32 %v4404, %v4492
        %v4494 = vpop.f32.mrf.mxu0
        %v4495 = vadd.f32 %v4406, %v4494
        %4496 = vmatmul.bf16.gmra.mxu0 %v3281
        %v4497 = vpop.f32.mrf.mxu0
        %v4498 = vadd.f32 %v4409, %v4497
        %v4499 = vpop.f32.mrf.mxu0
        %v4500 = vadd.f32 %v4411, %v4499
        %4501 = vdwg.mxu0
        %4502 = vmatpush.bf16.msra.mxu0 %v3798
        %4503 = vmatpush.bf16.msra.mxu0 %v3797
        %4504 = vmatpush.bf16.msra.mxu0 %v3796
        %4505 = vmatpush.bf16.msra.mxu0 %v3795
        %4506 = vmatpush.bf16.msra.mxu0 %v3794
        %4507 = vmatpush.bf16.msra.mxu0 %v3793
        %4508 = vmatpush.bf16.msra.mxu0 %v3792
        %4509 = vmatpush.bf16.msra.mxu0 %v3791
        %4510 = vmatmul.bf16.gmra.mxu0 %v3014
        %v4511 = vpop.f32.mrf.mxu0
        %v4512 = vadd.f32 %v4423, %v4511
        %v4513 = vpop.f32.mrf.mxu0
        %v4514 = vadd.f32 %v4425, %v4513
        %4515 = vmatmul.bf16.gmra.mxu0 %v3026
        %v4516 = vpop.f32.mrf.mxu0
        %v4517 = vadd.f32 %v4428, %v4516
        %v4518 = vpop.f32.mrf.mxu0
        %v4519 = vadd.f32 %v4430, %v4518
        %4520 = vmatmul.bf16.gmra.mxu0 %v3038
        %v4521 = vpop.f32.mrf.mxu0
        %v4522 = vadd.f32 %v4433, %v4521
        %v4523 = vpop.f32.mrf.mxu0
        %v4524 = vadd.f32 %v4435, %v4523
        %4525 = vmatmul.bf16.gmra.mxu0 %v3050
        %v4526 = vpop.f32.mrf.mxu0
        %v4527 = vadd.f32 %v4438, %v4526
        %v4528 = vpop.f32.mrf.mxu0
        %v4529 = vadd.f32 %v4440, %v4528
        %4530 = vmatmul.bf16.gmra.mxu0 %v3062
        %v4531 = vpop.f32.mrf.mxu0
        %v4532 = vadd.f32 %v4443, %v4531
        %v4533 = vpop.f32.mrf.mxu0
        %v4534 = vadd.f32 %v4445, %v4533
        %4535 = vmatmul.bf16.gmra.mxu0 %v3074
        %v4536 = vpop.f32.mrf.mxu0
        %v4537 = vadd.f32 %v4448, %v4536
        %v4538 = vpop.f32.mrf.mxu0
        %v4539 = vadd.f32 %v4450, %v4538
        %4540 = vmatmul.bf16.gmra.mxu0 %v3086
        %v4541 = vpop.f32.mrf.mxu0
        %v4542 = vadd.f32 %v4453, %v4541
        %v4543 = vpop.f32.mrf.mxu0
        %v4544 = vadd.f32 %v4455, %v4543
        %4545 = vmatmul.bf16.gmra.mxu0 %v3098
        %v4546 = vpop.f32.mrf.mxu0
        %v4547 = vadd.f32 %v4458, %v4546
        %v4548 = vpop.f32.mrf.mxu0
        %v4549 = vadd.f32 %v4460, %v4548
        %4550 = vmatmul.bf16.gmra.mxu0 %v3110
        %v4551 = vpop.f32.mrf.mxu0
        %v4552 = vadd.f32 %v4463, %v4551
        %v4553 = vpop.f32.mrf.mxu0
        %v4554 = vadd.f32 %v4465, %v4553
        %4555 = vmatmul.bf16.gmra.mxu0 %v3122
        %v4556 = vpop.f32.mrf.mxu0
        %v4557 = vadd.f32 %v4468, %v4556
        %v4558 = vpop.f32.mrf.mxu0
        %v4559 = vadd.f32 %v4470, %v4558
        %4560 = vmatmul.bf16.gmra.mxu0 %v3134
        %v4561 = vpop.f32.mrf.mxu0
        %v4562 = vadd.f32 %v4473, %v4561
        %v4563 = vpop.f32.mrf.mxu0
        %v4564 = vadd.f32 %v4475, %v4563
        %4565 = vmatmul.bf16.gmra.mxu0 %v3146
        %v4566 = vpop.f32.mrf.mxu0
        %v4567 = vadd.f32 %v4478, %v4566
        %v4568 = vpop.f32.mrf.mxu0
        %v4569 = vadd.f32 %v4480, %v4568
        %4570 = vmatmul.bf16.gmra.mxu0 %v3158
        %v4571 = vpop.f32.mrf.mxu0
        %v4572 = vadd.f32 %v4483, %v4571
        %v4573 = vpop.f32.mrf.mxu0
        %v4574 = vadd.f32 %v4485, %v4573
        %4575 = vmatmul.bf16.gmra.mxu0 %v3170
        %v4576 = vpop.f32.mrf.mxu0
        %v4577 = vadd.f32 %v4488, %v4576
        %v4578 = vpop.f32.mrf.mxu0
        %v4579 = vadd.f32 %v4490, %v4578
        %4580 = vmatmul.bf16.gmra.mxu0 %v3271
        %v4581 = vpop.f32.mrf.mxu0
        %v4582 = vadd.f32 %v4493, %v4581
        %v4583 = vpop.f32.mrf.mxu0
        %v4584 = vadd.f32 %v4495, %v4583
        %4585 = vmatmul.bf16.gmra.mxu0 %v3297
        %v4586 = vpop.f32.mrf.mxu0
        %v4587 = vadd.f32 %v4498, %v4586
        %v4588 = vpop.f32.mrf.mxu0
        %v4589 = vadd.f32 %v4500, %v4588
        %4590 = vdwg.mxu0
        %4591 = vmatpush.bf16.msra.mxu0 %v3806
        %4592 = vmatpush.bf16.msra.mxu0 %v3805
        %4593 = vmatpush.bf16.msra.mxu0 %v3804
        %4594 = vmatpush.bf16.msra.mxu0 %v3803
        %4595 = vmatpush.bf16.msra.mxu0 %v3802
        %4596 = vmatpush.bf16.msra.mxu0 %v3801
        %4597 = vmatpush.bf16.msra.mxu0 %v3800
        %4598 = vmatpush.bf16.msra.mxu0 %v3799
        %4599 = vmatmul.bf16.gmra.mxu0 %v3195
        %v4600 = vpop.f32.mrf.mxu0
        %v4601 = vadd.f32 %v4512, %v4600
        %v4602 = vpop.f32.mrf.mxu0
        %v4603 = vadd.f32 %v4514, %v4602
        %4604 = vmatmul.bf16.gmra.mxu0 %v3198
        %v4605 = vpop.f32.mrf.mxu0
        %v4606 = vadd.f32 %v4517, %v4605
        %v4607 = vpop.f32.mrf.mxu0
        %v4608 = vadd.f32 %v4519, %v4607
        %4609 = vmatmul.bf16.gmra.mxu0 %v3201
        %v4610 = vpop.f32.mrf.mxu0
        %v4611 = vadd.f32 %v4522, %v4610
        %v4612 = vpop.f32.mrf.mxu0
        %v4613 = vadd.f32 %v4524, %v4612
        %4614 = vmatmul.bf16.gmra.mxu0 %v3204
        %v4615 = vpop.f32.mrf.mxu0
        %v4616 = vadd.f32 %v4527, %v4615
        %v4617 = vpop.f32.mrf.mxu0
        %v4618 = vadd.f32 %v4529, %v4617
        %4619 = vmatmul.bf16.gmra.mxu0 %v3207
        %v4620 = vpop.f32.mrf.mxu0
        %v4621 = vadd.f32 %v4532, %v4620
        %v4622 = vpop.f32.mrf.mxu0
        %v4623 = vadd.f32 %v4534, %v4622
        %4624 = vmatmul.bf16.gmra.mxu0 %v3210
        %v4625 = vpop.f32.mrf.mxu0
        %v4626 = vadd.f32 %v4537, %v4625
        %v4627 = vpop.f32.mrf.mxu0
        %v4628 = vadd.f32 %v4539, %v4627
        %4629 = vmatmul.bf16.gmra.mxu0 %v3213
        %v4630 = vpop.f32.mrf.mxu0
        %v4631 = vadd.f32 %v4542, %v4630
        %v4632 = vpop.f32.mrf.mxu0
        %v4633 = vadd.f32 %v4544, %v4632
        %4634 = vmatmul.bf16.gmra.mxu0 %v3216
        %v4635 = vpop.f32.mrf.mxu0
        %v4636 = vadd.f32 %v4547, %v4635
        %v4637 = vpop.f32.mrf.mxu0
        %v4638 = vadd.f32 %v4549, %v4637
        %4639 = vmatmul.bf16.gmra.mxu0 %v3219
        %v4640 = vpop.f32.mrf.mxu0
        %v4641 = vadd.f32 %v4552, %v4640
        %v4642 = vpop.f32.mrf.mxu0
        %v4643 = vadd.f32 %v4554, %v4642
        %4644 = vmatmul.bf16.gmra.mxu0 %v3222
        %v4645 = vpop.f32.mrf.mxu0
        %v4646 = vadd.f32 %v4557, %v4645
        %v4647 = vpop.f32.mrf.mxu0
        %v4648 = vadd.f32 %v4559, %v4647
        %4649 = vmatmul.bf16.gmra.mxu0 %v3225
        %v4650 = vpop.f32.mrf.mxu0
        %v4651 = vadd.f32 %v4562, %v4650
        %v4652 = vpop.f32.mrf.mxu0
        %v4653 = vadd.f32 %v4564, %v4652
        %4654 = vmatmul.bf16.gmra.mxu0 %v3228
        %v4655 = vpop.f32.mrf.mxu0
        %v4656 = vadd.f32 %v4567, %v4655
        %v4657 = vpop.f32.mrf.mxu0
        %v4658 = vadd.f32 %v4569, %v4657
        %4659 = vmatmul.bf16.gmra.mxu0 %v3231
        %v4660 = vpop.f32.mrf.mxu0
        %v4661 = vadd.f32 %v4572, %v4660
        %v4662 = vpop.f32.mrf.mxu0
        %v4663 = vadd.f32 %v4574, %v4662
        %4664 = vmatmul.bf16.gmra.mxu0 %v3234
        %v4665 = vpop.f32.mrf.mxu0
        %v4666 = vadd.f32 %v4577, %v4665
        %v4667 = vpop.f32.mrf.mxu0
        %v4668 = vadd.f32 %v4579, %v4667
        %4669 = vmatmul.bf16.gmra.mxu0 %v3275
        %v4670 = vpop.f32.mrf.mxu0
        %v4671 = vadd.f32 %v4582, %v4670
        %v4672 = vpop.f32.mrf.mxu0
        %v4673 = vadd.f32 %v4584, %v4672
        %4674 = vmatmul.bf16.gmra.mxu0 %v3301
        %v4675 = vpop.f32.mrf.mxu0
        %v4676 = vadd.f32 %v4587, %v4675
        %v4677 = vpop.f32.mrf.mxu0
        %v4678 = vadd.f32 %v4589, %v4677
        %4679 = vdwg.mxu0
        %v4680 = vld [vmem:[%s5] sm:$0x1]
        %v4682 = vperm.slane %v4680, 0
        %v4684 = vmul.f32 %v4601, %v4682
        %v4685 = vmul.f32 %v4603, %v4682
        %v4686 = vmul.f32 %v4606, %v4682
        %v4687 = vmul.f32 %v4608, %v4682
        %v4688 = vmul.f32 %v4611, %v4682
        %v4689 = vmul.f32 %v4613, %v4682
        %v4690 = vmul.f32 %v4616, %v4682
        %v4691 = vmul.f32 %v4618, %v4682
        %v4692 = vmul.f32 %v4621, %v4682
        %v4693 = vmul.f32 %v4623, %v4682
        %v4694 = vmul.f32 %v4626, %v4682
        %v4695 = vmul.f32 %v4628, %v4682
        %v4696 = vmul.f32 %v4631, %v4682
        %v4697 = vmul.f32 %v4633, %v4682
        %v4698 = vmul.f32 %v4636, %v4682
        %v4699 = vmul.f32 %v4638, %v4682
        %v4700 = vmul.f32 %v4641, %v4682
        %v4701 = vmul.f32 %v4643, %v4682
        %v4702 = vmul.f32 %v4646, %v4682
        %v4703 = vmul.f32 %v4648, %v4682
        %v4704 = vmul.f32 %v4651, %v4682
        %v4705 = vmul.f32 %v4653, %v4682
        %v4706 = vmul.f32 %v4656, %v4682
        %v4707 = vmul.f32 %v4658, %v4682
        %v4708 = vmul.f32 %v4661, %v4682
        %v4709 = vmul.f32 %v4663, %v4682
        %v4710 = vmul.f32 %v4666, %v4682
        %v4711 = vmul.f32 %v4668, %v4682
        %v4712 = vmul.f32 %v4671, %v4682
        %v4713 = vmul.f32 %v4673, %v4682
        %v4714 = vmul.f32 %v4676, %v4682
        %v4715 = vmul.f32 %v4678, %v4682
        %v4716 = vld [vmem:[%s6] sm:$0x1]
        %v4718 = vperm.slane %v4716, 0
        %v4720 = vadd.f32 %v4684, %v4718
        %v4721 = vadd.f32 %v4685, %v4718
        %v4722 = vadd.f32 %v4686, %v4718
        %v4723 = vadd.f32 %v4687, %v4718
        %v4724 = vadd.f32 %v4688, %v4718
        %v4725 = vadd.f32 %v4689, %v4718
        %v4726 = vadd.f32 %v4690, %v4718
        %v4727 = vadd.f32 %v4691, %v4718
        %v4728 = vadd.f32 %v4692, %v4718
        %v4729 = vadd.f32 %v4693, %v4718
        %v4730 = vadd.f32 %v4694, %v4718
        %v4731 = vadd.f32 %v4695, %v4718
        %v4732 = vadd.f32 %v4696, %v4718
        %v4733 = vadd.f32 %v4697, %v4718
        %v4734 = vadd.f32 %v4698, %v4718
        %v4735 = vadd.f32 %v4699, %v4718
        %v4736 = vadd.f32 %v4700, %v4718
        %v4737 = vadd.f32 %v4701, %v4718
        %v4738 = vadd.f32 %v4702, %v4718
        %v4739 = vadd.f32 %v4703, %v4718
        %v4740 = vadd.f32 %v4704, %v4718
        %v4741 = vadd.f32 %v4705, %v4718
        %v4742 = vadd.f32 %v4706, %v4718
        %v4743 = vadd.f32 %v4707, %v4718
        %v4744 = vadd.f32 %v4708, %v4718
        %v4745 = vadd.f32 %v4709, %v4718
        %v4746 = vadd.f32 %v4710, %v4718
        %v4747 = vadd.f32 %v4711, %v4718
        %v4748 = vadd.f32 %v4712, %v4718
        %v4749 = vadd.f32 %v4713, %v4718
        %v4750 = vadd.f32 %v4714, %v4718
        %v4751 = vadd.f32 %v4715, %v4718
        %vm4752 = vsmask.f32 3328
        %vm4753 = vsmask.f32 7440
        %vm4754 = vmor %vm4752, %vm4753
        %v4756 = vshrl.u32 %v638, 16
        %v4758 = vrot.slane %v4756, 4
        %v4759 = vshll.u32 %v638, 16
        %v4761 = vrot.slane %v4759, 5
        %v4762 = vor.u32 %v4758, %v4761
        %v4763 = vrot.slane %v4762, 4
        %v4765 = vshll.u32 %v639, 16
        %v4767 = vrot.slane %v4765, 5
        %v4768 = vsel %vm4754, %v4763, %v4767
        %v4769 = vshrl.u32 %v639, 16
        %v4771 = vrot.slane %v4769, 4
        %v4772 = vor.u32 %v4771, %v4767
        %v4773 = vrot.slane %v4772, 4
        %v4775 = vshll.u32 %v640, 16
        %v4777 = vrot.slane %v4775, 5
        %v4778 = vsel %vm4754, %v4773, %v4777
        %v4780 = vshrl.u32 %v641, 16
        %v4782 = vrot.slane %v4780, 4
        %v4783 = vshll.u32 %v641, 16
        %v4785 = vrot.slane %v4783, 5
        %v4786 = vor.u32 %v4782, %v4785
        %v4787 = vrot.slane %v4786, 4
        %v4789 = vshll.u32 %v642, 16
        %v4791 = vrot.slane %v4789, 5
        %v4792 = vsel %vm4754, %v4787, %v4791
        %v4793 = vshrl.u32 %v642, 16
        %v4795 = vrot.slane %v4793, 4
        %v4796 = vor.u32 %v4795, %v4791
        %v4797 = vrot.slane %v4796, 4
        %v4799 = vshll.u32 %v643, 16
        %v4801 = vrot.slane %v4799, 5
        %v4802 = vsel %vm4754, %v4797, %v4801
        %v4804 = vshrl.u32 %v644, 16
        %v4806 = vrot.slane %v4804, 4
        %v4807 = vshll.u32 %v644, 16
        %v4809 = vrot.slane %v4807, 5
        %v4810 = vor.u32 %v4806, %v4809
        %v4811 = vrot.slane %v4810, 4
        %v4813 = vshll.u32 %v645, 16
        %v4815 = vrot.slane %v4813, 5
        %v4816 = vsel %vm4754, %v4811, %v4815
        %v4817 = vshrl.u32 %v645, 16
        %v4819 = vrot.slane %v4817, 4
        %v4820 = vor.u32 %v4819, %v4815
        %v4821 = vrot.slane %v4820, 4
        %v4823 = vshll.u32 %v646, 16
        %v4825 = vrot.slane %v4823, 5
        %v4826 = vsel %vm4754, %v4821, %v4825
        %v4828 = vshrl.u32 %v647, 16
        %v4830 = vrot.slane %v4828, 4
        %v4831 = vshll.u32 %v647, 16
        %v4833 = vrot.slane %v4831, 5
        %v4834 = vor.u32 %v4830, %v4833
        %v4835 = vrot.slane %v4834, 4
        %v4837 = vshll.u32 %v648, 16
        %v4839 = vrot.slane %v4837, 5
        %v4840 = vsel %vm4754, %v4835, %v4839
        %v4841 = vshrl.u32 %v648, 16
        %v4843 = vrot.slane %v4841, 4
        %v4844 = vor.u32 %v4843, %v4839
        %v4845 = vrot.slane %v4844, 4
        %v4847 = vshll.u32 %v649, 16
        %v4849 = vrot.slane %v4847, 5
        %v4850 = vsel %vm4754, %v4845, %v4849
        %v4852 = vshrl.u32 %v650, 16
        %v4854 = vrot.slane %v4852, 4
        %v4855 = vshll.u32 %v650, 16
        %v4857 = vrot.slane %v4855, 5
        %v4858 = vor.u32 %v4854, %v4857
        %v4859 = vrot.slane %v4858, 4
        %v4861 = vshll.u32 %v651, 16
        %v4863 = vrot.slane %v4861, 5
        %v4864 = vsel %vm4754, %v4859, %v4863
        %v4865 = vshrl.u32 %v651, 16
        %v4867 = vrot.slane %v4865, 4
        %v4868 = vor.u32 %v4867, %v4863
        %v4869 = vrot.slane %v4868, 4
        %v4871 = vshll.u32 %v652, 16
        %v4873 = vrot.slane %v4871, 5
        %v4874 = vsel %vm4754, %v4869, %v4873
        %v4876 = vshrl.u32 %v653, 16
        %v4878 = vrot.slane %v4876, 4
        %v4879 = vshll.u32 %v653, 16
        %v4881 = vrot.slane %v4879, 5
        %v4882 = vor.u32 %v4878, %v4881
        %v4883 = vrot.slane %v4882, 4
        %v4885 = vshll.u32 %v654, 16
        %v4887 = vrot.slane %v4885, 5
        %v4888 = vsel %vm4754, %v4883, %v4887
        %v4889 = vshrl.u32 %v654, 16
        %v4891 = vrot.slane %v4889, 4
        %v4892 = vor.u32 %v4891, %v4887
        %v4893 = vrot.slane %v4892, 4
        %v4895 = vshll.u32 %v655, 16
        %v4897 = vrot.slane %v4895, 5
        %v4898 = vsel %vm4754, %v4893, %v4897
        %v4900 = vshrl.u32 %v656, 16
        %v4902 = vrot.slane %v4900, 4
        %v4903 = vshll.u32 %v656, 16
        %v4905 = vrot.slane %v4903, 5
        %v4906 = vor.u32 %v4902, %v4905
        %v4907 = vrot.slane %v4906, 4
        %v4909 = vshll.u32 %v657, 16
        %v4911 = vrot.slane %v4909, 5
        %v4912 = vsel %vm4754, %v4907, %v4911
        %v4913 = vshrl.u32 %v657, 16
        %v4915 = vrot.slane %v4913, 4
        %v4916 = vor.u32 %v4915, %v4911
        %v4917 = vrot.slane %v4916, 4
        %v4919 = vshll.u32 %v658, 16
        %v4921 = vrot.slane %v4919, 5
        %v4922 = vsel %vm4754, %v4917, %v4921
        %v4924 = vshrl.u32 %v659, 16
        %v4926 = vrot.slane %v4924, 4
        %v4927 = vshll.u32 %v659, 16
        %v4929 = vrot.slane %v4927, 5
        %v4930 = vor.u32 %v4926, %v4929
        %v4931 = vrot.slane %v4930, 4
        %v4933 = vshll.u32 %v660, 16
        %v4935 = vrot.slane %v4933, 5
        %v4936 = vsel %vm4754, %v4931, %v4935
        %v4937 = vshrl.u32 %v660, 16
        %v4939 = vrot.slane %v4937, 4
        %v4940 = vor.u32 %v4939, %v4935
        %v4941 = vrot.slane %v4940, 4
        %v4943 = vshll.u32 %v661, 16
        %v4945 = vrot.slane %v4943, 5
        %v4946 = vsel %vm4754, %v4941, %v4945
        %v4948 = vshrl.u32 %v662, 16
        %v4950 = vrot.slane %v4948, 4
        %v4951 = vshll.u32 %v662, 16
        %v4953 = vrot.slane %v4951, 5
        %v4954 = vor.u32 %v4950, %v4953
        %v4955 = vrot.slane %v4954, 4
        %v4957 = vshll.u32 %v663, 16
        %v4959 = vrot.slane %v4957, 5
        %v4960 = vsel %vm4754, %v4955, %v4959
        %v4961 = vshrl.u32 %v663, 16
        %v4963 = vrot.slane %v4961, 4
        %v4964 = vor.u32 %v4963, %v4959
        %v4965 = vrot.slane %v4964, 4
        %v4967 = vshll.u32 %v664, 16
        %v4969 = vrot.slane %v4967, 5
        %v4970 = vsel %vm4754, %v4965, %v4969
        %v4972 = vshrl.u32 %v665, 16
        %v4974 = vrot.slane %v4972, 4
        %v4975 = vshll.u32 %v665, 16
        %v4977 = vrot.slane %v4975, 5
        %v4978 = vor.u32 %v4974, %v4977
        %v4979 = vrot.slane %v4978, 4
        %v4981 = vshll.u32 %v666, 16
        %v4983 = vrot.slane %v4981, 5
        %v4984 = vsel %vm4754, %v4979, %v4983
        %v4985 = vshrl.u32 %v666, 16
        %v4987 = vrot.slane %v4985, 4
        %v4988 = vor.u32 %v4987, %v4983
        %v4989 = vrot.slane %v4988, 4
        %v4991 = vshll.u32 %v667, 16
        %v4993 = vrot.slane %v4991, 5
        %v4994 = vsel %vm4754, %v4989, %v4993
        %v4996 = vshrl.u32 %v668, 16
        %v4998 = vrot.slane %v4996, 4
        %v4999 = vshll.u32 %v668, 16
        %v5001 = vrot.slane %v4999, 5
        %v5002 = vor.u32 %v4998, %v5001
        %v5003 = vrot.slane %v5002, 4
        %v5005 = vshll.u32 %v669, 16
        %v5007 = vrot.slane %v5005, 5
        %v5008 = vsel %vm4754, %v5003, %v5007
        %v5009 = vshrl.u32 %v669, 16
        %v5011 = vrot.slane %v5009, 4
        %v5012 = vor.u32 %v5011, %v5007
        %v5013 = vrot.slane %v5012, 4
        %v5015 = vshll.u32 %v670, 16
        %v5017 = vrot.slane %v5015, 5
        %v5018 = vsel %vm4754, %v5013, %v5017
        %v5020 = vshrl.u32 %v671, 16
        %v5022 = vrot.slane %v5020, 4
        %v5023 = vshll.u32 %v671, 16
        %v5025 = vrot.slane %v5023, 5
        %v5026 = vor.u32 %v5022, %v5025
        %v5027 = vrot.slane %v5026, 4
        %v5029 = vshll.u32 %v672, 16
        %v5031 = vrot.slane %v5029, 5
        %v5032 = vsel %vm4754, %v5027, %v5031
        %v5033 = vshrl.u32 %v672, 16
        %v5035 = vrot.slane %v5033, 4
        %v5036 = vor.u32 %v5035, %v5031
        %v5037 = vrot.slane %v5036, 4
        %v5039 = vshll.u32 %v673, 16
        %v5041 = vrot.slane %v5039, 5
        %v5042 = vsel %vm4754, %v5037, %v5041
        %v5044 = vshrl.u32 %v674, 16
        %v5046 = vrot.slane %v5044, 4
        %v5047 = vshll.u32 %v674, 16
        %v5049 = vrot.slane %v5047, 5
        %v5050 = vor.u32 %v5046, %v5049
        %v5051 = vrot.slane %v5050, 4
        %v5053 = vshll.u32 %v675, 16
        %v5055 = vrot.slane %v5053, 5
        %v5056 = vsel %vm4754, %v5051, %v5055
        %v5057 = vshrl.u32 %v675, 16
        %v5059 = vrot.slane %v5057, 4
        %v5060 = vor.u32 %v5059, %v5055
        %v5061 = vrot.slane %v5060, 4
        %v5063 = vshll.u32 %v676, 16
        %v5065 = vrot.slane %v5063, 5
        %v5066 = vsel %vm4754, %v5061, %v5065
        %v5068 = vshrl.u32 %v677, 16
        %v5070 = vrot.slane %v5068, 4
        %v5071 = vshll.u32 %v677, 16
        %v5073 = vrot.slane %v5071, 5
        %v5074 = vor.u32 %v5070, %v5073
        %v5075 = vrot.slane %v5074, 4
        %v5077 = vshll.u32 %v678, 16
        %v5079 = vrot.slane %v5077, 5
        %v5080 = vsel %vm4754, %v5075, %v5079
        %v5081 = vshrl.u32 %v678, 16
        %v5083 = vrot.slane %v5081, 4
        %v5084 = vor.u32 %v5083, %v5079
        %v5085 = vrot.slane %v5084, 4
        %v5087 = vshll.u32 %v679, 16
        %v5089 = vrot.slane %v5087, 5
        %v5090 = vsel %vm4754, %v5085, %v5089
        %v5092 = vshrl.u32 %v680, 16
        %v5094 = vrot.slane %v5092, 4
        %v5095 = vshll.u32 %v680, 16
        %v5097 = vrot.slane %v5095, 5
        %v5098 = vor.u32 %v5094, %v5097
        %v5099 = vrot.slane %v5098, 4
        %v5101 = vshll.u32 %v681, 16
        %v5103 = vrot.slane %v5101, 5
        %v5104 = vsel %vm4754, %v5099, %v5103
        %v5105 = vshrl.u32 %v681, 16
        %v5107 = vrot.slane %v5105, 4
        %v5108 = vor.u32 %v5107, %v5103
        %v5109 = vrot.slane %v5108, 4
        %v5111 = vshll.u32 %v682, 16
        %v5113 = vrot.slane %v5111, 5
        %v5114 = vsel %vm4754, %v5109, %v5113
        %v5116 = vshrl.u32 %v683, 16
        %v5118 = vrot.slane %v5116, 4
        %v5119 = vshll.u32 %v683, 16
        %v5121 = vrot.slane %v5119, 5
        %v5122 = vor.u32 %v5118, %v5121
        %v5123 = vrot.slane %v5122, 4
        %v5125 = vshll.u32 %v684, 16
        %v5127 = vrot.slane %v5125, 5
        %v5128 = vsel %vm4754, %v5123, %v5127
        %v5129 = vshrl.u32 %v684, 16
        %v5131 = vrot.slane %v5129, 4
        %v5132 = vor.u32 %v5131, %v5127
        %v5133 = vrot.slane %v5132, 4
        %v5135 = vshll.u32 %v685, 16
        %v5137 = vrot.slane %v5135, 5
        %v5138 = vsel %vm4754, %v5133, %v5137
        %v5139 = vld [vmem:[#allocation10] sm:$0xf]
        %v5140 = vld [vmem:[#allocation10 + $0x4] sm:$0xf]
        %v5141 = vld [vmem:[#allocation10 + $0x8] sm:$0xf]
        %v5142 = vld [vmem:[#allocation10 + $0xc] sm:$0xf]
        %v5143 = vld [vmem:[#allocation10 + $0x10] sm:$0xf]
        %v5144 = vld [vmem:[#allocation10 + $0x14] sm:$0xf]
        %v5145 = vld [vmem:[#allocation10 + $0x18] sm:$0xf]
        %v5146 = vld [vmem:[#allocation10 + $0x1c] sm:$0xf]
        %v5147 = vld [vmem:[#allocation10 + $0x20] sm:$0xf]
        %v5148 = vld [vmem:[#allocation10 + $0x24] sm:$0xf]
        %v5149 = vld [vmem:[#allocation10 + $0x28] sm:$0xf]
        %v5150 = vld [vmem:[#allocation10 + $0x2c] sm:$0xf]
        %v5151 = vld [vmem:[#allocation10 + $0x30] sm:$0xf]
        %v5152 = vld [vmem:[#allocation10 + $0x34] sm:$0xf]
        %v5153 = vld [vmem:[#allocation10 + $0x38] sm:$0xf]
        %v5154 = vld [vmem:[#allocation10 + $0x3c] sm:$0xf]
        %v5155 = vunpack.c.l.b16 %v4768
        %v5156 = vunpack.c.l.b16 %v4778
        %v5157 = vunpack.c.l.b16 %v4792
        %v5158 = vunpack.c.l.b16 %v4802
        %v5159 = vunpack.c.l.b16 %v4816
        %v5160 = vunpack.c.l.b16 %v4826
        %v5161 = vunpack.c.l.b16 %v4840
        %v5162 = vunpack.c.l.b16 %v4850
        %v5163 = vunpack.c.l.b16 %v4864
        %v5164 = vunpack.c.l.b16 %v4874
        %v5165 = vunpack.c.l.b16 %v4888
        %v5166 = vunpack.c.l.b16 %v4898
        %v5167 = vunpack.c.l.b16 %v4912
        %v5168 = vunpack.c.l.b16 %v4922
        %v5169 = vunpack.c.l.b16 %v4936
        %v5170 = vunpack.c.l.b16 %v4946
        %v5171 = vunpack.c.l.b16 %v4960
        %v5172 = vunpack.c.l.b16 %v4970
        %v5173 = vunpack.c.l.b16 %v4984
        %v5174 = vunpack.c.l.b16 %v4994
        %v5175 = vunpack.c.l.b16 %v5008
        %v5176 = vunpack.c.l.b16 %v5018
        %v5177 = vunpack.c.l.b16 %v5032
        %v5178 = vunpack.c.l.b16 %v5042
        %v5179 = vunpack.c.l.b16 %v5056
        %v5180 = vunpack.c.l.b16 %v5066
        %v5181 = vunpack.c.l.b16 %v5080
        %v5182 = vunpack.c.l.b16 %v5090
        %v5183 = vunpack.c.l.b16 %v5104
        %v5184 = vunpack.c.l.b16 %v5114
        %v5185 = vunpack.c.l.b16 %v5128
        %v5186 = vunpack.c.l.b16 %v5138
        %v5187 = vpack.c.b16 %v5156, %v5155
        %v5188 = vpack.c.b16 %v5158, %v5157
        %v5189 = vpack.c.b16 %v5160, %v5159
        %v5190 = vpack.c.b16 %v5162, %v5161
        %v5191 = vpack.c.b16 %v5164, %v5163
        %v5192 = vpack.c.b16 %v5166, %v5165
        %v5193 = vpack.c.b16 %v5168, %v5167
        %v5194 = vpack.c.b16 %v5170, %v5169
        %v5195 = vpack.c.b16 %v5172, %v5171
        %v5196 = vpack.c.b16 %v5174, %v5173
        %v5197 = vpack.c.b16 %v5176, %v5175
        %v5198 = vpack.c.b16 %v5178, %v5177
        %v5199 = vpack.c.b16 %v5180, %v5179
        %v5200 = vpack.c.b16 %v5182, %v5181
        %v5201 = vpack.c.b16 %v5184, %v5183
        %v5202 = vpack.c.b16 %v5186, %v5185
        %v5235 = vunpack.c.l.b16 %v5139
        %v5236 = vunpack.c.l.b16 %v5140
        %v5237 = vunpack.c.l.b16 %v5141
        %v5238 = vunpack.c.l.b16 %v5142
        %v5239 = vunpack.c.l.b16 %v5143
        %v5240 = vunpack.c.l.b16 %v5144
        %v5241 = vunpack.c.l.b16 %v5145
        %v5242 = vunpack.c.l.b16 %v5146
        %v5243 = vunpack.c.l.b16 %v5147
        %v5244 = vunpack.c.l.b16 %v5148
        %v5245 = vunpack.c.l.b16 %v5149
        %v5246 = vunpack.c.l.b16 %v5150
        %v5247 = vunpack.c.l.b16 %v5151
        %v5248 = vunpack.c.l.b16 %v5152
        %v5249 = vunpack.c.l.b16 %v5153
        %v5250 = vunpack.c.l.b16 %v5154
        %v5251 = vpack.c.b16 %v5236, %v5235
        %v5252 = vpack.c.b16 %v5238, %v5237
        %v5253 = vpack.c.b16 %v5240, %v5239
        %v5254 = vpack.c.b16 %v5242, %v5241
        %v5255 = vpack.c.b16 %v5244, %v5243
        %v5256 = vpack.c.b16 %v5246, %v5245
        %v5257 = vpack.c.b16 %v5248, %v5247
        %v5258 = vpack.c.b16 %v5250, %v5249
        %5267 = vmatpush.bf16.msra.mxu0 %v5258
        %5268 = vmatpush.bf16.msra.mxu0 %v5257
        %5269 = vmatpush.bf16.msra.mxu0 %v5256
        %5270 = vmatpush.bf16.msra.mxu0 %v5255
        %5271 = vmatpush.bf16.msra.mxu0 %v5254
        %5272 = vmatpush.bf16.msra.mxu0 %v5253
        %5273 = vmatpush.bf16.msra.mxu0 %v5252
        %5274 = vmatpush.bf16.msra.mxu0 %v5251
        %5275 = vmatmul.bf16.gmra.mxu0 %v5187
        %v5276 = vpop.f32.mrf.mxu0
        %v5277 = vadd.f32 0.0, %v5276
        %v5278 = vpop.f32.mrf.mxu0
        %v5279 = vadd.f32 0.0, %v5278
        %5280 = vmatmul.bf16.gmra.mxu0 %v5188
        %v5281 = vpop.f32.mrf.mxu0
        %v5282 = vadd.f32 0.0, %v5281
        %v5283 = vpop.f32.mrf.mxu0
        %v5284 = vadd.f32 0.0, %v5283
        %5285 = vmatmul.bf16.gmra.mxu0 %v5189
        %v5286 = vpop.f32.mrf.mxu0
        %v5287 = vadd.f32 0.0, %v5286
        %v5288 = vpop.f32.mrf.mxu0
        %v5289 = vadd.f32 0.0, %v5288
        %5290 = vmatmul.bf16.gmra.mxu0 %v5190
        %v5291 = vpop.f32.mrf.mxu0
        %v5292 = vadd.f32 0.0, %v5291
        %v5293 = vpop.f32.mrf.mxu0
        %v5294 = vadd.f32 0.0, %v5293
        %5295 = vmatmul.bf16.gmra.mxu0 %v5191
        %v5296 = vpop.f32.mrf.mxu0
        %v5297 = vadd.f32 0.0, %v5296
        %v5298 = vpop.f32.mrf.mxu0
        %v5299 = vadd.f32 0.0, %v5298
        %5300 = vmatmul.bf16.gmra.mxu0 %v5192
        %v5301 = vpop.f32.mrf.mxu0
        %v5302 = vadd.f32 0.0, %v5301
        %v5303 = vpop.f32.mrf.mxu0
        %v5304 = vadd.f32 0.0, %v5303
        %5305 = vmatmul.bf16.gmra.mxu0 %v5193
        %v5306 = vpop.f32.mrf.mxu0
        %v5307 = vadd.f32 0.0, %v5306
        %v5308 = vpop.f32.mrf.mxu0
        %v5309 = vadd.f32 0.0, %v5308
        %5310 = vmatmul.bf16.gmra.mxu0 %v5194
        %v5311 = vpop.f32.mrf.mxu0
        %v5312 = vadd.f32 0.0, %v5311
        %v5313 = vpop.f32.mrf.mxu0
        %v5314 = vadd.f32 0.0, %v5313
        %5315 = vmatmul.bf16.gmra.mxu0 %v5195
        %v5316 = vpop.f32.mrf.mxu0
        %v5317 = vadd.f32 0.0, %v5316
        %v5318 = vpop.f32.mrf.mxu0
        %v5319 = vadd.f32 0.0, %v5318
        %5320 = vmatmul.bf16.gmra.mxu0 %v5196
        %v5321 = vpop.f32.mrf.mxu0
        %v5322 = vadd.f32 0.0, %v5321
        %v5323 = vpop.f32.mrf.mxu0
        %v5324 = vadd.f32 0.0, %v5323
        %5325 = vmatmul.bf16.gmra.mxu0 %v5197
        %v5326 = vpop.f32.mrf.mxu0
        %v5327 = vadd.f32 0.0, %v5326
        %v5328 = vpop.f32.mrf.mxu0
        %v5329 = vadd.f32 0.0, %v5328
        %5330 = vmatmul.bf16.gmra.mxu0 %v5198
        %v5331 = vpop.f32.mrf.mxu0
        %v5332 = vadd.f32 0.0, %v5331
        %v5333 = vpop.f32.mrf.mxu0
        %v5334 = vadd.f32 0.0, %v5333
        %5335 = vmatmul.bf16.gmra.mxu0 %v5199
        %v5336 = vpop.f32.mrf.mxu0
        %v5337 = vadd.f32 0.0, %v5336
        %v5338 = vpop.f32.mrf.mxu0
        %v5339 = vadd.f32 0.0, %v5338
        %5340 = vmatmul.bf16.gmra.mxu0 %v5200
        %v5341 = vpop.f32.mrf.mxu0
        %v5342 = vadd.f32 0.0, %v5341
        %v5343 = vpop.f32.mrf.mxu0
        %v5344 = vadd.f32 0.0, %v5343
        %5345 = vmatmul.bf16.gmra.mxu0 %v5201
        %v5346 = vpop.f32.mrf.mxu0
        %v5347 = vadd.f32 0.0, %v5346
        %v5348 = vpop.f32.mrf.mxu0
        %v5349 = vadd.f32 0.0, %v5348
        %5350 = vmatmul.bf16.gmra.mxu0 %v5202
        %v5351 = vpop.f32.mrf.mxu0
        %v5352 = vadd.f32 0.0, %v5351
        %v5353 = vpop.f32.mrf.mxu0
        %v5354 = vadd.f32 0.0, %v5353
        %5355 = vdwg.mxu0
        %v5356 = vld [vmem:[%s8] sm:$0x1]
        %v5358 = vperm.slane %v5356, 0
        %v5360 = vmul.f32 %v5277, %v5358
        %v5361 = vmul.f32 %v5279, %v5358
        %v5362 = vmul.f32 %v5282, %v5358
        %v5363 = vmul.f32 %v5284, %v5358
        %v5364 = vmul.f32 %v5287, %v5358
        %v5365 = vmul.f32 %v5289, %v5358
        %v5366 = vmul.f32 %v5292, %v5358
        %v5367 = vmul.f32 %v5294, %v5358
        %v5368 = vmul.f32 %v5297, %v5358
        %v5369 = vmul.f32 %v5299, %v5358
        %v5370 = vmul.f32 %v5302, %v5358
        %v5371 = vmul.f32 %v5304, %v5358
        %v5372 = vmul.f32 %v5307, %v5358
        %v5373 = vmul.f32 %v5309, %v5358
        %v5374 = vmul.f32 %v5312, %v5358
        %v5375 = vmul.f32 %v5314, %v5358
        %v5376 = vmul.f32 %v5317, %v5358
        %v5377 = vmul.f32 %v5319, %v5358
        %v5378 = vmul.f32 %v5322, %v5358
        %v5379 = vmul.f32 %v5324, %v5358
        %v5380 = vmul.f32 %v5327, %v5358
        %v5381 = vmul.f32 %v5329, %v5358
        %v5382 = vmul.f32 %v5332, %v5358
        %v5383 = vmul.f32 %v5334, %v5358
        %v5384 = vmul.f32 %v5337, %v5358
        %v5385 = vmul.f32 %v5339, %v5358
        %v5386 = vmul.f32 %v5342, %v5358
        %v5387 = vmul.f32 %v5344, %v5358
        %v5388 = vmul.f32 %v5347, %v5358
        %v5389 = vmul.f32 %v5349, %v5358
        %v5390 = vmul.f32 %v5352, %v5358
        %v5391 = vmul.f32 %v5354, %v5358
        %v5392 = vld [vmem:[%s9] sm:$0x1]
        %v5394 = vperm.slane %v5392, 0
        %v5396 = vadd.f32 %v5360, %v5394
        %v5397 = vadd.f32 %v5361, %v5394
        %v5398 = vadd.f32 %v5362, %v5394
        %v5399 = vadd.f32 %v5363, %v5394
        %v5400 = vadd.f32 %v5364, %v5394
        %v5401 = vadd.f32 %v5365, %v5394
        %v5402 = vadd.f32 %v5366, %v5394
        %v5403 = vadd.f32 %v5367, %v5394
        %v5404 = vadd.f32 %v5368, %v5394
        %v5405 = vadd.f32 %v5369, %v5394
        %v5406 = vadd.f32 %v5370, %v5394
        %v5407 = vadd.f32 %v5371, %v5394
        %v5408 = vadd.f32 %v5372, %v5394
        %v5409 = vadd.f32 %v5373, %v5394
        %v5410 = vadd.f32 %v5374, %v5394
        %v5411 = vadd.f32 %v5375, %v5394
        %v5412 = vadd.f32 %v5376, %v5394
        %v5413 = vadd.f32 %v5377, %v5394
        %v5414 = vadd.f32 %v5378, %v5394
        %v5415 = vadd.f32 %v5379, %v5394
        %v5416 = vadd.f32 %v5380, %v5394
        %v5417 = vadd.f32 %v5381, %v5394
        %v5418 = vadd.f32 %v5382, %v5394
        %v5419 = vadd.f32 %v5383, %v5394
        %v5420 = vadd.f32 %v5384, %v5394
        %v5421 = vadd.f32 %v5385, %v5394
        %v5422 = vadd.f32 %v5386, %v5394
        %v5423 = vadd.f32 %v5387, %v5394
        %v5424 = vadd.f32 %v5388, %v5394
        %v5425 = vadd.f32 %v5389, %v5394
        %v5426 = vadd.f32 %v5390, %v5394
        %v5427 = vadd.f32 %v5391, %v5394
        %v5428 = vadd.f32 %v4720, %v5396
        %v5429 = vadd.f32 %v4721, %v5397
        %v5430 = vadd.f32 %v4722, %v5398
        %v5431 = vadd.f32 %v4723, %v5399
        %v5432 = vadd.f32 %v4724, %v5400
        %v5433 = vadd.f32 %v4725, %v5401
        %v5434 = vadd.f32 %v4726, %v5402
        %v5435 = vadd.f32 %v4727, %v5403
        %v5436 = vadd.f32 %v4728, %v5404
        %v5437 = vadd.f32 %v4729, %v5405
        %v5438 = vadd.f32 %v4730, %v5406
        %v5439 = vadd.f32 %v4731, %v5407
        %v5440 = vadd.f32 %v4732, %v5408
        %v5441 = vadd.f32 %v4733, %v5409
        %v5442 = vadd.f32 %v4734, %v5410
        %v5443 = vadd.f32 %v4735, %v5411
        %v5444 = vadd.f32 %v4736, %v5412
        %v5445 = vadd.f32 %v4737, %v5413
        %v5446 = vadd.f32 %v4738, %v5414
        %v5447 = vadd.f32 %v4739, %v5415
        %v5448 = vadd.f32 %v4740, %v5416
        %v5449 = vadd.f32 %v4741, %v5417
        %v5450 = vadd.f32 %v4742, %v5418
        %v5451 = vadd.f32 %v4743, %v5419
        %v5452 = vadd.f32 %v4744, %v5420
        %v5453 = vadd.f32 %v4745, %v5421
        %v5454 = vadd.f32 %v4746, %v5422
        %v5455 = vadd.f32 %v4747, %v5423
        %v5456 = vadd.f32 %v4748, %v5424
        %v5457 = vadd.f32 %v4749, %v5425
        %v5458 = vadd.f32 %v4750, %v5426
        %v5459 = vadd.f32 %v4751, %v5427
        %v5460 = vmax.f32 %v5428, 0.0
        %v5461 = vmax.f32 %v5429, 0.0
        %v5462 = vmax.f32 %v5430, 0.0
        %v5463 = vmax.f32 %v5431, 0.0
        %v5464 = vmax.f32 %v5432, 0.0
        %v5465 = vmax.f32 %v5433, 0.0
        %v5466 = vmax.f32 %v5434, 0.0
        %v5467 = vmax.f32 %v5435, 0.0
        %v5468 = vmax.f32 %v5436, 0.0
        %v5469 = vmax.f32 %v5437, 0.0
        %v5470 = vmax.f32 %v5438, 0.0
        %v5471 = vmax.f32 %v5439, 0.0
        %v5472 = vmax.f32 %v5440, 0.0
        %v5473 = vmax.f32 %v5441, 0.0
        %v5474 = vmax.f32 %v5442, 0.0
        %v5475 = vmax.f32 %v5443, 0.0
        %v5476 = vmax.f32 %v5444, 0.0
        %v5477 = vmax.f32 %v5445, 0.0
        %v5478 = vmax.f32 %v5446, 0.0
        %v5479 = vmax.f32 %v5447, 0.0
        %v5480 = vmax.f32 %v5448, 0.0
        %v5481 = vmax.f32 %v5449, 0.0
        %v5482 = vmax.f32 %v5450, 0.0
        %v5483 = vmax.f32 %v5451, 0.0
        %v5484 = vmax.f32 %v5452, 0.0
        %v5485 = vmax.f32 %v5453, 0.0
        %v5486 = vmax.f32 %v5454, 0.0
        %v5487 = vmax.f32 %v5455, 0.0
        %v5488 = vmax.f32 %v5456, 0.0
        %v5489 = vmax.f32 %v5457, 0.0
        %v5490 = vmax.f32 %v5458, 0.0
        %v5491 = vmax.f32 %v5459, 0.0
        %5492 = vst [vmem:[%s429] sm:$0xff] %v5460
        %5493 = vst [vmem:[%s429 + $0x8] sm:$0xff] %v5461
        %5494 = vst [vmem:[%s429 + $0x10] sm:$0xff] %v5462
        %5495 = vst [vmem:[%s429 + $0x18] sm:$0xff] %v5463
        %5496 = vst [vmem:[%s429 + $0x20] sm:$0xff] %v5464
        %5497 = vst [vmem:[%s429 + $0x28] sm:$0xff] %v5465
        %5498 = vst [vmem:[%s429 + $0x30] sm:$0xff] %v5466
        %5499 = vst [vmem:[%s429 + $0x38] sm:$0xff] %v5467
        %5500 = vst [vmem:[%s429 + $0x40] sm:$0xff] %v5468
        %5501 = vst [vmem:[%s429 + $0x48] sm:$0xff] %v5469
        %5502 = vst [vmem:[%s429 + $0x50] sm:$0xff] %v5470
        %5503 = vst [vmem:[%s429 + $0x58] sm:$0xff] %v5471
        %5504 = vst [vmem:[%s429 + $0x60] sm:$0xff] %v5472
        %5505 = vst [vmem:[%s429 + $0x68] sm:$0xff] %v5473
        %5506 = vst [vmem:[%s429 + $0x70] sm:$0xff] %v5474
        %5507 = vst [vmem:[%s429 + $0x78] sm:$0xff] %v5475
        %5508 = vst [vmem:[%s429 + $0x80] sm:$0xff] %v5476
        %5509 = vst [vmem:[%s429 + $0x88] sm:$0xff] %v5477
        %5510 = vst [vmem:[%s429 + $0x90] sm:$0xff] %v5478
        %5511 = vst [vmem:[%s429 + $0x98] sm:$0xff] %v5479
        %5512 = vst [vmem:[%s429 + $0xa0] sm:$0xff] %v5480
        %5513 = vst [vmem:[%s429 + $0xa8] sm:$0xff] %v5481
        %5514 = vst [vmem:[%s429 + $0xb0] sm:$0xff] %v5482
        %5515 = vst [vmem:[%s429 + $0xb8] sm:$0xff] %v5483
        %5516 = vst [vmem:[%s429 + $0xc0] sm:$0xff] %v5484
        %5517 = vst [vmem:[%s429 + $0xc8] sm:$0xff] %v5485
        %5518 = vst [vmem:[%s429 + $0xd0] sm:$0xff] %v5486
        %5519 = vst [vmem:[%s429 + $0xd8] sm:$0xff] %v5487
        %5520 = vst [vmem:[%s429 + $0xe0] sm:$0xff] %v5488
        %5521 = vst [vmem:[%s429 + $0xe8] sm:$0xff] %v5489
        %5522 = vst [vmem:[%s429 + $0xf0] sm:$0xff] %v5490
        %5523 = vst [vmem:[%s429 + $0xf8] sm:$0xff] %v5491
        %s5524 = sand.u32 %s252, 1
        %s5525 = scalar_lea.sflag [#allocation6], %s5524
        %s5526 = sand.u32 %s252, 1
        %s5527 = smul.addr %s5526, 256
        %s5528 = scalar_lea.vmem [#allocation12], %s5527
        // Predicated region
        $region77: #{tpu_custom_call.1} parent=59 // pred_check
          %p5529 = pneg %p262
        $region78: #{tpu_custom_call.1} parent=59 // pred_check_branch
          %5531 = sbr.rel (%p5529) target = $region80
        $region79: #{tpu_custom_call.1} parent=59 // pred_region
          %5533 = vsyncadd %s5525, 0
          %s5534 = smul.addr %s29, 32
          %s5535 = smul.addr %s5534, 8
          %s5536 = scalar_lea.hbm %s10, %s5535
          %s5537 = sshll.u32 %s5528, 4
          %s5538 = int_to_ptr.vmem [resolvable:$true] %s5537
          %s5539 = sshll.u32 %s5536, 4
          %s5540 = int_to_ptr.hbm [resolvable:$true] %s5539
          %5545 = dma.vmem_to_hbm [thread:$0]  %s5538, 4096, %s5540, %s5525, 128, 128, 8
        $region80: #{tpu_custom_call.1} parent=59 // pred_fallthru
          _
      $region60: #{tpu_custom_call.1} parent=5 // pred_fallthru
        _
      %p5546 = scmp.le.s32.totalorder 2, %s24
      // Predicated region
      $region81: #{tpu_custom_call.1} parent=5 // pred_check
        %p5547 = pneg %p5546
      $region82: #{tpu_custom_call.1} parent=5 // pred_check_branch
        %5549 = sbr.rel (%p5547) target = $region84
      $region83: #{tpu_custom_call.1} parent=5 // pred_region
        %s5550 = ssub.s32 %s24, 2
        // Predicated region
        $region85: #{tpu_custom_call.1} parent=83 // pred_check
          %p5551 = pneg %p268
        $region86: #{tpu_custom_call.1} parent=83 // pred_check_branch
          %5553 = sbr.rel (%p5551) target = $region88
        $region87: #{tpu_custom_call.1} parent=83 // pred_region
          %s5554 = sand.u32 %s253, 1
          %s5555 = scalar_lea.sflag [#allocation6], %s5554
          %s5556 = sand.u32 %s253, 1
          %s5557 = smul.addr %s5556, 256
          %s5558 = scalar_lea.vmem [#allocation12], %s5557
          %5560 = dma.done %s5555, 4096
        $region88: #{tpu_custom_call.1} parent=83 // pred_fallthru
          _
      $region84: #{tpu_custom_call.1} parent=5 // pred_fallthru
        _
    $region6: #{tpu_custom_call.1} parent=1 // loop_footer
      %s28 = sadd.s32 1, %s24
    $region7: #{tpu_custom_call.1} parent=1 // loop_footer_branch
      %23 = sbr.rel target = $region3
    $region8: #{tpu_custom_call.1} parent=1 // loop_exit
      _
    %5561 = vsyncpa [#allocation5], 1
    %s5562 = scalar_lea.sflag [#allocation5], 1
    %5563 = vsyncpa %s5562, 1
    %5564 = vsyncpa [#allocation8], 1
    %5565 = vsyncpa [#allocation11], 1
    %5566 = vsyncpa [#allocation6], 1
    %s5567 = scalar_lea.sflag [#allocation6], 1
    %5568 = vsyncpa %s5567, 1

</llo_original>
